<compile_context>
chip_gen: v7x
topology: tpu7x:2x2x1
jax: 0.10.0
libtpu: 0.0.40
codegen_flags: <defaults>
</compile_context>

<pallas_src>
import jax
import jax.numpy as jnp
from jax.experimental import pallas as pl
from jax.experimental.pallas import tpu as pltpu

EPS = 1e-5


# ------------------------------ Pallas kernel ------------------------------

def _bn_train(h, g, be):
    """Train-mode BatchNorm over axis 0: one-pass stats, biased variance."""
    m = jnp.mean(h, axis=0, keepdims=True)
    ms = jnp.mean(h * h, axis=0, keepdims=True)
    var = jnp.maximum(ms - m * m, 0.0)
    return (h - m) * jax.lax.rsqrt(var + EPS) * g + be


def fused_forward_kernel(p1_ref, w1_ref, b1_ref, g1_ref, be1_ref,
                         w2_ref, b2_ref, g2_ref, be2_ref,
                         wf1_ref, bf1_ref, g3_ref, be3_ref,
                         wf2_ref, bf2_ref, g4_ref, be4_ref, o_ref):
    f32 = jnp.float32
    N = o_ref.shape[0]                      # batch (even)
    B1, B2, B3 = 64 * N, 16 * N, 4 * N      # contiguous block sizes per stage

    # ---- conv1 (3x3 / stride 3) as im2col matmul + bias + ReLU + BN1 -------
    # p1 rows ordered (di,dj, kh,kw, e,f, i3,j3, n); columns = 3x3 taps (a,b).
    h1 = jnp.dot(p1_ref[...], w1_ref[...], preferred_element_type=f32)
    h1 = jnp.maximum(h1 + b1_ref[...], 0.0)
    y1 = _bn_train(h1, g1_ref[...], be1_ref[...])                 # (256N, 64)

    # ---- maxpool 2x2/2 over (di,dj): max of 4 contiguous row blocks --------
    pooled1 = jnp.maximum(
        jnp.maximum(y1[0 * B1:1 * B1, :], y1[1 * B1:2 * B1, :]),
        jnp.maximum(y1[2 * B1:3 * B1, :], y1[3 * B1:4 * B1, :]))  # (64N, 64)

    # ---- conv2 (2x2 / stride 2) as sum of 4 matmuls over (kh,kw) -----------
    h2 = jnp.dot(pooled1[0:B2, :], w2_ref[0], preferred_element_type=f32)
    for q in range(1, 4):
        h2 = h2 + jnp.dot(pooled1[q * B2:(q + 1) * B2, :], w2_ref[q],
                          preferred_element_type=f32)
    h2 = jnp.maximum(h2 + b2_ref[...], 0.0)
    y2 = _bn_train(h2, g2_ref[...], be2_ref[...])                 # (16N, 128)

    # ---- maxpool 2x2/2 over (e,f): max of 4 contiguous row blocks ----------
    pooled2 = jnp.maximum(
        jnp.maximum(y2[0 * B3:1 * B3, :], y2[1 * B3:2 * B3, :]),
        jnp.maximum(y2[2 * B3:3 * B3, :], y2[3 * B3:4 * B3, :]))  # (4N, 128) rows (s, n)

    # ---- fc1 with the NCHW flatten folded into the weight layout -----------
    # pooled2 row s*N+n is sample n at spatial position s=(i3*2+j3);
    # wf1_ref[s] holds the matching fc1 weight rows (channel-major).
    # Select the N rows of block s via a tiny 0/1 matmul (keeps every in-kernel
    # slice sublane-aligned).
    rr = jax.lax.broadcasted_iota(jnp.int32, (N, 4 * N), 1)
    nn = jax.lax.broadcasted_iota(jnp.int32, (N, 4 * N), 0)
    z1 = None
    for s in range(4):
        sel = (rr == nn + s * N).astype(f32)                       # (N, 4N)
        a_s = jnp.dot(sel, pooled2, preferred_element_type=f32)    # (N, 128)
        t = jnp.dot(a_s, wf1_ref[s], preferred_element_type=f32)   # (N, 256)
        z1 = t if z1 is None else z1 + t
    z1 = jnp.maximum(z1 + bf1_ref[...], 0.0)
    h3 = _bn_train(z1, g3_ref[...], be3_ref[...])                  # (N, 256)

    # ---- fc2 + ReLU + BN4 + softmax(dim=1) ---------------------------------
    z2 = jnp.dot(h3, wf2_ref[...], preferred_element_type=f32) + bf2_ref[...]
    z2 = jnp.maximum(z2, 0.0)
    h4 = _bn_train(z2, g4_ref[...], be4_ref[...])                  # (N, 7)
    h4 = h4 - jnp.max(h4, axis=-1, keepdims=True)
    e = jnp.exp(h4)
    o_ref[...] = e / jnp.sum(e, axis=-1, keepdims=True)


# ------------------------------ wrapper -------------------------------------

def _vmem_spec():
    return pl.BlockSpec(memory_space=pltpu.MemorySpace.VMEM)


def model_forward(x, kp):
    """x: (N, 1, 48, 48) float32 (N even); kp: kernel-layout params."""
    N = x.shape[0]
    # conv1 im2col with the pool/conv/pool-friendly row ordering.  This is the
    # only XLA glue (one transpose of an 18 KiB tensor); everything else runs
    # inside the single Pallas kernel.
    #   H = 24*i3 + 12*e + 6*kh + 3*di + a,  W = 24*j3 + 12*f + 6*kw + 3*dj + b
    xr = x.reshape(N, 2, 2, 2, 2, 3, 2, 2, 2, 2, 3)
    #              n  i3 e  kh di a  j3 f  kw dj b
    p1 = xr.transpose(4, 9, 3, 8, 2, 7, 1, 6, 0, 5, 10).reshape(256 * N, 9)

    return pl.pallas_call(
        fused_forward_kernel,
        out_shape=jax.ShapeDtypeStruct((N, 7), jnp.float32),
        in_specs=[_vmem_spec() for _ in range(17)],
        out_specs=_vmem_spec(),
    )(p1,
      kp["w1m"], kp["b1"], kp["g1"], kp["be1"],
      kp["w2m"], kp["b2"], kp["g2"], kp["be2"],
      kp["wf1m"], kp["bf1"], kp["g3"], kp["be3"],
      kp["wf2m"], kp["bf2"], kp["g4"], kp["be4"])


# ------------------ parameters: PyTorch layout + kernel packing -------------

def init_pt_params(key):
    ks = jax.random.split(key, 8)
    return dict(
        w1=jax.random.normal(ks[0], (64, 1, 3, 3), jnp.float32) * 0.10,   # OIHW
        b1=jax.random.normal(ks[1], (64,), jnp.float32) * 0.10,
        w2=jax.random.normal(ks[2], (128, 64, 2, 2), jnp.float32) * 0.05,
        b2=jax.random.normal(ks[3], (128,), jnp.float32) * 0.05,
        wf1=jax.random.normal(ks[4], (256, 512), jnp.float32) * 0.04,     # (out, in=NCHW flat)
        bf1=jax.random.normal(ks[5], (256,), jnp.float32) * 0.04,
        wf2=jax.random.normal(ks[6], (7, 256), jnp.float32) * 0.06,
        bf2=jax.random.normal(ks[7], (7,), jnp.float32) * 0.06,
    )


def pack_params(pt):
    return dict(
        w1m=pt["w1"].reshape(64, 9).T,                              # (9, 64): rows (a,b)
        b1=pt["b1"].reshape(1, 64),
        g1=jnp.ones((1, 64), jnp.float32), be1=jnp.zeros((1, 64), jnp.float32),
        w2m=pt["w2"].transpose(2, 3, 1, 0).reshape(4, 64, 128),     # [q=(kh,kw), c_in, c_out]
        b2=pt["b2"].reshape(1, 128),
        g2=jnp.ones((1, 128), jnp.float32), be2=jnp.zeros((1, 128), jnp.float32),
        wf1m=pt["wf1"].reshape(256, 128, 4).transpose(2, 1, 0),     # [s, c, out]: NCHW flatten folded in
        bf1=pt["bf1"].reshape(1, 256),
        g3=jnp.ones((1, 256), jnp.float32), be3=jnp.zeros((1, 256), jnp.float32),
        wf2m=pt["wf2"].T,                                           # (256, 7)
        bf2=pt["bf2"].reshape(1, 7),
        g4=jnp.ones((1, 7), jnp.float32), be4=jnp.zeros((1, 7), jnp.float32),
    )


# ------------------ pure-JAX reference (validation only) --------------------

def reference_forward(x, pt):
    hp = jax.lax.Precision.HIGHEST

    def bn(h, axes):
        m = jnp.mean(h, axis=axes, keepdims=True)
        v = jnp.mean((h - m) ** 2, axis=axes, keepdims=True)
        return (h - m) / jnp.sqrt(v + EPS)

    c1 = jax.lax.conv_general_dilated(
        x, pt["w1"], (3, 3), "VALID",
        dimension_numbers=("NCHW", "OIHW", "NCHW"), precision=hp)
    c1 = c1 + pt["b1"].reshape(1, -1, 1, 1)
    v1 = bn(jnp.maximum(c1, 0.0), (0, 2, 3))
    v1 = jax.lax.reduce_window(v1, -jnp.inf, jax.lax.max,
                               (1, 1, 2, 2), (1, 1, 2, 2), "VALID")
    c2 = jax.lax.conv_general_dilated(
        v1, pt["w2"], (2, 2), "VALID",
        dimension_numbers=("NCHW", "OIHW", "NCHW"), precision=hp)
    c2 = c2 + pt["b2"].reshape(1, -1, 1, 1)
    v2 = bn(jnp.maximum(c2, 0.0), (0, 2, 3))
    v2 = jax.lax.reduce_window(v2, -jnp.inf, jax.lax.max,
                               (1, 1, 2, 2), (1, 1, 2, 2), "VALID")
    flat = v2.reshape(v2.shape[0], -1)                              # == torch .view(-1, 512)
    z1 = bn(jnp.maximum(jnp.dot(flat, pt["wf1"].T, precision=hp) + pt["bf1"], 0.0), (0,))
    z2 = bn(jnp.maximum(jnp.dot(z1, pt["wf2"].T, precision=hp) + pt["bf2"], 0.0), (0,))
    return jax.nn.softmax(z2, axis=1)


# ------------------------------ main -----------------------------------------

if __name__ == "__main__":
    key = jax.random.PRNGKey(0)
    k_x, k_p = jax.random.split(key)
    # 48x48 spatial size is forced by the architecture (view(-1,512) after the
    # two conv/pool stages); batch = 2 (even, as required by the row blocking).
    x = jax.random.normal(k_x, (2, 1, 48, 48), jnp.float32)
    pt = init_pt_params(k_p)
    kp = pack_params(pt)

    out = jax.block_until_ready(jax.jit(model_forward)(x, kp))

    assert out.shape == (2, 7), out.shape
    assert bool(jnp.all(jnp.isfinite(out)))
    assert bool(jnp.allclose(jnp.sum(out, axis=1), 1.0, atol=1e-5))

    # Validate the fused kernel against a pure-JAX reference of the forward.
    ref = jax.block_until_ready(jax.jit(reference_forward)(x, pt))
    max_err = float(jnp.max(jnp.abs(out - ref)))
    assert max_err < 5e-3, f"mismatch vs reference: {max_err}"

    print("KERNEL_OK")
</pallas_src>

<mosaic_0001>
module attributes {stable_mosaic.version = 11 : i64} {
  func.func @fused_forward_kernel(%arg0: memref<512x9xf32, #tpu.memory_space<vmem>>, %arg1: memref<9x64xf32, #tpu.memory_space<vmem>>, %arg2: memref<1x64xf32, #tpu.memory_space<vmem>>, %arg3: memref<1x64xf32, #tpu.memory_space<vmem>>, %arg4: memref<1x64xf32, #tpu.memory_space<vmem>>, %arg5: memref<4x64x128xf32, #tpu.memory_space<vmem>>, %arg6: memref<1x128xf32, #tpu.memory_space<vmem>>, %arg7: memref<1x128xf32, #tpu.memory_space<vmem>>, %arg8: memref<1x128xf32, #tpu.memory_space<vmem>>, %arg9: memref<4x128x256xf32, #tpu.memory_space<vmem>>, %arg10: memref<1x256xf32, #tpu.memory_space<vmem>>, %arg11: memref<1x256xf32, #tpu.memory_space<vmem>>, %arg12: memref<1x256xf32, #tpu.memory_space<vmem>>, %arg13: memref<256x7xf32, #tpu.memory_space<vmem>>, %arg14: memref<1x7xf32, #tpu.memory_space<vmem>>, %arg15: memref<1x7xf32, #tpu.memory_space<vmem>>, %arg16: memref<1x7xf32, #tpu.memory_space<vmem>>, %arg17: memref<2x7xf32, #tpu.memory_space<vmem>>) attributes {dimension_semantics = [], scalar_prefetch = 0 : i64, scratch_operands = 0 : i64, tpu.core_type = #tpu.core_type<tc>} {
    %c0 = arith.constant 0 : index
    %c0_0 = arith.constant 0 : index
    %0 = vector.load %arg0[%c0, %c0_0] : memref<512x9xf32, #tpu.memory_space<vmem>>, vector<512x9xf32>
    %c0_1 = arith.constant 0 : index
    %c0_2 = arith.constant 0 : index
    %1 = vector.load %arg1[%c0_1, %c0_2] : memref<9x64xf32, #tpu.memory_space<vmem>>, vector<9x64xf32>
    %cst = arith.constant dense<0.000000e+00> : vector<512x64xf32>
    %2 = tpu.matmul %0, %1, %cst {dimension_numbers = #tpu.dot_dimension_numbers<[1], [0], [0], [1], [0, 0, 1, 1], [], []>} : vector<512x9xf32>, vector<9x64xf32>, vector<512x64xf32> -> vector<512x64xf32>
    %c0_3 = arith.constant 0 : index
    %c0_4 = arith.constant 0 : index
    %3 = vector.load %arg2[%c0_3, %c0_4] : memref<1x64xf32, #tpu.memory_space<vmem>>, vector<1x64xf32>
    %4 = vector.broadcast %3 : vector<1x64xf32> to vector<512x64xf32>
    %5 = arith.addf %2, %4 : vector<512x64xf32>
    %cst_5 = arith.constant 0.000000e+00 : f32
    %6 = vector.broadcast %cst_5 : f32 to vector<512x64xf32>
    %7 = arith.maximumf %5, %6 : vector<512x64xf32>
    %c0_6 = arith.constant 0 : index
    %c0_7 = arith.constant 0 : index
    %8 = vector.load %arg3[%c0_6, %c0_7] : memref<1x64xf32, #tpu.memory_space<vmem>>, vector<1x64xf32>
    %c0_8 = arith.constant 0 : index
    %c0_9 = arith.constant 0 : index
    %9 = vector.load %arg4[%c0_8, %c0_9] : memref<1x64xf32, #tpu.memory_space<vmem>>, vector<1x64xf32>
    %cst_10 = arith.constant dense<0.000000e+00> : vector<64xf32>
    %10 = vector.multi_reduction <add>, %7, %cst_10 [0] : vector<512x64xf32> to vector<64xf32>
    %11 = vector.shape_cast %10 : vector<64xf32> to vector<1x64xf32>
    %cst_11 = arith.constant 5.120000e+02 : f32
    %12 = vector.broadcast %cst_11 : f32 to vector<1x64xf32>
    %13 = arith.divf %11, %12 : vector<1x64xf32>
    %14 = arith.mulf %7, %7 : vector<512x64xf32>
    %cst_12 = arith.constant dense<0.000000e+00> : vector<64xf32>
    %15 = vector.multi_reduction <add>, %14, %cst_12 [0] : vector<512x64xf32> to vector<64xf32>
    %16 = vector.shape_cast %15 : vector<64xf32> to vector<1x64xf32>
    %cst_13 = arith.constant 5.120000e+02 : f32
    %17 = vector.broadcast %cst_13 : f32 to vector<1x64xf32>
    %18 = arith.divf %16, %17 : vector<1x64xf32>
    %19 = arith.mulf %13, %13 : vector<1x64xf32>
    %20 = arith.subf %18, %19 : vector<1x64xf32>
    %cst_14 = arith.constant 0.000000e+00 : f32
    %21 = vector.broadcast %cst_14 : f32 to vector<1x64xf32>
    %22 = arith.maximumf %20, %21 : vector<1x64xf32>
    %23 = vector.broadcast %13 : vector<1x64xf32> to vector<512x64xf32>
    %24 = arith.subf %7, %23 : vector<512x64xf32>
    %cst_15 = arith.constant 9.99999974E-6 : f32
    %25 = vector.broadcast %cst_15 : f32 to vector<1x64xf32>
    %26 = arith.addf %22, %25 : vector<1x64xf32>
    %27 = math.rsqrt %26 : vector<1x64xf32>
    %28 = vector.broadcast %27 : vector<1x64xf32> to vector<512x64xf32>
    %29 = arith.mulf %24, %28 : vector<512x64xf32>
    %30 = vector.broadcast %8 : vector<1x64xf32> to vector<512x64xf32>
    %31 = arith.mulf %29, %30 : vector<512x64xf32>
    %32 = vector.broadcast %9 : vector<1x64xf32> to vector<512x64xf32>
    %33 = arith.addf %31, %32 : vector<512x64xf32>
    %34 = vector.extract_strided_slice %33 {offsets = [0, 0], sizes = [128, 64], strides = [1, 1]} : vector<512x64xf32> to vector<128x64xf32>
    %35 = vector.extract_strided_slice %33 {offsets = [128, 0], sizes = [128, 64], strides = [1, 1]} : vector<512x64xf32> to vector<128x64xf32>
    %36 = arith.maximumf %34, %35 : vector<128x64xf32>
    %37 = vector.extract_strided_slice %33 {offsets = [256, 0], sizes = [128, 64], strides = [1, 1]} : vector<512x64xf32> to vector<128x64xf32>
    %38 = vector.extract_strided_slice %33 {offsets = [384, 0], sizes = [128, 64], strides = [1, 1]} : vector<512x64xf32> to vector<128x64xf32>
    %39 = arith.maximumf %37, %38 : vector<128x64xf32>
    %40 = arith.maximumf %36, %39 : vector<128x64xf32>
    %41 = vector.extract_strided_slice %40 {offsets = [0, 0], sizes = [32, 64], strides = [1, 1]} : vector<128x64xf32> to vector<32x64xf32>
    %c0_16 = arith.constant 0 : index
    %c0_17 = arith.constant 0 : index
    %c0_18 = arith.constant 0 : index
    %42 = vector.load %arg5[%c0_16, %c0_17, %c0_18] : memref<4x64x128xf32, #tpu.memory_space<vmem>>, vector<1x64x128xf32>
    %43 = vector.shape_cast %42 : vector<1x64x128xf32> to vector<64x128xf32>
    %cst_19 = arith.constant dense<0.000000e+00> : vector<32x128xf32>
    %44 = tpu.matmul %41, %43, %cst_19 {dimension_numbers = #tpu.dot_dimension_numbers<[1], [0], [0], [1], [0, 0, 1, 1], [], []>} : vector<32x64xf32>, vector<64x128xf32>, vector<32x128xf32> -> vector<32x128xf32>
    %45 = vector.extract_strided_slice %40 {offsets = [32, 0], sizes = [32, 64], strides = [1, 1]} : vector<128x64xf32> to vector<32x64xf32>
    %c1 = arith.constant 1 : index
    %c0_20 = arith.constant 0 : index
    %c0_21 = arith.constant 0 : index
    %46 = vector.load %arg5[%c1, %c0_20, %c0_21] : memref<4x64x128xf32, #tpu.memory_space<vmem>>, vector<1x64x128xf32>
    %47 = vector.shape_cast %46 : vector<1x64x128xf32> to vector<64x128xf32>
    %cst_22 = arith.constant dense<0.000000e+00> : vector<32x128xf32>
    %48 = tpu.matmul %45, %47, %cst_22 {dimension_numbers = #tpu.dot_dimension_numbers<[1], [0], [0], [1], [0, 0, 1, 1], [], []>} : vector<32x64xf32>, vector<64x128xf32>, vector<32x128xf32> -> vector<32x128xf32>
    %49 = arith.addf %44, %48 : vector<32x128xf32>
    %50 = vector.extract_strided_slice %40 {offsets = [64, 0], sizes = [32, 64], strides = [1, 1]} : vector<128x64xf32> to vector<32x64xf32>
    %c2 = arith.constant 2 : index
    %c0_23 = arith.constant 0 : index
    %c0_24 = arith.constant 0 : index
    %51 = vector.load %arg5[%c2, %c0_23, %c0_24] : memref<4x64x128xf32, #tpu.memory_space<vmem>>, vector<1x64x128xf32>
    %52 = vector.shape_cast %51 : vector<1x64x128xf32> to vector<64x128xf32>
    %cst_25 = arith.constant dense<0.000000e+00> : vector<32x128xf32>
    %53 = tpu.matmul %50, %52, %cst_25 {dimension_numbers = #tpu.dot_dimension_numbers<[1], [0], [0], [1], [0, 0, 1, 1], [], []>} : vector<32x64xf32>, vector<64x128xf32>, vector<32x128xf32> -> vector<32x128xf32>
    %54 = arith.addf %49, %53 : vector<32x128xf32>
    %55 = vector.extract_strided_slice %40 {offsets = [96, 0], sizes = [32, 64], strides = [1, 1]} : vector<128x64xf32> to vector<32x64xf32>
    %c3 = arith.constant 3 : index
    %c0_26 = arith.constant 0 : index
    %c0_27 = arith.constant 0 : index
    %56 = vector.load %arg5[%c3, %c0_26, %c0_27] : memref<4x64x128xf32, #tpu.memory_space<vmem>>, vector<1x64x128xf32>
    %57 = vector.shape_cast %56 : vector<1x64x128xf32> to vector<64x128xf32>
    %cst_28 = arith.constant dense<0.000000e+00> : vector<32x128xf32>
    %58 = tpu.matmul %55, %57, %cst_28 {dimension_numbers = #tpu.dot_dimension_numbers<[1], [0], [0], [1], [0, 0, 1, 1], [], []>} : vector<32x64xf32>, vector<64x128xf32>, vector<32x128xf32> -> vector<32x128xf32>
    %59 = arith.addf %54, %58 : vector<32x128xf32>
    %c0_29 = arith.constant 0 : index
    %c0_30 = arith.constant 0 : index
    %60 = vector.load %arg6[%c0_29, %c0_30] : memref<1x128xf32, #tpu.memory_space<vmem>>, vector<1x128xf32>
    %61 = vector.broadcast %60 : vector<1x128xf32> to vector<32x128xf32>
    %62 = arith.addf %59, %61 : vector<32x128xf32>
    %cst_31 = arith.constant 0.000000e+00 : f32
    %63 = vector.broadcast %cst_31 : f32 to vector<32x128xf32>
    %64 = arith.maximumf %62, %63 : vector<32x128xf32>
    %c0_32 = arith.constant 0 : index
    %c0_33 = arith.constant 0 : index
    %65 = vector.load %arg7[%c0_32, %c0_33] : memref<1x128xf32, #tpu.memory_space<vmem>>, vector<1x128xf32>
    %c0_34 = arith.constant 0 : index
    %c0_35 = arith.constant 0 : index
    %66 = vector.load %arg8[%c0_34, %c0_35] : memref<1x128xf32, #tpu.memory_space<vmem>>, vector<1x128xf32>
    %cst_36 = arith.constant dense<0.000000e+00> : vector<128xf32>
    %67 = vector.multi_reduction <add>, %64, %cst_36 [0] : vector<32x128xf32> to vector<128xf32>
    %68 = vector.shape_cast %67 : vector<128xf32> to vector<1x128xf32>
    %cst_37 = arith.constant 3.200000e+01 : f32
    %69 = vector.broadcast %cst_37 : f32 to vector<1x128xf32>
    %70 = arith.divf %68, %69 : vector<1x128xf32>
    %71 = arith.mulf %64, %64 : vector<32x128xf32>
    %cst_38 = arith.constant dense<0.000000e+00> : vector<128xf32>
    %72 = vector.multi_reduction <add>, %71, %cst_38 [0] : vector<32x128xf32> to vector<128xf32>
    %73 = vector.shape_cast %72 : vector<128xf32> to vector<1x128xf32>
    %cst_39 = arith.constant 3.200000e+01 : f32
    %74 = vector.broadcast %cst_39 : f32 to vector<1x128xf32>
    %75 = arith.divf %73, %74 : vector<1x128xf32>
    %76 = arith.mulf %70, %70 : vector<1x128xf32>
    %77 = arith.subf %75, %76 : vector<1x128xf32>
    %cst_40 = arith.constant 0.000000e+00 : f32
    %78 = vector.broadcast %cst_40 : f32 to vector<1x128xf32>
    %79 = arith.maximumf %77, %78 : vector<1x128xf32>
    %80 = vector.broadcast %70 : vector<1x128xf32> to vector<32x128xf32>
    %81 = arith.subf %64, %80 : vector<32x128xf32>
    %cst_41 = arith.constant 9.99999974E-6 : f32
    %82 = vector.broadcast %cst_41 : f32 to vector<1x128xf32>
    %83 = arith.addf %79, %82 : vector<1x128xf32>
    %84 = math.rsqrt %83 : vector<1x128xf32>
    %85 = vector.broadcast %84 : vector<1x128xf32> to vector<32x128xf32>
    %86 = arith.mulf %81, %85 : vector<32x128xf32>
    %87 = vector.broadcast %65 : vector<1x128xf32> to vector<32x128xf32>
    %88 = arith.mulf %86, %87 : vector<32x128xf32>
    %89 = vector.broadcast %66 : vector<1x128xf32> to vector<32x128xf32>
    %90 = arith.addf %88, %89 : vector<32x128xf32>
    %91 = vector.extract_strided_slice %90 {offsets = [0, 0], sizes = [8, 128], strides = [1, 1]} : vector<32x128xf32> to vector<8x128xf32>
    %92 = vector.extract_strided_slice %90 {offsets = [8, 0], sizes = [8, 128], strides = [1, 1]} : vector<32x128xf32> to vector<8x128xf32>
    %93 = arith.maximumf %91, %92 : vector<8x128xf32>
    %94 = vector.extract_strided_slice %90 {offsets = [16, 0], sizes = [8, 128], strides = [1, 1]} : vector<32x128xf32> to vector<8x128xf32>
    %95 = vector.extract_strided_slice %90 {offsets = [24, 0], sizes = [8, 128], strides = [1, 1]} : vector<32x128xf32> to vector<8x128xf32>
    %96 = arith.maximumf %94, %95 : vector<8x128xf32>
    %97 = arith.maximumf %93, %96 : vector<8x128xf32>
    %98 = tpu.iota {dimensions = array<i32: 1>} : vector<2x8xi32>
    %99 = tpu.iota {dimensions = array<i32: 0>} : vector<2x8xi32>
    %c0_i32 = arith.constant 0 : i32
    %100 = vector.broadcast %c0_i32 : i32 to vector<2x8xi32>
    %101 = arith.addi %99, %100 : vector<2x8xi32>
    %102 = arith.cmpi eq, %98, %101 : vector<2x8xi32>
    %103 = arith.extui %102 : vector<2x8xi1> to vector<2x8xi32>
    %104 = arith.sitofp %103 : vector<2x8xi32> to vector<2x8xf32>
    %cst_42 = arith.constant dense<0.000000e+00> : vector<2x128xf32>
    %105 = tpu.matmul %104, %97, %cst_42 {dimension_numbers = #tpu.dot_dimension_numbers<[1], [0], [0], [1], [0, 0, 1, 1], [], []>} : vector<2x8xf32>, vector<8x128xf32>, vector<2x128xf32> -> vector<2x128xf32>
    %c0_43 = arith.constant 0 : index
    %c0_44 = arith.constant 0 : index
    %c0_45 = arith.constant 0 : index
    %106 = vector.load %arg9[%c0_43, %c0_44, %c0_45] : memref<4x128x256xf32, #tpu.memory_space<vmem>>, vector<1x128x256xf32>
    %107 = vector.shape_cast %106 : vector<1x128x256xf32> to vector<128x256xf32>
    %cst_46 = arith.constant dense<0.000000e+00> : vector<2x256xf32>
    %108 = tpu.matmul %105, %107, %cst_46 {dimension_numbers = #tpu.dot_dimension_numbers<[1], [0], [0], [1], [0, 0, 1, 1], [], []>} : vector<2x128xf32>, vector<128x256xf32>, vector<2x256xf32> -> vector<2x256xf32>
    %c2_i32 = arith.constant 2 : i32
    %109 = vector.broadcast %c2_i32 : i32 to vector<2x8xi32>
    %110 = arith.addi %99, %109 : vector<2x8xi32>
    %111 = arith.cmpi eq, %98, %110 : vector<2x8xi32>
    %112 = arith.extui %111 : vector<2x8xi1> to vector<2x8xi32>
    %113 = arith.sitofp %112 : vector<2x8xi32> to vector<2x8xf32>
    %cst_47 = arith.constant dense<0.000000e+00> : vector<2x128xf32>
    %114 = tpu.matmul %113, %97, %cst_47 {dimension_numbers = #tpu.dot_dimension_numbers<[1], [0], [0], [1], [0, 0, 1, 1], [], []>} : vector<2x8xf32>, vector<8x128xf32>, vector<2x128xf32> -> vector<2x128xf32>
    %c1_48 = arith.constant 1 : index
    %c0_49 = arith.constant 0 : index
    %c0_50 = arith.constant 0 : index
    %115 = vector.load %arg9[%c1_48, %c0_49, %c0_50] : memref<4x128x256xf32, #tpu.memory_space<vmem>>, vector<1x128x256xf32>
    %116 = vector.shape_cast %115 : vector<1x128x256xf32> to vector<128x256xf32>
    %cst_51 = arith.constant dense<0.000000e+00> : vector<2x256xf32>
    %117 = tpu.matmul %114, %116, %cst_51 {dimension_numbers = #tpu.dot_dimension_numbers<[1], [0], [0], [1], [0, 0, 1, 1], [], []>} : vector<2x128xf32>, vector<128x256xf32>, vector<2x256xf32> -> vector<2x256xf32>
    %118 = arith.addf %108, %117 : vector<2x256xf32>
    %c4_i32 = arith.constant 4 : i32
    %119 = vector.broadcast %c4_i32 : i32 to vector<2x8xi32>
    %120 = arith.addi %99, %119 : vector<2x8xi32>
    %121 = arith.cmpi eq, %98, %120 : vector<2x8xi32>
    %122 = arith.extui %121 : vector<2x8xi1> to vector<2x8xi32>
    %123 = arith.sitofp %122 : vector<2x8xi32> to vector<2x8xf32>
    %cst_52 = arith.constant dense<0.000000e+00> : vector<2x128xf32>
    %124 = tpu.matmul %123, %97, %cst_52 {dimension_numbers = #tpu.dot_dimension_numbers<[1], [0], [0], [1], [0, 0, 1, 1], [], []>} : vector<2x8xf32>, vector<8x128xf32>, vector<2x128xf32> -> vector<2x128xf32>
    %c2_53 = arith.constant 2 : index
    %c0_54 = arith.constant 0 : index
    %c0_55 = arith.constant 0 : index
    %125 = vector.load %arg9[%c2_53, %c0_54, %c0_55] : memref<4x128x256xf32, #tpu.memory_space<vmem>>, vector<1x128x256xf32>
    %126 = vector.shape_cast %125 : vector<1x128x256xf32> to vector<128x256xf32>
    %cst_56 = arith.constant dense<0.000000e+00> : vector<2x256xf32>
    %127 = tpu.matmul %124, %126, %cst_56 {dimension_numbers = #tpu.dot_dimension_numbers<[1], [0], [0], [1], [0, 0, 1, 1], [], []>} : vector<2x128xf32>, vector<128x256xf32>, vector<2x256xf32> -> vector<2x256xf32>
    %128 = arith.addf %118, %127 : vector<2x256xf32>
    %c6_i32 = arith.constant 6 : i32
    %129 = vector.broadcast %c6_i32 : i32 to vector<2x8xi32>
    %130 = arith.addi %99, %129 : vector<2x8xi32>
    %131 = arith.cmpi eq, %98, %130 : vector<2x8xi32>
    %132 = arith.extui %131 : vector<2x8xi1> to vector<2x8xi32>
    %133 = arith.sitofp %132 : vector<2x8xi32> to vector<2x8xf32>
    %cst_57 = arith.constant dense<0.000000e+00> : vector<2x128xf32>
    %134 = tpu.matmul %133, %97, %cst_57 {dimension_numbers = #tpu.dot_dimension_numbers<[1], [0], [0], [1], [0, 0, 1, 1], [], []>} : vector<2x8xf32>, vector<8x128xf32>, vector<2x128xf32> -> vector<2x128xf32>
    %c3_58 = arith.constant 3 : index
    %c0_59 = arith.constant 0 : index
    %c0_60 = arith.constant 0 : index
    %135 = vector.load %arg9[%c3_58, %c0_59, %c0_60] : memref<4x128x256xf32, #tpu.memory_space<vmem>>, vector<1x128x256xf32>
    %136 = vector.shape_cast %135 : vector<1x128x256xf32> to vector<128x256xf32>
    %cst_61 = arith.constant dense<0.000000e+00> : vector<2x256xf32>
    %137 = tpu.matmul %134, %136, %cst_61 {dimension_numbers = #tpu.dot_dimension_numbers<[1], [0], [0], [1], [0, 0, 1, 1], [], []>} : vector<2x128xf32>, vector<128x256xf32>, vector<2x256xf32> -> vector<2x256xf32>
    %138 = arith.addf %128, %137 : vector<2x256xf32>
    %c0_62 = arith.constant 0 : index
    %c0_63 = arith.constant 0 : index
    %139 = vector.load %arg10[%c0_62, %c0_63] : memref<1x256xf32, #tpu.memory_space<vmem>>, vector<1x256xf32>
    %140 = vector.broadcast %139 : vector<1x256xf32> to vector<2x256xf32>
    %141 = arith.addf %138, %140 : vector<2x256xf32>
    %cst_64 = arith.constant 0.000000e+00 : f32
    %142 = vector.broadcast %cst_64 : f32 to vector<2x256xf32>
    %143 = arith.maximumf %141, %142 : vector<2x256xf32>
    %c0_65 = arith.constant 0 : index
    %c0_66 = arith.constant 0 : index
    %144 = vector.load %arg11[%c0_65, %c0_66] : memref<1x256xf32, #tpu.memory_space<vmem>>, vector<1x256xf32>
    %c0_67 = arith.constant 0 : index
    %c0_68 = arith.constant 0 : index
    %145 = vector.load %arg12[%c0_67, %c0_68] : memref<1x256xf32, #tpu.memory_space<vmem>>, vector<1x256xf32>
    %cst_69 = arith.constant dense<0.000000e+00> : vector<256xf32>
    %146 = vector.multi_reduction <add>, %143, %cst_69 [0] : vector<2x256xf32> to vector<256xf32>
    %147 = vector.shape_cast %146 : vector<256xf32> to vector<1x256xf32>
    %cst_70 = arith.constant 2.000000e+00 : f32
    %148 = vector.broadcast %cst_70 : f32 to vector<1x256xf32>
    %149 = arith.divf %147, %148 : vector<1x256xf32>
    %150 = arith.mulf %143, %143 : vector<2x256xf32>
    %cst_71 = arith.constant dense<0.000000e+00> : vector<256xf32>
    %151 = vector.multi_reduction <add>, %150, %cst_71 [0] : vector<2x256xf32> to vector<256xf32>
    %152 = vector.shape_cast %151 : vector<256xf32> to vector<1x256xf32>
    %cst_72 = arith.constant 2.000000e+00 : f32
    %153 = vector.broadcast %cst_72 : f32 to vector<1x256xf32>
    %154 = arith.divf %152, %153 : vector<1x256xf32>
    %155 = arith.mulf %149, %149 : vector<1x256xf32>
    %156 = arith.subf %154, %155 : vector<1x256xf32>
    %cst_73 = arith.constant 0.000000e+00 : f32
    %157 = vector.broadcast %cst_73 : f32 to vector<1x256xf32>
    %158 = arith.maximumf %156, %157 : vector<1x256xf32>
    %159 = vector.broadcast %149 : vector<1x256xf32> to vector<2x256xf32>
    %160 = arith.subf %143, %159 : vector<2x256xf32>
    %cst_74 = arith.constant 9.99999974E-6 : f32
    %161 = vector.broadcast %cst_74 : f32 to vector<1x256xf32>
    %162 = arith.addf %158, %161 : vector<1x256xf32>
    %163 = math.rsqrt %162 : vector<1x256xf32>
    %164 = vector.broadcast %163 : vector<1x256xf32> to vector<2x256xf32>
    %165 = arith.mulf %160, %164 : vector<2x256xf32>
    %166 = vector.broadcast %144 : vector<1x256xf32> to vector<2x256xf32>
    %167 = arith.mulf %165, %166 : vector<2x256xf32>
    %168 = vector.broadcast %145 : vector<1x256xf32> to vector<2x256xf32>
    %169 = arith.addf %167, %168 : vector<2x256xf32>
    %c0_75 = arith.constant 0 : index
    %c0_76 = arith.constant 0 : index
    %170 = vector.load %arg13[%c0_75, %c0_76] : memref<256x7xf32, #tpu.memory_space<vmem>>, vector<256x7xf32>
    %cst_77 = arith.constant dense<0.000000e+00> : vector<2x7xf32>
    %171 = tpu.matmul %169, %170, %cst_77 {dimension_numbers = #tpu.dot_dimension_numbers<[1], [0], [0], [1], [0, 0, 1, 1], [], []>} : vector<2x256xf32>, vector<256x7xf32>, vector<2x7xf32> -> vector<2x7xf32>
    %c0_78 = arith.constant 0 : index
    %c0_79 = arith.constant 0 : index
    %172 = vector.load %arg14[%c0_78, %c0_79] : memref<1x7xf32, #tpu.memory_space<vmem>>, vector<1x7xf32>
    %173 = vector.broadcast %172 : vector<1x7xf32> to vector<2x7xf32>
    %174 = arith.addf %171, %173 : vector<2x7xf32>
    %cst_80 = arith.constant 0.000000e+00 : f32
    %175 = vector.broadcast %cst_80 : f32 to vector<2x7xf32>
    %176 = arith.maximumf %174, %175 : vector<2x7xf32>
    %c0_81 = arith.constant 0 : index
    %c0_82 = arith.constant 0 : index
    %177 = vector.load %arg15[%c0_81, %c0_82] : memref<1x7xf32, #tpu.memory_space<vmem>>, vector<1x7xf32>
    %c0_83 = arith.constant 0 : index
    %c0_84 = arith.constant 0 : index
    %178 = vector.load %arg16[%c0_83, %c0_84] : memref<1x7xf32, #tpu.memory_space<vmem>>, vector<1x7xf32>
    %cst_85 = arith.constant dense<0.000000e+00> : vector<7xf32>
    %179 = vector.multi_reduction <add>, %176, %cst_85 [0] : vector<2x7xf32> to vector<7xf32>
    %180 = vector.shape_cast %179 : vector<7xf32> to vector<1x7xf32>
    %cst_86 = arith.constant 2.000000e+00 : f32
    %181 = vector.broadcast %cst_86 : f32 to vector<1x7xf32>
    %182 = arith.divf %180, %181 : vector<1x7xf32>
    %183 = arith.mulf %176, %176 : vector<2x7xf32>
    %cst_87 = arith.constant dense<0.000000e+00> : vector<7xf32>
    %184 = vector.multi_reduction <add>, %183, %cst_87 [0] : vector<2x7xf32> to vector<7xf32>
    %185 = vector.shape_cast %184 : vector<7xf32> to vector<1x7xf32>
    %cst_88 = arith.constant 2.000000e+00 : f32
    %186 = vector.broadcast %cst_88 : f32 to vector<1x7xf32>
    %187 = arith.divf %185, %186 : vector<1x7xf32>
    %188 = arith.mulf %182, %182 : vector<1x7xf32>
    %189 = arith.subf %187, %188 : vector<1x7xf32>
    %cst_89 = arith.constant 0.000000e+00 : f32
    %190 = vector.broadcast %cst_89 : f32 to vector<1x7xf32>
    %191 = arith.maximumf %189, %190 : vector<1x7xf32>
    %192 = vector.broadcast %182 : vector<1x7xf32> to vector<2x7xf32>
    %193 = arith.subf %176, %192 : vector<2x7xf32>
    %cst_90 = arith.constant 9.99999974E-6 : f32
    %194 = vector.broadcast %cst_90 : f32 to vector<1x7xf32>
    %195 = arith.addf %191, %194 : vector<1x7xf32>
    %196 = math.rsqrt %195 : vector<1x7xf32>
    %197 = vector.broadcast %196 : vector<1x7xf32> to vector<2x7xf32>
    %198 = arith.mulf %193, %197 : vector<2x7xf32>
    %199 = vector.broadcast %177 : vector<1x7xf32> to vector<2x7xf32>
    %200 = arith.mulf %198, %199 : vector<2x7xf32>
    %201 = vector.broadcast %178 : vector<1x7xf32> to vector<2x7xf32>
    %202 = arith.addf %200, %201 : vector<2x7xf32>
    %cst_91 = arith.constant dense<0xFF800000> : vector<2xf32>
    %203 = vector.multi_reduction <maximumf>, %202, %cst_91 [1] : vector<2x7xf32> to vector<2xf32>
    %204 = vector.shape_cast %203 : vector<2xf32> to vector<2x1xf32>
    %205 = vector.broadcast %204 : vector<2x1xf32> to vector<2x7xf32>
    %206 = arith.subf %202, %205 : vector<2x7xf32>
    %207 = math.exp %206 : vector<2x7xf32>
    %cst_92 = arith.constant dense<0.000000e+00> : vector<2xf32>
    %208 = vector.multi_reduction <add>, %207, %cst_92 [1] : vector<2x7xf32> to vector<2xf32>
    %209 = vector.shape_cast %208 : vector<2xf32> to vector<2x1xf32>
    %210 = vector.broadcast %209 : vector<2x1xf32> to vector<2x7xf32>
    %211 = arith.divf %207, %210 : vector<2x7xf32>
    %c0_93 = arith.constant 0 : index
    %c0_94 = arith.constant 0 : index
    %212 = vector.load %arg17[%c0_93, %c0_94] : memref<2x7xf32, #tpu.memory_space<vmem>>, vector<2x7xf32>
    tpu.vector_store %arg17[%c0_93, %c0_94], %211 {strides = array<i32>} : memref<2x7xf32, #tpu.memory_space<vmem>>, vector<2x7xf32>,
    return
  }
}

</mosaic_0001>

<llo_original>
// kernel: model_forward.1
$region0: #{model_forward.1}
  #allocation0 [shape = 'u32[]', space=smem, size = 0x4, offset = 0x4, fixed_abs, tag = 'smem constant byte address 0x4 - core index']
  #allocation1 [shape = 'u32[144,128]{1,0:T(1,128)}', space=vmem, size = 0x12000, scoped, tag = 'internal scratch']
  %s0 = inlined_call_operand.vmem [shape: f32[512,9], index: 0, kind: input, shape index: {}]
  %s1 = inlined_call_operand.vmem [shape: f32[9,64], index: 1, kind: input, shape index: {}]
  %s2 = inlined_call_operand.vmem [shape: f32[1,64], index: 2, kind: input, shape index: {}]
  %s3 = inlined_call_operand.vmem [shape: f32[1,64], index: 3, kind: input, shape index: {}]
  %s4 = inlined_call_operand.vmem [shape: f32[1,64], index: 4, kind: input, shape index: {}]
  %s5 = inlined_call_operand.vmem [shape: f32[4,64,128], index: 5, kind: input, shape index: {}]
  %s6 = inlined_call_operand.vmem [shape: f32[1,128], index: 6, kind: input, shape index: {}]
  %s7 = inlined_call_operand.vmem [shape: f32[1,128], index: 7, kind: input, shape index: {}]
  %s8 = inlined_call_operand.vmem [shape: f32[1,128], index: 8, kind: input, shape index: {}]
  %s9 = inlined_call_operand.vmem [shape: f32[4,128,256], index: 9, kind: input, shape index: {}]
  %s10 = inlined_call_operand.vmem [shape: f32[1,256], index: 10, kind: input, shape index: {}]
  %s11 = inlined_call_operand.vmem [shape: f32[1,256], index: 11, kind: input, shape index: {}]
  %s12 = inlined_call_operand.vmem [shape: f32[1,256], index: 12, kind: input, shape index: {}]
  %s13 = inlined_call_operand.vmem [shape: f32[256,7], index: 13, kind: input, shape index: {}]
  %s14 = inlined_call_operand.vmem [shape: f32[1,7], index: 14, kind: input, shape index: {}]
  %s15 = inlined_call_operand.vmem [shape: f32[1,7], index: 15, kind: input, shape index: {}]
  %s16 = inlined_call_operand.vmem [shape: f32[1,7], index: 16, kind: input, shape index: {}]
  %s17 = inlined_call_operand.hbm [shape: f32[2,7], index: 17, kind: output, shape index: {}]
  %s18 = sld [smem:[#allocation0]]
  $region78: #{model_forward.1} parent=0
    _
  %s20 = ssub.s32 1, %s18
  %s21 = scalar_select 0, %s20, %s18
  $region1: #{model_forward.1} parent=0
    #allocation2 [shape = 'u8[1024]{0}', space=vmem, size = 0x400, scoped, tag = 'output window, operand 0, single buffered']
    #allocation3 [shape = 's32[1]{0}', space=sflag, size = 0x4, scoped, tag = 'scoped memory for model_forward.1']
    %22 = vsyncpa [#allocation3], 0
    // Predicated region
    $region2: #{model_forward.1} parent=1 // pred_check
      _
    $region3: #{model_forward.1} parent=1 // pred_check_branch
      %24 = sbr.rel (0) target = $region5
    $region4: #{model_forward.1} parent=1 // pred_region
      _
    $region5: #{model_forward.1} parent=1 // pred_fallthru
      _
    // Predicated region
    $region6: #{model_forward.1} parent=1 // pred_check
      _
    $region7: #{model_forward.1} parent=1 // pred_check_branch
      %26 = sbr.rel (0) target = $region9
    $region8: #{model_forward.1} parent=1 // pred_region
      _
    $region9: #{model_forward.1} parent=1 // pred_fallthru
      _
    // Predicated region
    $region10: #{model_forward.1} parent=1 // pred_check
      _
    $region11: #{model_forward.1} parent=1 // pred_check_branch
      %28 = sbr.rel (0) target = $region13
    $region12: #{model_forward.1} parent=1 // pred_region
      _
    $region13: #{model_forward.1} parent=1 // pred_fallthru
      _
    // Predicated region
    $region14: #{model_forward.1} parent=1 // pred_check
      _
    $region15: #{model_forward.1} parent=1 // pred_check_branch
      %30 = sbr.rel (0) target = $region17
    $region16: #{model_forward.1} parent=1 // pred_region
      _
    $region17: #{model_forward.1} parent=1 // pred_fallthru
      _
    // Predicated region
    $region18: #{model_forward.1} parent=1 // pred_check
      _
    $region19: #{model_forward.1} parent=1 // pred_check_branch
      %32 = sbr.rel (0) target = $region21
    $region20: #{model_forward.1} parent=1 // pred_region
      _
    $region21: #{model_forward.1} parent=1 // pred_fallthru
      _
    // Predicated region
    $region22: #{model_forward.1} parent=1 // pred_check
      _
    $region23: #{model_forward.1} parent=1 // pred_check_branch
      %34 = sbr.rel (0) target = $region25
    $region24: #{model_forward.1} parent=1 // pred_region
      _
    $region25: #{model_forward.1} parent=1 // pred_fallthru
      _
    // Predicated region
    $region26: #{model_forward.1} parent=1 // pred_check
      _
    $region27: #{model_forward.1} parent=1 // pred_check_branch
      %36 = sbr.rel (0) target = $region29
    $region28: #{model_forward.1} parent=1 // pred_region
      _
    $region29: #{model_forward.1} parent=1 // pred_fallthru
      _
    // Predicated region
    $region30: #{model_forward.1} parent=1 // pred_check
      _
    $region31: #{model_forward.1} parent=1 // pred_check_branch
      %38 = sbr.rel (0) target = $region33
    $region32: #{model_forward.1} parent=1 // pred_region
      _
    $region33: #{model_forward.1} parent=1 // pred_fallthru
      _
    // Predicated region
    $region34: #{model_forward.1} parent=1 // pred_check
      _
    $region35: #{model_forward.1} parent=1 // pred_check_branch
      %40 = sbr.rel (0) target = $region37
    $region36: #{model_forward.1} parent=1 // pred_region
      _
    $region37: #{model_forward.1} parent=1 // pred_fallthru
      _
    // Predicated region
    $region38: #{model_forward.1} parent=1 // pred_check
      _
    $region39: #{model_forward.1} parent=1 // pred_check_branch
      %42 = sbr.rel (0) target = $region41
    $region40: #{model_forward.1} parent=1 // pred_region
      _
    $region41: #{model_forward.1} parent=1 // pred_fallthru
      _
    // Predicated region
    $region42: #{model_forward.1} parent=1 // pred_check
      _
    $region43: #{model_forward.1} parent=1 // pred_check_branch
      %44 = sbr.rel (0) target = $region45
    $region44: #{model_forward.1} parent=1 // pred_region
      _
    $region45: #{model_forward.1} parent=1 // pred_fallthru
      _
    // Predicated region
    $region46: #{model_forward.1} parent=1 // pred_check
      _
    $region47: #{model_forward.1} parent=1 // pred_check_branch
      %46 = sbr.rel (0) target = $region49
    $region48: #{model_forward.1} parent=1 // pred_region
      _
    $region49: #{model_forward.1} parent=1 // pred_fallthru
      _
    // Predicated region
    $region50: #{model_forward.1} parent=1 // pred_check
      _
    $region51: #{model_forward.1} parent=1 // pred_check_branch
      %48 = sbr.rel (0) target = $region53
    $region52: #{model_forward.1} parent=1 // pred_region
      _
    $region53: #{model_forward.1} parent=1 // pred_fallthru
      _
    // Predicated region
    $region54: #{model_forward.1} parent=1 // pred_check
      _
    $region55: #{model_forward.1} parent=1 // pred_check_branch
      %50 = sbr.rel (0) target = $region57
    $region56: #{model_forward.1} parent=1 // pred_region
      _
    $region57: #{model_forward.1} parent=1 // pred_fallthru
      _
    // Predicated region
    $region58: #{model_forward.1} parent=1 // pred_check
      _
    $region59: #{model_forward.1} parent=1 // pred_check_branch
      %52 = sbr.rel (0) target = $region61
    $region60: #{model_forward.1} parent=1 // pred_region
      _
    $region61: #{model_forward.1} parent=1 // pred_fallthru
      _
    // Predicated region
    $region62: #{model_forward.1} parent=1 // pred_check
      _
    $region63: #{model_forward.1} parent=1 // pred_check_branch
      %54 = sbr.rel (0) target = $region65
    $region64: #{model_forward.1} parent=1 // pred_region
      _
    $region65: #{model_forward.1} parent=1 // pred_fallthru
      _
    // Predicated region
    $region66: #{model_forward.1} parent=1 // pred_check
      _
    $region67: #{model_forward.1} parent=1 // pred_check_branch
      %56 = sbr.rel (0) target = $region69
    $region68: #{model_forward.1} parent=1 // pred_region
      _
    $region69: #{model_forward.1} parent=1 // pred_fallthru
      _
    %v57 = vld [vmem:[%s0] sm:$0xff]
    %v58 = vld [vmem:[%s0 + $0x8] sm:$0xff]
    %v59 = vld [vmem:[%s0 + $0x10] sm:$0xff]
    %v60 = vld [vmem:[%s0 + $0x18] sm:$0xff]
    %v61 = vld [vmem:[%s0 + $0x20] sm:$0xff]
    %v62 = vld [vmem:[%s0 + $0x28] sm:$0xff]
    %v63 = vld [vmem:[%s0 + $0x30] sm:$0xff]
    %v64 = vld [vmem:[%s0 + $0x38] sm:$0xff]
    %v65 = vld [vmem:[%s0 + $0x40] sm:$0xff]
    %v66 = vld [vmem:[%s0 + $0x48] sm:$0xff]
    %v67 = vld [vmem:[%s0 + $0x50] sm:$0xff]
    %v68 = vld [vmem:[%s0 + $0x58] sm:$0xff]
    %v69 = vld [vmem:[%s0 + $0x60] sm:$0xff]
    %v70 = vld [vmem:[%s0 + $0x68] sm:$0xff]
    %v71 = vld [vmem:[%s0 + $0x70] sm:$0xff]
    %v72 = vld [vmem:[%s0 + $0x78] sm:$0xff]
    %v73 = vld [vmem:[%s0 + $0x80] sm:$0xff]
    %v74 = vld [vmem:[%s0 + $0x88] sm:$0xff]
    %v75 = vld [vmem:[%s0 + $0x90] sm:$0xff]
    %v76 = vld [vmem:[%s0 + $0x98] sm:$0xff]
    %v77 = vld [vmem:[%s0 + $0xa0] sm:$0xff]
    %v78 = vld [vmem:[%s0 + $0xa8] sm:$0xff]
    %v79 = vld [vmem:[%s0 + $0xb0] sm:$0xff]
    %v80 = vld [vmem:[%s0 + $0xb8] sm:$0xff]
    %v81 = vld [vmem:[%s0 + $0xc0] sm:$0xff]
    %v82 = vld [vmem:[%s0 + $0xc8] sm:$0xff]
    %v83 = vld [vmem:[%s0 + $0xd0] sm:$0xff]
    %v84 = vld [vmem:[%s0 + $0xd8] sm:$0xff]
    %v85 = vld [vmem:[%s0 + $0xe0] sm:$0xff]
    %v86 = vld [vmem:[%s0 + $0xe8] sm:$0xff]
    %v87 = vld [vmem:[%s0 + $0xf0] sm:$0xff]
    %v88 = vld [vmem:[%s0 + $0xf8] sm:$0xff]
    %v89 = vld [vmem:[%s0 + $0x100] sm:$0xff]
    %v90 = vld [vmem:[%s0 + $0x108] sm:$0xff]
    %v91 = vld [vmem:[%s0 + $0x110] sm:$0xff]
    %v92 = vld [vmem:[%s0 + $0x118] sm:$0xff]
    %v93 = vld [vmem:[%s0 + $0x120] sm:$0xff]
    %v94 = vld [vmem:[%s0 + $0x128] sm:$0xff]
    %v95 = vld [vmem:[%s0 + $0x130] sm:$0xff]
    %v96 = vld [vmem:[%s0 + $0x138] sm:$0xff]
    %v97 = vld [vmem:[%s0 + $0x140] sm:$0xff]
    %v98 = vld [vmem:[%s0 + $0x148] sm:$0xff]
    %v99 = vld [vmem:[%s0 + $0x150] sm:$0xff]
    %v100 = vld [vmem:[%s0 + $0x158] sm:$0xff]
    %v101 = vld [vmem:[%s0 + $0x160] sm:$0xff]
    %v102 = vld [vmem:[%s0 + $0x168] sm:$0xff]
    %v103 = vld [vmem:[%s0 + $0x170] sm:$0xff]
    %v104 = vld [vmem:[%s0 + $0x178] sm:$0xff]
    %v105 = vld [vmem:[%s0 + $0x180] sm:$0xff]
    %v106 = vld [vmem:[%s0 + $0x188] sm:$0xff]
    %v107 = vld [vmem:[%s0 + $0x190] sm:$0xff]
    %v108 = vld [vmem:[%s0 + $0x198] sm:$0xff]
    %v109 = vld [vmem:[%s0 + $0x1a0] sm:$0xff]
    %v110 = vld [vmem:[%s0 + $0x1a8] sm:$0xff]
    %v111 = vld [vmem:[%s0 + $0x1b0] sm:$0xff]
    %v112 = vld [vmem:[%s0 + $0x1b8] sm:$0xff]
    %v113 = vld [vmem:[%s0 + $0x1c0] sm:$0xff]
    %v114 = vld [vmem:[%s0 + $0x1c8] sm:$0xff]
    %v115 = vld [vmem:[%s0 + $0x1d0] sm:$0xff]
    %v116 = vld [vmem:[%s0 + $0x1d8] sm:$0xff]
    %v117 = vld [vmem:[%s0 + $0x1e0] sm:$0xff]
    %v118 = vld [vmem:[%s0 + $0x1e8] sm:$0xff]
    %v119 = vld [vmem:[%s0 + $0x1f0] sm:$0xff]
    %v120 = vld [vmem:[%s0 + $0x1f8] sm:$0xff]
    %v121 = vld [vmem:[%s1] sm:$0xff]
    %v122 = vld [vmem:[%s1 + $0x8] sm:$0x1]
    %v123 = vld [vmem:[%s2] sm:$0x1]
    %v125 = vlaneseq
    %v126 = vshrl.u32 %v125, 7
    %v127 = vsub.s32 0, %v126
    %v128 = vrot.slane %v123, %v127
    %vm130 = vcmask 72704
    %v132 = vsel %vm130, %v57, 0
    %v135 = vsel %vm130, %v58, 0
    %v138 = vsel %vm130, %v59, 0
    %v141 = vsel %vm130, %v60, 0
    %v144 = vsel %vm130, %v61, 0
    %v147 = vsel %vm130, %v62, 0
    %v150 = vsel %vm130, %v63, 0
    %v153 = vsel %vm130, %v64, 0
    %v156 = vsel %vm130, %v65, 0
    %v159 = vsel %vm130, %v66, 0
    %v162 = vsel %vm130, %v67, 0
    %v165 = vsel %vm130, %v68, 0
    %v168 = vsel %vm130, %v69, 0
    %v171 = vsel %vm130, %v70, 0
    %v174 = vsel %vm130, %v71, 0
    %v177 = vsel %vm130, %v72, 0
    %v180 = vsel %vm130, %v73, 0
    %v183 = vsel %vm130, %v74, 0
    %v186 = vsel %vm130, %v75, 0
    %v189 = vsel %vm130, %v76, 0
    %v192 = vsel %vm130, %v77, 0
    %v195 = vsel %vm130, %v78, 0
    %v198 = vsel %vm130, %v79, 0
    %v201 = vsel %vm130, %v80, 0
    %v204 = vsel %vm130, %v81, 0
    %v207 = vsel %vm130, %v82, 0
    %v210 = vsel %vm130, %v83, 0
    %v213 = vsel %vm130, %v84, 0
    %v216 = vsel %vm130, %v85, 0
    %v219 = vsel %vm130, %v86, 0
    %v222 = vsel %vm130, %v87, 0
    %v225 = vsel %vm130, %v88, 0
    %v228 = vsel %vm130, %v89, 0
    %v231 = vsel %vm130, %v90, 0
    %v234 = vsel %vm130, %v91, 0
    %v237 = vsel %vm130, %v92, 0
    %v240 = vsel %vm130, %v93, 0
    %v243 = vsel %vm130, %v94, 0
    %v246 = vsel %vm130, %v95, 0
    %v249 = vsel %vm130, %v96, 0
    %v252 = vsel %vm130, %v97, 0
    %v255 = vsel %vm130, %v98, 0
    %v258 = vsel %vm130, %v99, 0
    %v261 = vsel %vm130, %v100, 0
    %v264 = vsel %vm130, %v101, 0
    %v267 = vsel %vm130, %v102, 0
    %v270 = vsel %vm130, %v103, 0
    %v273 = vsel %vm130, %v104, 0
    %v276 = vsel %vm130, %v105, 0
    %v279 = vsel %vm130, %v106, 0
    %v282 = vsel %vm130, %v107, 0
    %v285 = vsel %vm130, %v108, 0
    %v288 = vsel %vm130, %v109, 0
    %v291 = vsel %vm130, %v110, 0
    %v294 = vsel %vm130, %v111, 0
    %v297 = vsel %vm130, %v112, 0
    %v300 = vsel %vm130, %v113, 0
    %v303 = vsel %vm130, %v114, 0
    %v306 = vsel %vm130, %v115, 0
    %v309 = vsel %vm130, %v116, 0
    %v312 = vsel %vm130, %v117, 0
    %v315 = vsel %vm130, %v118, 0
    %v318 = vsel %vm130, %v119, 0
    %v321 = vsel %vm130, %v120, 0
    %vm323 = vcmask 1040384
    %v325 = vsel %vm323, %v122, 0
    %327 = vmatprep.subr.mxu0 0.0
    %328 = vmatpush1.msra.mxu0 %v121
    %329 = vmatprep.subr.mxu0 0.0
    %330 = vmatpush1.msra.mxu0 %v325
    %331 = vmatprep.subr.mxu0 0.0
    %332 = vmatpush1.msra.mxu0 0.0
    %333 = vmatprep.subr.mxu0 0.0
    %334 = vmatpush1.msra.mxu0 0.0
    %335 = vmatprep.subr.mxu0 0.0
    %336 = vmatpush1.msra.mxu0 0.0
    %337 = vmatprep.subr.mxu0 0.0
    %338 = vmatpush1.msra.mxu0 0.0
    %339 = vmatprep.subr.mxu0 0.0
    %340 = vmatpush1.msra.mxu0 0.0
    %341 = vmatprep.subr.mxu0 0.0
    %342 = vmatpush1.msra.mxu0 0.0
    %343 = vmatprep.subr.mxu0 0.0
    %344 = vmatpush1.msra.mxu0 0.0
    %345 = vmatprep.subr.mxu0 0.0
    %346 = vmatpush1.msra.mxu0 0.0
    %347 = vmatprep.subr.mxu0 0.0
    %348 = vmatpush1.msra.mxu0 0.0
    %349 = vmatprep.subr.mxu0 0.0
    %350 = vmatpush1.msra.mxu0 0.0
    %351 = vmatprep.subr.mxu0 0.0
    %352 = vmatpush1.msra.mxu0 0.0
    %353 = vmatprep.subr.mxu0 0.0
    %354 = vmatpush1.msra.mxu0 0.0
    %355 = vmatprep.subr.mxu0 0.0
    %356 = vmatpush1.msra.mxu0 0.0
    %357 = vmatprep.subr.mxu0 0.0
    %358 = vmatpush1.msra.mxu0 0.0
    %359 = vmatprep.subr.mxu0 0.0
    %360 = vmatpush1.msra.mxu0 0.0
    %361 = vmatprep.subr.mxu0 0.0
    %362 = vmatpush1.msra.mxu0 0.0
    %363 = vmatprep.subr.mxu0 0.0
    %364 = vmatpush1.msra.mxu0 0.0
    %365 = vmatprep.subr.mxu0 0.0
    %366 = vmatpush1.msra.mxu0 0.0
    %367 = vmatprep.subr.mxu0 0.0
    %368 = vmatpush1.msra.mxu0 0.0
    %369 = vmatprep.subr.mxu0 0.0
    %370 = vmatpush1.msra.mxu0 0.0
    %371 = vmatprep.subr.mxu0 0.0
    %372 = vmatpush1.msra.mxu0 0.0
    %373 = vmatprep.subr.mxu0 0.0
    %374 = vmatpush1.msra.mxu0 0.0
    %375 = vmatprep.subr.mxu0 0.0
    %376 = vmatpush1.msra.mxu0 0.0
    %377 = vmatprep.subr.mxu0 0.0
    %378 = vmatpush1.msra.mxu0 0.0
    %379 = vmatprep.subr.mxu0 0.0
    %380 = vmatpush1.msra.mxu0 0.0
    %381 = vmatprep.subr.mxu0 0.0
    %382 = vmatpush1.msra.mxu0 0.0
    %383 = vmatprep.subr.mxu0 0.0
    %384 = vmatpush1.msra.mxu0 0.0
    %385 = vmatprep.subr.mxu0 0.0
    %386 = vmatpush1.msra.mxu0 0.0
    %387 = vmatprep.subr.mxu0 0.0
    %388 = vmatpush1.msra.mxu0 0.0
    %389 = vmatprep.subr.mxu0 0.0
    %390 = vmatpush1.msra.mxu0 0.0
    %391 = vmatprep.mubr.f32.mxu0 0.0
    %392 = vmatmul.mubr.f32.gmra.mrb[0].mxu0 %v132
    %v393 = vpop.f32.mrb[0].mxu0
    %v394 = vadd.f32 %v128, %v393
    %v395 = vpop.f32.mrb[0].mxu0
    %396 = vmatprep.mubr.f32.mxu0 0.0
    %397 = vmatmul.mubr.f32.gmra.mrb[0].mxu0 %v135
    %v398 = vpop.f32.mrb[0].mxu0
    %v399 = vadd.f32 %v128, %v398
    %v400 = vpop.f32.mrb[0].mxu0
    %401 = vmatprep.mubr.f32.mxu0 0.0
    %402 = vmatmul.mubr.f32.gmra.mrb[0].mxu0 %v138
    %v403 = vpop.f32.mrb[0].mxu0
    %v404 = vadd.f32 %v128, %v403
    %v405 = vpop.f32.mrb[0].mxu0
    %406 = vmatprep.mubr.f32.mxu0 0.0
    %407 = vmatmul.mubr.f32.gmra.mrb[0].mxu0 %v141
    %v408 = vpop.f32.mrb[0].mxu0
    %v409 = vadd.f32 %v128, %v408
    %v410 = vpop.f32.mrb[0].mxu0
    %411 = vmatprep.mubr.f32.mxu0 0.0
    %412 = vmatmul.mubr.f32.gmra.mrb[0].mxu0 %v144
    %v413 = vpop.f32.mrb[0].mxu0
    %v414 = vadd.f32 %v128, %v413
    %v415 = vpop.f32.mrb[0].mxu0
    %416 = vmatprep.mubr.f32.mxu0 0.0
    %417 = vmatmul.mubr.f32.gmra.mrb[0].mxu0 %v147
    %v418 = vpop.f32.mrb[0].mxu0
    %v419 = vadd.f32 %v128, %v418
    %v420 = vpop.f32.mrb[0].mxu0
    %421 = vmatprep.mubr.f32.mxu0 0.0
    %422 = vmatmul.mubr.f32.gmra.mrb[0].mxu0 %v150
    %v423 = vpop.f32.mrb[0].mxu0
    %v424 = vadd.f32 %v128, %v423
    %v425 = vpop.f32.mrb[0].mxu0
    %426 = vmatprep.mubr.f32.mxu0 0.0
    %427 = vmatmul.mubr.f32.gmra.mrb[0].mxu0 %v153
    %v428 = vpop.f32.mrb[0].mxu0
    %v429 = vadd.f32 %v128, %v428
    %v430 = vpop.f32.mrb[0].mxu0
    %431 = vmatprep.mubr.f32.mxu0 0.0
    %432 = vmatmul.mubr.f32.gmra.mrb[0].mxu0 %v156
    %v433 = vpop.f32.mrb[0].mxu0
    %v434 = vadd.f32 %v128, %v433
    %v435 = vpop.f32.mrb[0].mxu0
    %436 = vmatprep.mubr.f32.mxu0 0.0
    %437 = vmatmul.mubr.f32.gmra.mrb[0].mxu0 %v159
    %v438 = vpop.f32.mrb[0].mxu0
    %v439 = vadd.f32 %v128, %v438
    %v440 = vpop.f32.mrb[0].mxu0
    %441 = vmatprep.mubr.f32.mxu0 0.0
    %442 = vmatmul.mubr.f32.gmra.mrb[0].mxu0 %v162
    %v443 = vpop.f32.mrb[0].mxu0
    %v444 = vadd.f32 %v128, %v443
    %v445 = vpop.f32.mrb[0].mxu0
    %446 = vmatprep.mubr.f32.mxu0 0.0
    %447 = vmatmul.mubr.f32.gmra.mrb[0].mxu0 %v165
    %v448 = vpop.f32.mrb[0].mxu0
    %v449 = vadd.f32 %v128, %v448
    %v450 = vpop.f32.mrb[0].mxu0
    %451 = vmatprep.mubr.f32.mxu0 0.0
    %452 = vmatmul.mubr.f32.gmra.mrb[0].mxu0 %v168
    %v453 = vpop.f32.mrb[0].mxu0
    %v454 = vadd.f32 %v128, %v453
    %v455 = vpop.f32.mrb[0].mxu0
    %456 = vmatprep.mubr.f32.mxu0 0.0
    %457 = vmatmul.mubr.f32.gmra.mrb[0].mxu0 %v171
    %v458 = vpop.f32.mrb[0].mxu0
    %v459 = vadd.f32 %v128, %v458
    %v460 = vpop.f32.mrb[0].mxu0
    %461 = vmatprep.mubr.f32.mxu0 0.0
    %462 = vmatmul.mubr.f32.gmra.mrb[0].mxu0 %v174
    %v463 = vpop.f32.mrb[0].mxu0
    %v464 = vadd.f32 %v128, %v463
    %v465 = vpop.f32.mrb[0].mxu0
    %466 = vmatprep.mubr.f32.mxu0 0.0
    %467 = vmatmul.mubr.f32.gmra.mrb[0].mxu0 %v177
    %v468 = vpop.f32.mrb[0].mxu0
    %v469 = vadd.f32 %v128, %v468
    %v470 = vpop.f32.mrb[0].mxu0
    %471 = vmatprep.mubr.f32.mxu0 0.0
    %472 = vmatmul.mubr.f32.gmra.mrb[0].mxu0 %v180
    %v473 = vpop.f32.mrb[0].mxu0
    %v474 = vadd.f32 %v128, %v473
    %v475 = vpop.f32.mrb[0].mxu0
    %476 = vmatprep.mubr.f32.mxu0 0.0
    %477 = vmatmul.mubr.f32.gmra.mrb[0].mxu0 %v183
    %v478 = vpop.f32.mrb[0].mxu0
    %v479 = vadd.f32 %v128, %v478
    %v480 = vpop.f32.mrb[0].mxu0
    %481 = vmatprep.mubr.f32.mxu0 0.0
    %482 = vmatmul.mubr.f32.gmra.mrb[0].mxu0 %v186
    %v483 = vpop.f32.mrb[0].mxu0
    %v484 = vadd.f32 %v128, %v483
    %v485 = vpop.f32.mrb[0].mxu0
    %486 = vmatprep.mubr.f32.mxu0 0.0
    %487 = vmatmul.mubr.f32.gmra.mrb[0].mxu0 %v189
    %v488 = vpop.f32.mrb[0].mxu0
    %v489 = vadd.f32 %v128, %v488
    %v490 = vpop.f32.mrb[0].mxu0
    %491 = vmatprep.mubr.f32.mxu0 0.0
    %492 = vmatmul.mubr.f32.gmra.mrb[0].mxu0 %v192
    %v493 = vpop.f32.mrb[0].mxu0
    %v494 = vadd.f32 %v128, %v493
    %v495 = vpop.f32.mrb[0].mxu0
    %496 = vmatprep.mubr.f32.mxu0 0.0
    %497 = vmatmul.mubr.f32.gmra.mrb[0].mxu0 %v195
    %v498 = vpop.f32.mrb[0].mxu0
    %v499 = vadd.f32 %v128, %v498
    %v500 = vpop.f32.mrb[0].mxu0
    %501 = vmatprep.mubr.f32.mxu0 0.0
    %502 = vmatmul.mubr.f32.gmra.mrb[0].mxu0 %v198
    %v503 = vpop.f32.mrb[0].mxu0
    %v504 = vadd.f32 %v128, %v503
    %v505 = vpop.f32.mrb[0].mxu0
    %506 = vmatprep.mubr.f32.mxu0 0.0
    %507 = vmatmul.mubr.f32.gmra.mrb[0].mxu0 %v201
    %v508 = vpop.f32.mrb[0].mxu0
    %v509 = vadd.f32 %v128, %v508
    %v510 = vpop.f32.mrb[0].mxu0
    %511 = vmatprep.mubr.f32.mxu0 0.0
    %512 = vmatmul.mubr.f32.gmra.mrb[0].mxu0 %v204
    %v513 = vpop.f32.mrb[0].mxu0
    %v514 = vadd.f32 %v128, %v513
    %v515 = vpop.f32.mrb[0].mxu0
    %516 = vmatprep.mubr.f32.mxu0 0.0
    %517 = vmatmul.mubr.f32.gmra.mrb[0].mxu0 %v207
    %v518 = vpop.f32.mrb[0].mxu0
    %v519 = vadd.f32 %v128, %v518
    %v520 = vpop.f32.mrb[0].mxu0
    %521 = vmatprep.mubr.f32.mxu0 0.0
    %522 = vmatmul.mubr.f32.gmra.mrb[0].mxu0 %v210
    %v523 = vpop.f32.mrb[0].mxu0
    %v524 = vadd.f32 %v128, %v523
    %v525 = vpop.f32.mrb[0].mxu0
    %526 = vmatprep.mubr.f32.mxu0 0.0
    %527 = vmatmul.mubr.f32.gmra.mrb[0].mxu0 %v213
    %v528 = vpop.f32.mrb[0].mxu0
    %v529 = vadd.f32 %v128, %v528
    %v530 = vpop.f32.mrb[0].mxu0
    %531 = vmatprep.mubr.f32.mxu0 0.0
    %532 = vmatmul.mubr.f32.gmra.mrb[0].mxu0 %v216
    %v533 = vpop.f32.mrb[0].mxu0
    %v534 = vadd.f32 %v128, %v533
    %v535 = vpop.f32.mrb[0].mxu0
    %536 = vmatprep.mubr.f32.mxu0 0.0
    %537 = vmatmul.mubr.f32.gmra.mrb[0].mxu0 %v219
    %v538 = vpop.f32.mrb[0].mxu0
    %v539 = vadd.f32 %v128, %v538
    %v540 = vpop.f32.mrb[0].mxu0
    %541 = vmatprep.mubr.f32.mxu0 0.0
    %542 = vmatmul.mubr.f32.gmra.mrb[0].mxu0 %v222
    %v543 = vpop.f32.mrb[0].mxu0
    %v544 = vadd.f32 %v128, %v543
    %v545 = vpop.f32.mrb[0].mxu0
    %546 = vmatprep.mubr.f32.mxu0 0.0
    %547 = vmatmul.mubr.f32.gmra.mrb[0].mxu0 %v225
    %v548 = vpop.f32.mrb[0].mxu0
    %v549 = vadd.f32 %v128, %v548
    %v550 = vpop.f32.mrb[0].mxu0
    %551 = vmatprep.mubr.f32.mxu0 0.0
    %552 = vmatmul.mubr.f32.gmra.mrb[0].mxu0 %v228
    %v553 = vpop.f32.mrb[0].mxu0
    %v554 = vadd.f32 %v128, %v553
    %v555 = vpop.f32.mrb[0].mxu0
    %556 = vmatprep.mubr.f32.mxu0 0.0
    %557 = vmatmul.mubr.f32.gmra.mrb[0].mxu0 %v231
    %v558 = vpop.f32.mrb[0].mxu0
    %v559 = vadd.f32 %v128, %v558
    %v560 = vpop.f32.mrb[0].mxu0
    %561 = vmatprep.mubr.f32.mxu0 0.0
    %562 = vmatmul.mubr.f32.gmra.mrb[0].mxu0 %v234
    %v563 = vpop.f32.mrb[0].mxu0
    %v564 = vadd.f32 %v128, %v563
    %v565 = vpop.f32.mrb[0].mxu0
    %566 = vmatprep.mubr.f32.mxu0 0.0
    %567 = vmatmul.mubr.f32.gmra.mrb[0].mxu0 %v237
    %v568 = vpop.f32.mrb[0].mxu0
    %v569 = vadd.f32 %v128, %v568
    %v570 = vpop.f32.mrb[0].mxu0
    %571 = vmatprep.mubr.f32.mxu0 0.0
    %572 = vmatmul.mubr.f32.gmra.mrb[0].mxu0 %v240
    %v573 = vpop.f32.mrb[0].mxu0
    %v574 = vadd.f32 %v128, %v573
    %v575 = vpop.f32.mrb[0].mxu0
    %576 = vmatprep.mubr.f32.mxu0 0.0
    %577 = vmatmul.mubr.f32.gmra.mrb[0].mxu0 %v243
    %v578 = vpop.f32.mrb[0].mxu0
    %v579 = vadd.f32 %v128, %v578
    %v580 = vpop.f32.mrb[0].mxu0
    %581 = vmatprep.mubr.f32.mxu0 0.0
    %582 = vmatmul.mubr.f32.gmra.mrb[0].mxu0 %v246
    %v583 = vpop.f32.mrb[0].mxu0
    %v584 = vadd.f32 %v128, %v583
    %v585 = vpop.f32.mrb[0].mxu0
    %586 = vmatprep.mubr.f32.mxu0 0.0
    %587 = vmatmul.mubr.f32.gmra.mrb[0].mxu0 %v249
    %v588 = vpop.f32.mrb[0].mxu0
    %v589 = vadd.f32 %v128, %v588
    %v590 = vpop.f32.mrb[0].mxu0
    %591 = vmatprep.mubr.f32.mxu0 0.0
    %592 = vmatmul.mubr.f32.gmra.mrb[0].mxu0 %v252
    %v593 = vpop.f32.mrb[0].mxu0
    %v594 = vadd.f32 %v128, %v593
    %v595 = vpop.f32.mrb[0].mxu0
    %596 = vmatprep.mubr.f32.mxu0 0.0
    %597 = vmatmul.mubr.f32.gmra.mrb[0].mxu0 %v255
    %v598 = vpop.f32.mrb[0].mxu0
    %v599 = vadd.f32 %v128, %v598
    %v600 = vpop.f32.mrb[0].mxu0
    %601 = vmatprep.mubr.f32.mxu0 0.0
    %602 = vmatmul.mubr.f32.gmra.mrb[0].mxu0 %v258
    %v603 = vpop.f32.mrb[0].mxu0
    %v604 = vadd.f32 %v128, %v603
    %v605 = vpop.f32.mrb[0].mxu0
    %606 = vmatprep.mubr.f32.mxu0 0.0
    %607 = vmatmul.mubr.f32.gmra.mrb[0].mxu0 %v261
    %v608 = vpop.f32.mrb[0].mxu0
    %v609 = vadd.f32 %v128, %v608
    %v610 = vpop.f32.mrb[0].mxu0
    %611 = vmatprep.mubr.f32.mxu0 0.0
    %612 = vmatmul.mubr.f32.gmra.mrb[0].mxu0 %v264
    %v613 = vpop.f32.mrb[0].mxu0
    %v614 = vadd.f32 %v128, %v613
    %v615 = vpop.f32.mrb[0].mxu0
    %616 = vmatprep.mubr.f32.mxu0 0.0
    %617 = vmatmul.mubr.f32.gmra.mrb[0].mxu0 %v267
    %v618 = vpop.f32.mrb[0].mxu0
    %v619 = vadd.f32 %v128, %v618
    %v620 = vpop.f32.mrb[0].mxu0
    %621 = vmatprep.mubr.f32.mxu0 0.0
    %622 = vmatmul.mubr.f32.gmra.mrb[0].mxu0 %v270
    %v623 = vpop.f32.mrb[0].mxu0
    %v624 = vadd.f32 %v128, %v623
    %v625 = vpop.f32.mrb[0].mxu0
    %626 = vmatprep.mubr.f32.mxu0 0.0
    %627 = vmatmul.mubr.f32.gmra.mrb[0].mxu0 %v273
    %v628 = vpop.f32.mrb[0].mxu0
    %v629 = vadd.f32 %v128, %v628
    %v630 = vpop.f32.mrb[0].mxu0
    %631 = vmatprep.mubr.f32.mxu0 0.0
    %632 = vmatmul.mubr.f32.gmra.mrb[0].mxu0 %v276
    %v633 = vpop.f32.mrb[0].mxu0
    %v634 = vadd.f32 %v128, %v633
    %v635 = vpop.f32.mrb[0].mxu0
    %636 = vmatprep.mubr.f32.mxu0 0.0
    %637 = vmatmul.mubr.f32.gmra.mrb[0].mxu0 %v279
    %v638 = vpop.f32.mrb[0].mxu0
    %v639 = vadd.f32 %v128, %v638
    %v640 = vpop.f32.mrb[0].mxu0
    %641 = vmatprep.mubr.f32.mxu0 0.0
    %642 = vmatmul.mubr.f32.gmra.mrb[0].mxu0 %v282
    %v643 = vpop.f32.mrb[0].mxu0
    %v644 = vadd.f32 %v128, %v643
    %v645 = vpop.f32.mrb[0].mxu0
    %646 = vmatprep.mubr.f32.mxu0 0.0
    %647 = vmatmul.mubr.f32.gmra.mrb[0].mxu0 %v285
    %v648 = vpop.f32.mrb[0].mxu0
    %v649 = vadd.f32 %v128, %v648
    %v650 = vpop.f32.mrb[0].mxu0
    %651 = vmatprep.mubr.f32.mxu0 0.0
    %652 = vmatmul.mubr.f32.gmra.mrb[0].mxu0 %v288
    %v653 = vpop.f32.mrb[0].mxu0
    %v654 = vadd.f32 %v128, %v653
    %v655 = vpop.f32.mrb[0].mxu0
    %656 = vmatprep.mubr.f32.mxu0 0.0
    %657 = vmatmul.mubr.f32.gmra.mrb[0].mxu0 %v291
    %v658 = vpop.f32.mrb[0].mxu0
    %v659 = vadd.f32 %v128, %v658
    %v660 = vpop.f32.mrb[0].mxu0
    %661 = vmatprep.mubr.f32.mxu0 0.0
    %662 = vmatmul.mubr.f32.gmra.mrb[0].mxu0 %v294
    %v663 = vpop.f32.mrb[0].mxu0
    %v664 = vadd.f32 %v128, %v663
    %v665 = vpop.f32.mrb[0].mxu0
    %666 = vmatprep.mubr.f32.mxu0 0.0
    %667 = vmatmul.mubr.f32.gmra.mrb[0].mxu0 %v297
    %v668 = vpop.f32.mrb[0].mxu0
    %v669 = vadd.f32 %v128, %v668
    %v670 = vpop.f32.mrb[0].mxu0
    %671 = vmatprep.mubr.f32.mxu0 0.0
    %672 = vmatmul.mubr.f32.gmra.mrb[0].mxu0 %v300
    %v673 = vpop.f32.mrb[0].mxu0
    %v674 = vadd.f32 %v128, %v673
    %v675 = vpop.f32.mrb[0].mxu0
    %676 = vmatprep.mubr.f32.mxu0 0.0
    %677 = vmatmul.mubr.f32.gmra.mrb[0].mxu0 %v303
    %v678 = vpop.f32.mrb[0].mxu0
    %v679 = vadd.f32 %v128, %v678
    %v680 = vpop.f32.mrb[0].mxu0
    %681 = vmatprep.mubr.f32.mxu0 0.0
    %682 = vmatmul.mubr.f32.gmra.mrb[0].mxu0 %v306
    %v683 = vpop.f32.mrb[0].mxu0
    %v684 = vadd.f32 %v128, %v683
    %v685 = vpop.f32.mrb[0].mxu0
    %686 = vmatprep.mubr.f32.mxu0 0.0
    %687 = vmatmul.mubr.f32.gmra.mrb[0].mxu0 %v309
    %v688 = vpop.f32.mrb[0].mxu0
    %v689 = vadd.f32 %v128, %v688
    %v690 = vpop.f32.mrb[0].mxu0
    %691 = vmatprep.mubr.f32.mxu0 0.0
    %692 = vmatmul.mubr.f32.gmra.mrb[0].mxu0 %v312
    %v693 = vpop.f32.mrb[0].mxu0
    %v694 = vadd.f32 %v128, %v693
    %v695 = vpop.f32.mrb[0].mxu0
    %696 = vmatprep.mubr.f32.mxu0 0.0
    %697 = vmatmul.mubr.f32.gmra.mrb[0].mxu0 %v315
    %v698 = vpop.f32.mrb[0].mxu0
    %v699 = vadd.f32 %v128, %v698
    %v700 = vpop.f32.mrb[0].mxu0
    %701 = vmatprep.mubr.f32.mxu0 0.0
    %702 = vmatmul.mubr.f32.gmra.mrb[0].mxu0 %v318
    %v703 = vpop.f32.mrb[0].mxu0
    %v704 = vadd.f32 %v128, %v703
    %v705 = vpop.f32.mrb[0].mxu0
    %706 = vmatprep.mubr.f32.mxu0 0.0
    %707 = vmatmul.mubr.f32.gmra.mrb[0].mxu0 %v321
    %v708 = vpop.f32.mrb[0].mxu0
    %v709 = vadd.f32 %v128, %v708
    %v710 = vpop.f32.mrb[0].mxu0
    %711 = vdwg.mxu0
    %v712 = vmax.f32 %v394, 0.0
    %v713 = vmax.f32 %v399, 0.0
    %v714 = vmax.f32 %v404, 0.0
    %v715 = vmax.f32 %v409, 0.0
    %v716 = vmax.f32 %v414, 0.0
    %v717 = vmax.f32 %v419, 0.0
    %v718 = vmax.f32 %v424, 0.0
    %v719 = vmax.f32 %v429, 0.0
    %v720 = vmax.f32 %v434, 0.0
    %v721 = vmax.f32 %v439, 0.0
    %v722 = vmax.f32 %v444, 0.0
    %v723 = vmax.f32 %v449, 0.0
    %v724 = vmax.f32 %v454, 0.0
    %v725 = vmax.f32 %v459, 0.0
    %v726 = vmax.f32 %v464, 0.0
    %v727 = vmax.f32 %v469, 0.0
    %v728 = vmax.f32 %v474, 0.0
    %v729 = vmax.f32 %v479, 0.0
    %v730 = vmax.f32 %v484, 0.0
    %v731 = vmax.f32 %v489, 0.0
    %v732 = vmax.f32 %v494, 0.0
    %v733 = vmax.f32 %v499, 0.0
    %v734 = vmax.f32 %v504, 0.0
    %v735 = vmax.f32 %v509, 0.0
    %v736 = vmax.f32 %v514, 0.0
    %v737 = vmax.f32 %v519, 0.0
    %v738 = vmax.f32 %v524, 0.0
    %v739 = vmax.f32 %v529, 0.0
    %v740 = vmax.f32 %v534, 0.0
    %v741 = vmax.f32 %v539, 0.0
    %v742 = vmax.f32 %v544, 0.0
    %v743 = vmax.f32 %v549, 0.0
    %v744 = vmax.f32 %v554, 0.0
    %v745 = vmax.f32 %v559, 0.0
    %v746 = vmax.f32 %v564, 0.0
    %v747 = vmax.f32 %v569, 0.0
    %v748 = vmax.f32 %v574, 0.0
    %v749 = vmax.f32 %v579, 0.0
    %v750 = vmax.f32 %v584, 0.0
    %v751 = vmax.f32 %v589, 0.0
    %v752 = vmax.f32 %v594, 0.0
    %v753 = vmax.f32 %v599, 0.0
    %v754 = vmax.f32 %v604, 0.0
    %v755 = vmax.f32 %v609, 0.0
    %v756 = vmax.f32 %v614, 0.0
    %v757 = vmax.f32 %v619, 0.0
    %v758 = vmax.f32 %v624, 0.0
    %v759 = vmax.f32 %v629, 0.0
    %v760 = vmax.f32 %v634, 0.0
    %v761 = vmax.f32 %v639, 0.0
    %v762 = vmax.f32 %v644, 0.0
    %v763 = vmax.f32 %v649, 0.0
    %v764 = vmax.f32 %v654, 0.0
    %v765 = vmax.f32 %v659, 0.0
    %v766 = vmax.f32 %v664, 0.0
    %v767 = vmax.f32 %v669, 0.0
    %v768 = vmax.f32 %v674, 0.0
    %v769 = vmax.f32 %v679, 0.0
    %v770 = vmax.f32 %v684, 0.0
    %v771 = vmax.f32 %v689, 0.0
    %v772 = vmax.f32 %v694, 0.0
    %v773 = vmax.f32 %v699, 0.0
    %v774 = vmax.f32 %v704, 0.0
    %v775 = vmax.f32 %v709, 0.0
    %v776 = vld [vmem:[%s3] sm:$0x1]
    %v777 = vld [vmem:[%s4] sm:$0x1]
    %vm778 = vcmask 523264
    %v779 = vsel %vm778, %v712, 0.0
    %v780 = vsel %vm778, %v713, 0.0
    %v781 = vadd.f32 %v779, %v780
    %v782 = vsel %vm778, %v714, 0.0
    %v783 = vadd.f32 %v781, %v782
    %v784 = vsel %vm778, %v715, 0.0
    %v785 = vadd.f32 %v783, %v784
    %v786 = vsel %vm778, %v716, 0.0
    %v787 = vadd.f32 %v785, %v786
    %v788 = vsel %vm778, %v717, 0.0
    %v789 = vadd.f32 %v787, %v788
    %v790 = vsel %vm778, %v718, 0.0
    %v791 = vadd.f32 %v789, %v790
    %v792 = vsel %vm778, %v719, 0.0
    %v793 = vadd.f32 %v791, %v792
    %v794 = vsel %vm778, %v720, 0.0
    %v795 = vadd.f32 %v793, %v794
    %v796 = vsel %vm778, %v721, 0.0
    %v797 = vadd.f32 %v795, %v796
    %v798 = vsel %vm778, %v722, 0.0
    %v799 = vadd.f32 %v797, %v798
    %v800 = vsel %vm778, %v723, 0.0
    %v801 = vadd.f32 %v799, %v800
    %v802 = vsel %vm778, %v724, 0.0
    %v803 = vadd.f32 %v801, %v802
    %v804 = vsel %vm778, %v725, 0.0
    %v805 = vadd.f32 %v803, %v804
    %v806 = vsel %vm778, %v726, 0.0
    %v807 = vadd.f32 %v805, %v806
    %v808 = vsel %vm778, %v727, 0.0
    %v809 = vadd.f32 %v807, %v808
    %v810 = vsel %vm778, %v728, 0.0
    %v811 = vadd.f32 %v809, %v810
    %v812 = vsel %vm778, %v729, 0.0
    %v813 = vadd.f32 %v811, %v812
    %v814 = vsel %vm778, %v730, 0.0
    %v815 = vadd.f32 %v813, %v814
    %v816 = vsel %vm778, %v731, 0.0
    %v817 = vadd.f32 %v815, %v816
    %v818 = vsel %vm778, %v732, 0.0
    %v819 = vadd.f32 %v817, %v818
    %v820 = vsel %vm778, %v733, 0.0
    %v821 = vadd.f32 %v819, %v820
    %v822 = vsel %vm778, %v734, 0.0
    %v823 = vadd.f32 %v821, %v822
    %v824 = vsel %vm778, %v735, 0.0
    %v825 = vadd.f32 %v823, %v824
    %v826 = vsel %vm778, %v736, 0.0
    %v827 = vadd.f32 %v825, %v826
    %v828 = vsel %vm778, %v737, 0.0
    %v829 = vadd.f32 %v827, %v828
    %v830 = vsel %vm778, %v738, 0.0
    %v831 = vadd.f32 %v829, %v830
    %v832 = vsel %vm778, %v739, 0.0
    %v833 = vadd.f32 %v831, %v832
    %v834 = vsel %vm778, %v740, 0.0
    %v835 = vadd.f32 %v833, %v834
    %v836 = vsel %vm778, %v741, 0.0
    %v837 = vadd.f32 %v835, %v836
    %v838 = vsel %vm778, %v742, 0.0
    %v839 = vadd.f32 %v837, %v838
    %v840 = vsel %vm778, %v743, 0.0
    %v841 = vadd.f32 %v839, %v840
    %v842 = vsel %vm778, %v744, 0.0
    %v843 = vadd.f32 %v841, %v842
    %v844 = vsel %vm778, %v745, 0.0
    %v845 = vadd.f32 %v843, %v844
    %v846 = vsel %vm778, %v746, 0.0
    %v847 = vadd.f32 %v845, %v846
    %v848 = vsel %vm778, %v747, 0.0
    %v849 = vadd.f32 %v847, %v848
    %v850 = vsel %vm778, %v748, 0.0
    %v851 = vadd.f32 %v849, %v850
    %v852 = vsel %vm778, %v749, 0.0
    %v853 = vadd.f32 %v851, %v852
    %v854 = vsel %vm778, %v750, 0.0
    %v855 = vadd.f32 %v853, %v854
    %v856 = vsel %vm778, %v751, 0.0
    %v857 = vadd.f32 %v855, %v856
    %v858 = vsel %vm778, %v752, 0.0
    %v859 = vadd.f32 %v857, %v858
    %v860 = vsel %vm778, %v753, 0.0
    %v861 = vadd.f32 %v859, %v860
    %v862 = vsel %vm778, %v754, 0.0
    %v863 = vadd.f32 %v861, %v862
    %v864 = vsel %vm778, %v755, 0.0
    %v865 = vadd.f32 %v863, %v864
    %v866 = vsel %vm778, %v756, 0.0
    %v867 = vadd.f32 %v865, %v866
    %v868 = vsel %vm778, %v757, 0.0
    %v869 = vadd.f32 %v867, %v868
    %v870 = vsel %vm778, %v758, 0.0
    %v871 = vadd.f32 %v869, %v870
    %v872 = vsel %vm778, %v759, 0.0
    %v873 = vadd.f32 %v871, %v872
    %v874 = vsel %vm778, %v760, 0.0
    %v875 = vadd.f32 %v873, %v874
    %v876 = vsel %vm778, %v761, 0.0
    %v877 = vadd.f32 %v875, %v876
    %v878 = vsel %vm778, %v762, 0.0
    %v879 = vadd.f32 %v877, %v878
    %v880 = vsel %vm778, %v763, 0.0
    %v881 = vadd.f32 %v879, %v880
    %v882 = vsel %vm778, %v764, 0.0
    %v883 = vadd.f32 %v881, %v882
    %v884 = vsel %vm778, %v765, 0.0
    %v885 = vadd.f32 %v883, %v884
    %v886 = vsel %vm778, %v766, 0.0
    %v887 = vadd.f32 %v885, %v886
    %v888 = vsel %vm778, %v767, 0.0
    %v889 = vadd.f32 %v887, %v888
    %v890 = vsel %vm778, %v768, 0.0
    %v891 = vadd.f32 %v889, %v890
    %v892 = vsel %vm778, %v769, 0.0
    %v893 = vadd.f32 %v891, %v892
    %v894 = vsel %vm778, %v770, 0.0
    %v895 = vadd.f32 %v893, %v894
    %v896 = vsel %vm778, %v771, 0.0
    %v897 = vadd.f32 %v895, %v896
    %v898 = vsel %vm778, %v772, 0.0
    %v899 = vadd.f32 %v897, %v898
    %v900 = vsel %vm778, %v773, 0.0
    %v901 = vadd.f32 %v899, %v900
    %v902 = vsel %vm778, %v774, 0.0
    %v903 = vadd.f32 %v901, %v902
    %v904 = vsel %vm778, %v775, 0.0
    %v905 = vadd.f32 %v903, %v904
    %v906 = vrot.slane %v905, 4
    %v907 = vadd.f32 %v905, %v906
    %v908 = vrot.slane %v907, 2
    %v909 = vadd.f32 %v907, %v908
    %v910 = vrot.slane %v909, 1
    %v911 = vadd.f32 %v909, %v910
    %v912 = vrcp.pop 512.0
    %v913 = vmul.f32 %v911, %v912
    %v914 = vmul.f32 %v712, %v712
    %v915 = vmul.f32 %v713, %v713
    %v916 = vmul.f32 %v714, %v714
    %v917 = vmul.f32 %v715, %v715
    %v918 = vmul.f32 %v716, %v716
    %v919 = vmul.f32 %v717, %v717
    %v920 = vmul.f32 %v718, %v718
    %v921 = vmul.f32 %v719, %v719
    %v922 = vmul.f32 %v720, %v720
    %v923 = vmul.f32 %v721, %v721
    %v924 = vmul.f32 %v722, %v722
    %v925 = vmul.f32 %v723, %v723
    %v926 = vmul.f32 %v724, %v724
    %v927 = vmul.f32 %v725, %v725
    %v928 = vmul.f32 %v726, %v726
    %v929 = vmul.f32 %v727, %v727
    %v930 = vmul.f32 %v728, %v728
    %v931 = vmul.f32 %v729, %v729
    %v932 = vmul.f32 %v730, %v730
    %v933 = vmul.f32 %v731, %v731
    %v934 = vmul.f32 %v732, %v732
    %v935 = vmul.f32 %v733, %v733
    %v936 = vmul.f32 %v734, %v734
    %v937 = vmul.f32 %v735, %v735
    %v938 = vmul.f32 %v736, %v736
    %v939 = vmul.f32 %v737, %v737
    %v940 = vmul.f32 %v738, %v738
    %v941 = vmul.f32 %v739, %v739
    %v942 = vmul.f32 %v740, %v740
    %v943 = vmul.f32 %v741, %v741
    %v944 = vmul.f32 %v742, %v742
    %v945 = vmul.f32 %v743, %v743
    %v946 = vmul.f32 %v744, %v744
    %v947 = vmul.f32 %v745, %v745
    %v948 = vmul.f32 %v746, %v746
    %v949 = vmul.f32 %v747, %v747
    %v950 = vmul.f32 %v748, %v748
    %v951 = vmul.f32 %v749, %v749
    %v952 = vmul.f32 %v750, %v750
    %v953 = vmul.f32 %v751, %v751
    %v954 = vmul.f32 %v752, %v752
    %v955 = vmul.f32 %v753, %v753
    %v956 = vmul.f32 %v754, %v754
    %v957 = vmul.f32 %v755, %v755
    %v958 = vmul.f32 %v756, %v756
    %v959 = vmul.f32 %v757, %v757
    %v960 = vmul.f32 %v758, %v758
    %v961 = vmul.f32 %v759, %v759
    %v962 = vmul.f32 %v760, %v760
    %v963 = vmul.f32 %v761, %v761
    %v964 = vmul.f32 %v762, %v762
    %v965 = vmul.f32 %v763, %v763
    %v966 = vmul.f32 %v764, %v764
    %v967 = vmul.f32 %v765, %v765
    %v968 = vmul.f32 %v766, %v766
    %v969 = vmul.f32 %v767, %v767
    %v970 = vmul.f32 %v768, %v768
    %v971 = vmul.f32 %v769, %v769
    %v972 = vmul.f32 %v770, %v770
    %v973 = vmul.f32 %v771, %v771
    %v974 = vmul.f32 %v772, %v772
    %v975 = vmul.f32 %v773, %v773
    %v976 = vmul.f32 %v774, %v774
    %v977 = vmul.f32 %v775, %v775
    %v978 = vsel %vm778, %v914, 0.0
    %v979 = vsel %vm778, %v915, 0.0
    %v980 = vadd.f32 %v978, %v979
    %v981 = vsel %vm778, %v916, 0.0
    %v982 = vadd.f32 %v980, %v981
    %v983 = vsel %vm778, %v917, 0.0
    %v984 = vadd.f32 %v982, %v983
    %v985 = vsel %vm778, %v918, 0.0
    %v986 = vadd.f32 %v984, %v985
    %v987 = vsel %vm778, %v919, 0.0
    %v988 = vadd.f32 %v986, %v987
    %v989 = vsel %vm778, %v920, 0.0
    %v990 = vadd.f32 %v988, %v989
    %v991 = vsel %vm778, %v921, 0.0
    %v992 = vadd.f32 %v990, %v991
    %v993 = vsel %vm778, %v922, 0.0
    %v994 = vadd.f32 %v992, %v993
    %v995 = vsel %vm778, %v923, 0.0
    %v996 = vadd.f32 %v994, %v995
    %v997 = vsel %vm778, %v924, 0.0
    %v998 = vadd.f32 %v996, %v997
    %v999 = vsel %vm778, %v925, 0.0
    %v1000 = vadd.f32 %v998, %v999
    %v1001 = vsel %vm778, %v926, 0.0
    %v1002 = vadd.f32 %v1000, %v1001
    %v1003 = vsel %vm778, %v927, 0.0
    %v1004 = vadd.f32 %v1002, %v1003
    %v1005 = vsel %vm778, %v928, 0.0
    %v1006 = vadd.f32 %v1004, %v1005
    %v1007 = vsel %vm778, %v929, 0.0
    %v1008 = vadd.f32 %v1006, %v1007
    %v1009 = vsel %vm778, %v930, 0.0
    %v1010 = vadd.f32 %v1008, %v1009
    %v1011 = vsel %vm778, %v931, 0.0
    %v1012 = vadd.f32 %v1010, %v1011
    %v1013 = vsel %vm778, %v932, 0.0
    %v1014 = vadd.f32 %v1012, %v1013
    %v1015 = vsel %vm778, %v933, 0.0
    %v1016 = vadd.f32 %v1014, %v1015
    %v1017 = vsel %vm778, %v934, 0.0
    %v1018 = vadd.f32 %v1016, %v1017
    %v1019 = vsel %vm778, %v935, 0.0
    %v1020 = vadd.f32 %v1018, %v1019
    %v1021 = vsel %vm778, %v936, 0.0
    %v1022 = vadd.f32 %v1020, %v1021
    %v1023 = vsel %vm778, %v937, 0.0
    %v1024 = vadd.f32 %v1022, %v1023
    %v1025 = vsel %vm778, %v938, 0.0
    %v1026 = vadd.f32 %v1024, %v1025
    %v1027 = vsel %vm778, %v939, 0.0
    %v1028 = vadd.f32 %v1026, %v1027
    %v1029 = vsel %vm778, %v940, 0.0
    %v1030 = vadd.f32 %v1028, %v1029
    %v1031 = vsel %vm778, %v941, 0.0
    %v1032 = vadd.f32 %v1030, %v1031
    %v1033 = vsel %vm778, %v942, 0.0
    %v1034 = vadd.f32 %v1032, %v1033
    %v1035 = vsel %vm778, %v943, 0.0
    %v1036 = vadd.f32 %v1034, %v1035
    %v1037 = vsel %vm778, %v944, 0.0
    %v1038 = vadd.f32 %v1036, %v1037
    %v1039 = vsel %vm778, %v945, 0.0
    %v1040 = vadd.f32 %v1038, %v1039
    %v1041 = vsel %vm778, %v946, 0.0
    %v1042 = vadd.f32 %v1040, %v1041
    %v1043 = vsel %vm778, %v947, 0.0
    %v1044 = vadd.f32 %v1042, %v1043
    %v1045 = vsel %vm778, %v948, 0.0
    %v1046 = vadd.f32 %v1044, %v1045
    %v1047 = vsel %vm778, %v949, 0.0
    %v1048 = vadd.f32 %v1046, %v1047
    %v1049 = vsel %vm778, %v950, 0.0
    %v1050 = vadd.f32 %v1048, %v1049
    %v1051 = vsel %vm778, %v951, 0.0
    %v1052 = vadd.f32 %v1050, %v1051
    %v1053 = vsel %vm778, %v952, 0.0
    %v1054 = vadd.f32 %v1052, %v1053
    %v1055 = vsel %vm778, %v953, 0.0
    %v1056 = vadd.f32 %v1054, %v1055
    %v1057 = vsel %vm778, %v954, 0.0
    %v1058 = vadd.f32 %v1056, %v1057
    %v1059 = vsel %vm778, %v955, 0.0
    %v1060 = vadd.f32 %v1058, %v1059
    %v1061 = vsel %vm778, %v956, 0.0
    %v1062 = vadd.f32 %v1060, %v1061
    %v1063 = vsel %vm778, %v957, 0.0
    %v1064 = vadd.f32 %v1062, %v1063
    %v1065 = vsel %vm778, %v958, 0.0
    %v1066 = vadd.f32 %v1064, %v1065
    %v1067 = vsel %vm778, %v959, 0.0
    %v1068 = vadd.f32 %v1066, %v1067
    %v1069 = vsel %vm778, %v960, 0.0
    %v1070 = vadd.f32 %v1068, %v1069
    %v1071 = vsel %vm778, %v961, 0.0
    %v1072 = vadd.f32 %v1070, %v1071
    %v1073 = vsel %vm778, %v962, 0.0
    %v1074 = vadd.f32 %v1072, %v1073
    %v1075 = vsel %vm778, %v963, 0.0
    %v1076 = vadd.f32 %v1074, %v1075
    %v1077 = vsel %vm778, %v964, 0.0
    %v1078 = vadd.f32 %v1076, %v1077
    %v1079 = vsel %vm778, %v965, 0.0
    %v1080 = vadd.f32 %v1078, %v1079
    %v1081 = vsel %vm778, %v966, 0.0
    %v1082 = vadd.f32 %v1080, %v1081
    %v1083 = vsel %vm778, %v967, 0.0
    %v1084 = vadd.f32 %v1082, %v1083
    %v1085 = vsel %vm778, %v968, 0.0
    %v1086 = vadd.f32 %v1084, %v1085
    %v1087 = vsel %vm778, %v969, 0.0
    %v1088 = vadd.f32 %v1086, %v1087
    %v1089 = vsel %vm778, %v970, 0.0
    %v1090 = vadd.f32 %v1088, %v1089
    %v1091 = vsel %vm778, %v971, 0.0
    %v1092 = vadd.f32 %v1090, %v1091
    %v1093 = vsel %vm778, %v972, 0.0
    %v1094 = vadd.f32 %v1092, %v1093
    %v1095 = vsel %vm778, %v973, 0.0
    %v1096 = vadd.f32 %v1094, %v1095
    %v1097 = vsel %vm778, %v974, 0.0
    %v1098 = vadd.f32 %v1096, %v1097
    %v1099 = vsel %vm778, %v975, 0.0
    %v1100 = vadd.f32 %v1098, %v1099
    %v1101 = vsel %vm778, %v976, 0.0
    %v1102 = vadd.f32 %v1100, %v1101
    %v1103 = vsel %vm778, %v977, 0.0
    %v1104 = vadd.f32 %v1102, %v1103
    %v1105 = vrot.slane %v1104, 4
    %v1106 = vadd.f32 %v1104, %v1105
    %v1107 = vrot.slane %v1106, 2
    %v1108 = vadd.f32 %v1106, %v1107
    %v1109 = vrot.slane %v1108, 1
    %v1110 = vadd.f32 %v1108, %v1109
    %v1111 = vmul.f32 %v1110, %v912
    %v1112 = vmul.f32 %v913, %v913
    %v1113 = vsub.f32 %v1111, %v1112
    %v1114 = vmax.f32 %v1113, 0.0
    %v1115 = vsub.f32 %v712, %v913
    %v1116 = vsub.f32 %v713, %v913
    %v1117 = vsub.f32 %v714, %v913
    %v1118 = vsub.f32 %v715, %v913
    %v1119 = vsub.f32 %v716, %v913
    %v1120 = vsub.f32 %v717, %v913
    %v1121 = vsub.f32 %v718, %v913
    %v1122 = vsub.f32 %v719, %v913
    %v1123 = vsub.f32 %v720, %v913
    %v1124 = vsub.f32 %v721, %v913
    %v1125 = vsub.f32 %v722, %v913
    %v1126 = vsub.f32 %v723, %v913
    %v1127 = vsub.f32 %v724, %v913
    %v1128 = vsub.f32 %v725, %v913
    %v1129 = vsub.f32 %v726, %v913
    %v1130 = vsub.f32 %v727, %v913
    %v1131 = vsub.f32 %v728, %v913
    %v1132 = vsub.f32 %v729, %v913
    %v1133 = vsub.f32 %v730, %v913
    %v1134 = vsub.f32 %v731, %v913
    %v1135 = vsub.f32 %v732, %v913
    %v1136 = vsub.f32 %v733, %v913
    %v1137 = vsub.f32 %v734, %v913
    %v1138 = vsub.f32 %v735, %v913
    %v1139 = vsub.f32 %v736, %v913
    %v1140 = vsub.f32 %v737, %v913
    %v1141 = vsub.f32 %v738, %v913
    %v1142 = vsub.f32 %v739, %v913
    %v1143 = vsub.f32 %v740, %v913
    %v1144 = vsub.f32 %v741, %v913
    %v1145 = vsub.f32 %v742, %v913
    %v1146 = vsub.f32 %v743, %v913
    %v1147 = vsub.f32 %v744, %v913
    %v1148 = vsub.f32 %v745, %v913
    %v1149 = vsub.f32 %v746, %v913
    %v1150 = vsub.f32 %v747, %v913
    %v1151 = vsub.f32 %v748, %v913
    %v1152 = vsub.f32 %v749, %v913
    %v1153 = vsub.f32 %v750, %v913
    %v1154 = vsub.f32 %v751, %v913
    %v1155 = vsub.f32 %v752, %v913
    %v1156 = vsub.f32 %v753, %v913
    %v1157 = vsub.f32 %v754, %v913
    %v1158 = vsub.f32 %v755, %v913
    %v1159 = vsub.f32 %v756, %v913
    %v1160 = vsub.f32 %v757, %v913
    %v1161 = vsub.f32 %v758, %v913
    %v1162 = vsub.f32 %v759, %v913
    %v1163 = vsub.f32 %v760, %v913
    %v1164 = vsub.f32 %v761, %v913
    %v1165 = vsub.f32 %v762, %v913
    %v1166 = vsub.f32 %v763, %v913
    %v1167 = vsub.f32 %v764, %v913
    %v1168 = vsub.f32 %v765, %v913
    %v1169 = vsub.f32 %v766, %v913
    %v1170 = vsub.f32 %v767, %v913
    %v1171 = vsub.f32 %v768, %v913
    %v1172 = vsub.f32 %v769, %v913
    %v1173 = vsub.f32 %v770, %v913
    %v1174 = vsub.f32 %v771, %v913
    %v1175 = vsub.f32 %v772, %v913
    %v1176 = vsub.f32 %v773, %v913
    %v1177 = vsub.f32 %v774, %v913
    %v1178 = vsub.f32 %v775, %v913
    %v1179 = vadd.f32 %v1114, 1e-05
    %v1180 = vrsqrt.pop %v1179
    %v1181 = vmul.f32 %v1115, %v1180
    %v1182 = vmul.f32 %v1116, %v1180
    %v1183 = vmul.f32 %v1117, %v1180
    %v1184 = vmul.f32 %v1118, %v1180
    %v1185 = vmul.f32 %v1119, %v1180
    %v1186 = vmul.f32 %v1120, %v1180
    %v1187 = vmul.f32 %v1121, %v1180
    %v1188 = vmul.f32 %v1122, %v1180
    %v1189 = vmul.f32 %v1123, %v1180
    %v1190 = vmul.f32 %v1124, %v1180
    %v1191 = vmul.f32 %v1125, %v1180
    %v1192 = vmul.f32 %v1126, %v1180
    %v1193 = vmul.f32 %v1127, %v1180
    %v1194 = vmul.f32 %v1128, %v1180
    %v1195 = vmul.f32 %v1129, %v1180
    %v1196 = vmul.f32 %v1130, %v1180
    %v1197 = vmul.f32 %v1131, %v1180
    %v1198 = vmul.f32 %v1132, %v1180
    %v1199 = vmul.f32 %v1133, %v1180
    %v1200 = vmul.f32 %v1134, %v1180
    %v1201 = vmul.f32 %v1135, %v1180
    %v1202 = vmul.f32 %v1136, %v1180
    %v1203 = vmul.f32 %v1137, %v1180
    %v1204 = vmul.f32 %v1138, %v1180
    %v1205 = vmul.f32 %v1139, %v1180
    %v1206 = vmul.f32 %v1140, %v1180
    %v1207 = vmul.f32 %v1141, %v1180
    %v1208 = vmul.f32 %v1142, %v1180
    %v1209 = vmul.f32 %v1143, %v1180
    %v1210 = vmul.f32 %v1144, %v1180
    %v1211 = vmul.f32 %v1145, %v1180
    %v1212 = vmul.f32 %v1146, %v1180
    %v1213 = vmul.f32 %v1147, %v1180
    %v1214 = vmul.f32 %v1148, %v1180
    %v1215 = vmul.f32 %v1149, %v1180
    %v1216 = vmul.f32 %v1150, %v1180
    %v1217 = vmul.f32 %v1151, %v1180
    %v1218 = vmul.f32 %v1152, %v1180
    %v1219 = vmul.f32 %v1153, %v1180
    %v1220 = vmul.f32 %v1154, %v1180
    %v1221 = vmul.f32 %v1155, %v1180
    %v1222 = vmul.f32 %v1156, %v1180
    %v1223 = vmul.f32 %v1157, %v1180
    %v1224 = vmul.f32 %v1158, %v1180
    %v1225 = vmul.f32 %v1159, %v1180
    %v1226 = vmul.f32 %v1160, %v1180
    %v1227 = vmul.f32 %v1161, %v1180
    %v1228 = vmul.f32 %v1162, %v1180
    %v1229 = vmul.f32 %v1163, %v1180
    %v1230 = vmul.f32 %v1164, %v1180
    %v1231 = vmul.f32 %v1165, %v1180
    %v1232 = vmul.f32 %v1166, %v1180
    %v1233 = vmul.f32 %v1167, %v1180
    %v1234 = vmul.f32 %v1168, %v1180
    %v1235 = vmul.f32 %v1169, %v1180
    %v1236 = vmul.f32 %v1170, %v1180
    %v1237 = vmul.f32 %v1171, %v1180
    %v1238 = vmul.f32 %v1172, %v1180
    %v1239 = vmul.f32 %v1173, %v1180
    %v1240 = vmul.f32 %v1174, %v1180
    %v1241 = vmul.f32 %v1175, %v1180
    %v1242 = vmul.f32 %v1176, %v1180
    %v1243 = vmul.f32 %v1177, %v1180
    %v1244 = vmul.f32 %v1178, %v1180
    %v1246 = vlaneseq
    %v1247 = vshrl.u32 %v1246, 7
    %v1248 = vsub.s32 0, %v1247
    %v1249 = vrot.slane %v776, %v1248
    %v1251 = vmul.f32 %v1181, %v1249
    %v1252 = vmul.f32 %v1182, %v1249
    %v1253 = vmul.f32 %v1183, %v1249
    %v1254 = vmul.f32 %v1184, %v1249
    %v1255 = vmul.f32 %v1185, %v1249
    %v1256 = vmul.f32 %v1186, %v1249
    %v1257 = vmul.f32 %v1187, %v1249
    %v1258 = vmul.f32 %v1188, %v1249
    %v1259 = vmul.f32 %v1189, %v1249
    %v1260 = vmul.f32 %v1190, %v1249
    %v1261 = vmul.f32 %v1191, %v1249
    %v1262 = vmul.f32 %v1192, %v1249
    %v1263 = vmul.f32 %v1193, %v1249
    %v1264 = vmul.f32 %v1194, %v1249
    %v1265 = vmul.f32 %v1195, %v1249
    %v1266 = vmul.f32 %v1196, %v1249
    %v1267 = vmul.f32 %v1197, %v1249
    %v1268 = vmul.f32 %v1198, %v1249
    %v1269 = vmul.f32 %v1199, %v1249
    %v1270 = vmul.f32 %v1200, %v1249
    %v1271 = vmul.f32 %v1201, %v1249
    %v1272 = vmul.f32 %v1202, %v1249
    %v1273 = vmul.f32 %v1203, %v1249
    %v1274 = vmul.f32 %v1204, %v1249
    %v1275 = vmul.f32 %v1205, %v1249
    %v1276 = vmul.f32 %v1206, %v1249
    %v1277 = vmul.f32 %v1207, %v1249
    %v1278 = vmul.f32 %v1208, %v1249
    %v1279 = vmul.f32 %v1209, %v1249
    %v1280 = vmul.f32 %v1210, %v1249
    %v1281 = vmul.f32 %v1211, %v1249
    %v1282 = vmul.f32 %v1212, %v1249
    %v1283 = vmul.f32 %v1213, %v1249
    %v1284 = vmul.f32 %v1214, %v1249
    %v1285 = vmul.f32 %v1215, %v1249
    %v1286 = vmul.f32 %v1216, %v1249
    %v1287 = vmul.f32 %v1217, %v1249
    %v1288 = vmul.f32 %v1218, %v1249
    %v1289 = vmul.f32 %v1219, %v1249
    %v1290 = vmul.f32 %v1220, %v1249
    %v1291 = vmul.f32 %v1221, %v1249
    %v1292 = vmul.f32 %v1222, %v1249
    %v1293 = vmul.f32 %v1223, %v1249
    %v1294 = vmul.f32 %v1224, %v1249
    %v1295 = vmul.f32 %v1225, %v1249
    %v1296 = vmul.f32 %v1226, %v1249
    %v1297 = vmul.f32 %v1227, %v1249
    %v1298 = vmul.f32 %v1228, %v1249
    %v1299 = vmul.f32 %v1229, %v1249
    %v1300 = vmul.f32 %v1230, %v1249
    %v1301 = vmul.f32 %v1231, %v1249
    %v1302 = vmul.f32 %v1232, %v1249
    %v1303 = vmul.f32 %v1233, %v1249
    %v1304 = vmul.f32 %v1234, %v1249
    %v1305 = vmul.f32 %v1235, %v1249
    %v1306 = vmul.f32 %v1236, %v1249
    %v1307 = vmul.f32 %v1237, %v1249
    %v1308 = vmul.f32 %v1238, %v1249
    %v1309 = vmul.f32 %v1239, %v1249
    %v1310 = vmul.f32 %v1240, %v1249
    %v1311 = vmul.f32 %v1241, %v1249
    %v1312 = vmul.f32 %v1242, %v1249
    %v1313 = vmul.f32 %v1243, %v1249
    %v1314 = vmul.f32 %v1244, %v1249
    %v1316 = vlaneseq
    %v1317 = vshrl.u32 %v1316, 7
    %v1318 = vsub.s32 0, %v1317
    %v1319 = vrot.slane %v777, %v1318
    %v1321 = vadd.f32 %v1251, %v1319
    %v1322 = vadd.f32 %v1252, %v1319
    %v1323 = vadd.f32 %v1253, %v1319
    %v1324 = vadd.f32 %v1254, %v1319
    %v1325 = vadd.f32 %v1255, %v1319
    %v1326 = vadd.f32 %v1256, %v1319
    %v1327 = vadd.f32 %v1257, %v1319
    %v1328 = vadd.f32 %v1258, %v1319
    %v1329 = vadd.f32 %v1259, %v1319
    %v1330 = vadd.f32 %v1260, %v1319
    %v1331 = vadd.f32 %v1261, %v1319
    %v1332 = vadd.f32 %v1262, %v1319
    %v1333 = vadd.f32 %v1263, %v1319
    %v1334 = vadd.f32 %v1264, %v1319
    %v1335 = vadd.f32 %v1265, %v1319
    %v1336 = vadd.f32 %v1266, %v1319
    %v1337 = vadd.f32 %v1267, %v1319
    %v1338 = vadd.f32 %v1268, %v1319
    %v1339 = vadd.f32 %v1269, %v1319
    %v1340 = vadd.f32 %v1270, %v1319
    %v1341 = vadd.f32 %v1271, %v1319
    %v1342 = vadd.f32 %v1272, %v1319
    %v1343 = vadd.f32 %v1273, %v1319
    %v1344 = vadd.f32 %v1274, %v1319
    %v1345 = vadd.f32 %v1275, %v1319
    %v1346 = vadd.f32 %v1276, %v1319
    %v1347 = vadd.f32 %v1277, %v1319
    %v1348 = vadd.f32 %v1278, %v1319
    %v1349 = vadd.f32 %v1279, %v1319
    %v1350 = vadd.f32 %v1280, %v1319
    %v1351 = vadd.f32 %v1281, %v1319
    %v1352 = vadd.f32 %v1282, %v1319
    %v1353 = vadd.f32 %v1283, %v1319
    %v1354 = vadd.f32 %v1284, %v1319
    %v1355 = vadd.f32 %v1285, %v1319
    %v1356 = vadd.f32 %v1286, %v1319
    %v1357 = vadd.f32 %v1287, %v1319
    %v1358 = vadd.f32 %v1288, %v1319
    %v1359 = vadd.f32 %v1289, %v1319
    %v1360 = vadd.f32 %v1290, %v1319
    %v1361 = vadd.f32 %v1291, %v1319
    %v1362 = vadd.f32 %v1292, %v1319
    %v1363 = vadd.f32 %v1293, %v1319
    %v1364 = vadd.f32 %v1294, %v1319
    %v1365 = vadd.f32 %v1295, %v1319
    %v1366 = vadd.f32 %v1296, %v1319
    %v1367 = vadd.f32 %v1297, %v1319
    %v1368 = vadd.f32 %v1298, %v1319
    %v1369 = vadd.f32 %v1299, %v1319
    %v1370 = vadd.f32 %v1300, %v1319
    %v1371 = vadd.f32 %v1301, %v1319
    %v1372 = vadd.f32 %v1302, %v1319
    %v1373 = vadd.f32 %v1303, %v1319
    %v1374 = vadd.f32 %v1304, %v1319
    %v1375 = vadd.f32 %v1305, %v1319
    %v1376 = vadd.f32 %v1306, %v1319
    %v1377 = vadd.f32 %v1307, %v1319
    %v1378 = vadd.f32 %v1308, %v1319
    %v1379 = vadd.f32 %v1309, %v1319
    %v1380 = vadd.f32 %v1310, %v1319
    %v1381 = vadd.f32 %v1311, %v1319
    %v1382 = vadd.f32 %v1312, %v1319
    %v1383 = vadd.f32 %v1313, %v1319
    %v1384 = vadd.f32 %v1314, %v1319
    %v1385 = vmax.f32 %v1321, %v1337
    %v1386 = vmax.f32 %v1322, %v1338
    %v1387 = vmax.f32 %v1323, %v1339
    %v1388 = vmax.f32 %v1324, %v1340
    %v1389 = vmax.f32 %v1325, %v1341
    %v1390 = vmax.f32 %v1326, %v1342
    %v1391 = vmax.f32 %v1327, %v1343
    %v1392 = vmax.f32 %v1328, %v1344
    %v1393 = vmax.f32 %v1329, %v1345
    %v1394 = vmax.f32 %v1330, %v1346
    %v1395 = vmax.f32 %v1331, %v1347
    %v1396 = vmax.f32 %v1332, %v1348
    %v1397 = vmax.f32 %v1333, %v1349
    %v1398 = vmax.f32 %v1334, %v1350
    %v1399 = vmax.f32 %v1335, %v1351
    %v1400 = vmax.f32 %v1336, %v1352
    %v1401 = vmax.f32 %v1353, %v1369
    %v1402 = vmax.f32 %v1354, %v1370
    %v1403 = vmax.f32 %v1355, %v1371
    %v1404 = vmax.f32 %v1356, %v1372
    %v1405 = vmax.f32 %v1357, %v1373
    %v1406 = vmax.f32 %v1358, %v1374
    %v1407 = vmax.f32 %v1359, %v1375
    %v1408 = vmax.f32 %v1360, %v1376
    %v1409 = vmax.f32 %v1361, %v1377
    %v1410 = vmax.f32 %v1362, %v1378
    %v1411 = vmax.f32 %v1363, %v1379
    %v1412 = vmax.f32 %v1364, %v1380
    %v1413 = vmax.f32 %v1365, %v1381
    %v1414 = vmax.f32 %v1366, %v1382
    %v1415 = vmax.f32 %v1367, %v1383
    %v1416 = vmax.f32 %v1368, %v1384
    %v1417 = vmax.f32 %v1385, %v1401
    %v1418 = vmax.f32 %v1386, %v1402
    %v1419 = vmax.f32 %v1387, %v1403
    %v1420 = vmax.f32 %v1388, %v1404
    %v1421 = vmax.f32 %v1389, %v1405
    %v1422 = vmax.f32 %v1390, %v1406
    %v1423 = vmax.f32 %v1391, %v1407
    %v1424 = vmax.f32 %v1392, %v1408
    %v1425 = vmax.f32 %v1393, %v1409
    %v1426 = vmax.f32 %v1394, %v1410
    %v1427 = vmax.f32 %v1395, %v1411
    %v1428 = vmax.f32 %v1396, %v1412
    %v1429 = vmax.f32 %v1397, %v1413
    %v1430 = vmax.f32 %v1398, %v1414
    %v1431 = vmax.f32 %v1399, %v1415
    %v1432 = vmax.f32 %v1400, %v1416
    %v1433 = vld [vmem:[%s5] sm:$0xff]
    %v1434 = vld [vmem:[%s5 + $0x8] sm:$0xff]
    %v1435 = vld [vmem:[%s5 + $0x10] sm:$0xff]
    %v1436 = vld [vmem:[%s5 + $0x18] sm:$0xff]
    %v1437 = vld [vmem:[%s5 + $0x20] sm:$0xff]
    %v1438 = vld [vmem:[%s5 + $0x28] sm:$0xff]
    %v1439 = vld [vmem:[%s5 + $0x30] sm:$0xff]
    %v1440 = vld [vmem:[%s5 + $0x38] sm:$0xff]
    %s1441 = scalar_lea.vmem %s5, 64
    %v1442 = vld [vmem:[%s1441] sm:$0xff]
    %v1443 = vld [vmem:[%s1441 + $0x8] sm:$0xff]
    %v1444 = vld [vmem:[%s1441 + $0x10] sm:$0xff]
    %v1445 = vld [vmem:[%s1441 + $0x18] sm:$0xff]
    %v1446 = vld [vmem:[%s1441 + $0x20] sm:$0xff]
    %v1447 = vld [vmem:[%s1441 + $0x28] sm:$0xff]
    %v1448 = vld [vmem:[%s1441 + $0x30] sm:$0xff]
    %v1449 = vld [vmem:[%s1441 + $0x38] sm:$0xff]
    %v1451 = vsel %vm778, %v1421, 0
    %v1454 = vsel %vm778, %v1422, 0
    %v1457 = vsel %vm778, %v1423, 0
    %v1460 = vsel %vm778, %v1424, 0
    %1462 = vmatprep.subr.mxu0 0.0
    %1463 = vmatpush1.msra.mxu0 %v1442
    %1464 = vmatprep.subr.mxu0 0.0
    %1465 = vmatpush1.msra.mxu0 %v1443
    %1466 = vmatprep.subr.mxu0 0.0
    %1467 = vmatpush1.msra.mxu0 %v1444
    %1468 = vmatprep.subr.mxu0 0.0
    %1469 = vmatpush1.msra.mxu0 %v1445
    %1470 = vmatprep.subr.mxu0 0.0
    %1471 = vmatpush1.msra.mxu0 %v1446
    %1472 = vmatprep.subr.mxu0 0.0
    %1473 = vmatpush1.msra.mxu0 %v1447
    %1474 = vmatprep.subr.mxu0 0.0
    %1475 = vmatpush1.msra.mxu0 %v1448
    %1476 = vmatprep.subr.mxu0 0.0
    %1477 = vmatpush1.msra.mxu0 %v1449
    %1478 = vmatprep.subr.mxu0 0.0
    %1479 = vmatpush1.msra.mxu0 0.0
    %1480 = vmatprep.subr.mxu0 0.0
    %1481 = vmatpush1.msra.mxu0 0.0
    %1482 = vmatprep.subr.mxu0 0.0
    %1483 = vmatpush1.msra.mxu0 0.0
    %1484 = vmatprep.subr.mxu0 0.0
    %1485 = vmatpush1.msra.mxu0 0.0
    %1486 = vmatprep.subr.mxu0 0.0
    %1487 = vmatpush1.msra.mxu0 0.0
    %1488 = vmatprep.subr.mxu0 0.0
    %1489 = vmatpush1.msra.mxu0 0.0
    %1490 = vmatprep.subr.mxu0 0.0
    %1491 = vmatpush1.msra.mxu0 0.0
    %1492 = vmatprep.subr.mxu0 0.0
    %1493 = vmatpush1.msra.mxu0 0.0
    %1494 = vmatprep.subr.mxu0 0.0
    %1495 = vmatpush1.msra.mxu0 0.0
    %1496 = vmatprep.subr.mxu0 0.0
    %1497 = vmatpush1.msra.mxu0 0.0
    %1498 = vmatprep.subr.mxu0 0.0
    %1499 = vmatpush1.msra.mxu0 0.0
    %1500 = vmatprep.subr.mxu0 0.0
    %1501 = vmatpush1.msra.mxu0 0.0
    %1502 = vmatprep.subr.mxu0 0.0
    %1503 = vmatpush1.msra.mxu0 0.0
    %1504 = vmatprep.subr.mxu0 0.0
    %1505 = vmatpush1.msra.mxu0 0.0
    %1506 = vmatprep.subr.mxu0 0.0
    %1507 = vmatpush1.msra.mxu0 0.0
    %1508 = vmatprep.subr.mxu0 0.0
    %1509 = vmatpush1.msra.mxu0 0.0
    %1510 = vmatprep.subr.mxu0 0.0
    %1511 = vmatpush1.msra.mxu0 0.0
    %1512 = vmatprep.subr.mxu0 0.0
    %1513 = vmatpush1.msra.mxu0 0.0
    %1514 = vmatprep.subr.mxu0 0.0
    %1515 = vmatpush1.msra.mxu0 0.0
    %1516 = vmatprep.subr.mxu0 0.0
    %1517 = vmatpush1.msra.mxu0 0.0
    %1518 = vmatprep.subr.mxu0 0.0
    %1519 = vmatpush1.msra.mxu0 0.0
    %1520 = vmatprep.subr.mxu0 0.0
    %1521 = vmatpush1.msra.mxu0 0.0
    %1522 = vmatprep.subr.mxu0 0.0
    %1523 = vmatpush1.msra.mxu0 0.0
    %1524 = vmatprep.subr.mxu0 0.0
    %1525 = vmatpush1.msra.mxu0 0.0
    %1526 = vmatprep.mubr.f32.mxu0 0.0
    %1527 = vmatmul.mubr.f32.gmra.mrb[0].mxu0 %v1451
    %v1528 = vpop.f32.mrb[0].mxu0
    %v1529 = vadd.f32 0.0, %v1528
    %v1530 = vpop.f32.mrb[0].mxu0
    %1531 = vmatprep.mubr.f32.mxu0 0.0
    %1532 = vmatmul.mubr.f32.gmra.mrb[0].mxu0 %v1454
    %v1533 = vpop.f32.mrb[0].mxu0
    %v1534 = vadd.f32 0.0, %v1533
    %v1535 = vpop.f32.mrb[0].mxu0
    %1536 = vmatprep.mubr.f32.mxu0 0.0
    %1537 = vmatmul.mubr.f32.gmra.mrb[0].mxu0 %v1457
    %v1538 = vpop.f32.mrb[0].mxu0
    %v1539 = vadd.f32 0.0, %v1538
    %v1540 = vpop.f32.mrb[0].mxu0
    %1541 = vmatprep.mubr.f32.mxu0 0.0
    %1542 = vmatmul.mubr.f32.gmra.mrb[0].mxu0 %v1460
    %v1543 = vpop.f32.mrb[0].mxu0
    %v1544 = vadd.f32 0.0, %v1543
    %v1545 = vpop.f32.mrb[0].mxu0
    %1546 = vdwg.mxu0
    %v1548 = vsel %vm778, %v1417, 0
    %v1551 = vsel %vm778, %v1418, 0
    %v1554 = vsel %vm778, %v1419, 0
    %v1557 = vsel %vm778, %v1420, 0
    %1559 = vmatprep.subr.mxu0 0.0
    %1560 = vmatpush1.msra.mxu0 %v1433
    %1561 = vmatprep.subr.mxu0 0.0
    %1562 = vmatpush1.msra.mxu0 %v1434
    %1563 = vmatprep.subr.mxu0 0.0
    %1564 = vmatpush1.msra.mxu0 %v1435
    %1565 = vmatprep.subr.mxu0 0.0
    %1566 = vmatpush1.msra.mxu0 %v1436
    %1567 = vmatprep.subr.mxu0 0.0
    %1568 = vmatpush1.msra.mxu0 %v1437
    %1569 = vmatprep.subr.mxu0 0.0
    %1570 = vmatpush1.msra.mxu0 %v1438
    %1571 = vmatprep.subr.mxu0 0.0
    %1572 = vmatpush1.msra.mxu0 %v1439
    %1573 = vmatprep.subr.mxu0 0.0
    %1574 = vmatpush1.msra.mxu0 %v1440
    %1575 = vmatprep.subr.mxu0 0.0
    %1576 = vmatpush1.msra.mxu0 0.0
    %1577 = vmatprep.subr.mxu0 0.0
    %1578 = vmatpush1.msra.mxu0 0.0
    %1579 = vmatprep.subr.mxu0 0.0
    %1580 = vmatpush1.msra.mxu0 0.0
    %1581 = vmatprep.subr.mxu0 0.0
    %1582 = vmatpush1.msra.mxu0 0.0
    %1583 = vmatprep.subr.mxu0 0.0
    %1584 = vmatpush1.msra.mxu0 0.0
    %1585 = vmatprep.subr.mxu0 0.0
    %1586 = vmatpush1.msra.mxu0 0.0
    %1587 = vmatprep.subr.mxu0 0.0
    %1588 = vmatpush1.msra.mxu0 0.0
    %1589 = vmatprep.subr.mxu0 0.0
    %1590 = vmatpush1.msra.mxu0 0.0
    %1591 = vmatprep.subr.mxu0 0.0
    %1592 = vmatpush1.msra.mxu0 0.0
    %1593 = vmatprep.subr.mxu0 0.0
    %1594 = vmatpush1.msra.mxu0 0.0
    %1595 = vmatprep.subr.mxu0 0.0
    %1596 = vmatpush1.msra.mxu0 0.0
    %1597 = vmatprep.subr.mxu0 0.0
    %1598 = vmatpush1.msra.mxu0 0.0
    %1599 = vmatprep.subr.mxu0 0.0
    %1600 = vmatpush1.msra.mxu0 0.0
    %1601 = vmatprep.subr.mxu0 0.0
    %1602 = vmatpush1.msra.mxu0 0.0
    %1603 = vmatprep.subr.mxu0 0.0
    %1604 = vmatpush1.msra.mxu0 0.0
    %1605 = vmatprep.subr.mxu0 0.0
    %1606 = vmatpush1.msra.mxu0 0.0
    %1607 = vmatprep.subr.mxu0 0.0
    %1608 = vmatpush1.msra.mxu0 0.0
    %1609 = vmatprep.subr.mxu0 0.0
    %1610 = vmatpush1.msra.mxu0 0.0
    %1611 = vmatprep.subr.mxu0 0.0
    %1612 = vmatpush1.msra.mxu0 0.0
    %1613 = vmatprep.subr.mxu0 0.0
    %1614 = vmatpush1.msra.mxu0 0.0
    %1615 = vmatprep.subr.mxu0 0.0
    %1616 = vmatpush1.msra.mxu0 0.0
    %1617 = vmatprep.subr.mxu0 0.0
    %1618 = vmatpush1.msra.mxu0 0.0
    %1619 = vmatprep.subr.mxu0 0.0
    %1620 = vmatpush1.msra.mxu0 0.0
    %1621 = vmatprep.subr.mxu0 0.0
    %1622 = vmatpush1.msra.mxu0 0.0
    %1623 = vmatprep.mubr.f32.mxu0 0.0
    %1624 = vmatmul.mubr.f32.gmra.mrb[0].mxu0 %v1548
    %v1625 = vpop.f32.mrb[0].mxu0
    %v1626 = vadd.f32 %v1529, %v1625
    %v1627 = vpop.f32.mrb[0].mxu0
    %1628 = vmatprep.mubr.f32.mxu0 0.0
    %1629 = vmatmul.mubr.f32.gmra.mrb[0].mxu0 %v1551
    %v1630 = vpop.f32.mrb[0].mxu0
    %v1631 = vadd.f32 %v1534, %v1630
    %v1632 = vpop.f32.mrb[0].mxu0
    %1633 = vmatprep.mubr.f32.mxu0 0.0
    %1634 = vmatmul.mubr.f32.gmra.mrb[0].mxu0 %v1554
    %v1635 = vpop.f32.mrb[0].mxu0
    %v1636 = vadd.f32 %v1539, %v1635
    %v1637 = vpop.f32.mrb[0].mxu0
    %1638 = vmatprep.mubr.f32.mxu0 0.0
    %1639 = vmatmul.mubr.f32.gmra.mrb[0].mxu0 %v1557
    %v1640 = vpop.f32.mrb[0].mxu0
    %v1641 = vadd.f32 %v1544, %v1640
    %v1642 = vpop.f32.mrb[0].mxu0
    %1643 = vdwg.mxu0
    %s1644 = scalar_lea.vmem %s5, 128
    %v1645 = vld [vmem:[%s1644] sm:$0xff]
    %v1646 = vld [vmem:[%s1644 + $0x8] sm:$0xff]
    %v1647 = vld [vmem:[%s1644 + $0x10] sm:$0xff]
    %v1648 = vld [vmem:[%s1644 + $0x18] sm:$0xff]
    %v1649 = vld [vmem:[%s1644 + $0x20] sm:$0xff]
    %v1650 = vld [vmem:[%s1644 + $0x28] sm:$0xff]
    %v1651 = vld [vmem:[%s1644 + $0x30] sm:$0xff]
    %v1652 = vld [vmem:[%s1644 + $0x38] sm:$0xff]
    %v1654 = vsel %vm778, %v1425, 0
    %v1657 = vsel %vm778, %v1426, 0
    %v1660 = vsel %vm778, %v1427, 0
    %v1663 = vsel %vm778, %v1428, 0
    %1665 = vmatprep.subr.mxu0 0.0
    %1666 = vmatpush1.msra.mxu0 %v1645
    %1667 = vmatprep.subr.mxu0 0.0
    %1668 = vmatpush1.msra.mxu0 %v1646
    %1669 = vmatprep.subr.mxu0 0.0
    %1670 = vmatpush1.msra.mxu0 %v1647
    %1671 = vmatprep.subr.mxu0 0.0
    %1672 = vmatpush1.msra.mxu0 %v1648
    %1673 = vmatprep.subr.mxu0 0.0
    %1674 = vmatpush1.msra.mxu0 %v1649
    %1675 = vmatprep.subr.mxu0 0.0
    %1676 = vmatpush1.msra.mxu0 %v1650
    %1677 = vmatprep.subr.mxu0 0.0
    %1678 = vmatpush1.msra.mxu0 %v1651
    %1679 = vmatprep.subr.mxu0 0.0
    %1680 = vmatpush1.msra.mxu0 %v1652
    %1681 = vmatprep.subr.mxu0 0.0
    %1682 = vmatpush1.msra.mxu0 0.0
    %1683 = vmatprep.subr.mxu0 0.0
    %1684 = vmatpush1.msra.mxu0 0.0
    %1685 = vmatprep.subr.mxu0 0.0
    %1686 = vmatpush1.msra.mxu0 0.0
    %1687 = vmatprep.subr.mxu0 0.0
    %1688 = vmatpush1.msra.mxu0 0.0
    %1689 = vmatprep.subr.mxu0 0.0
    %1690 = vmatpush1.msra.mxu0 0.0
    %1691 = vmatprep.subr.mxu0 0.0
    %1692 = vmatpush1.msra.mxu0 0.0
    %1693 = vmatprep.subr.mxu0 0.0
    %1694 = vmatpush1.msra.mxu0 0.0
    %1695 = vmatprep.subr.mxu0 0.0
    %1696 = vmatpush1.msra.mxu0 0.0
    %1697 = vmatprep.subr.mxu0 0.0
    %1698 = vmatpush1.msra.mxu0 0.0
    %1699 = vmatprep.subr.mxu0 0.0
    %1700 = vmatpush1.msra.mxu0 0.0
    %1701 = vmatprep.subr.mxu0 0.0
    %1702 = vmatpush1.msra.mxu0 0.0
    %1703 = vmatprep.subr.mxu0 0.0
    %1704 = vmatpush1.msra.mxu0 0.0
    %1705 = vmatprep.subr.mxu0 0.0
    %1706 = vmatpush1.msra.mxu0 0.0
    %1707 = vmatprep.subr.mxu0 0.0
    %1708 = vmatpush1.msra.mxu0 0.0
    %1709 = vmatprep.subr.mxu0 0.0
    %1710 = vmatpush1.msra.mxu0 0.0
    %1711 = vmatprep.subr.mxu0 0.0
    %1712 = vmatpush1.msra.mxu0 0.0
    %1713 = vmatprep.subr.mxu0 0.0
    %1714 = vmatpush1.msra.mxu0 0.0
    %1715 = vmatprep.subr.mxu0 0.0
    %1716 = vmatpush1.msra.mxu0 0.0
    %1717 = vmatprep.subr.mxu0 0.0
    %1718 = vmatpush1.msra.mxu0 0.0
    %1719 = vmatprep.subr.mxu0 0.0
    %1720 = vmatpush1.msra.mxu0 0.0
    %1721 = vmatprep.subr.mxu0 0.0
    %1722 = vmatpush1.msra.mxu0 0.0
    %1723 = vmatprep.subr.mxu0 0.0
    %1724 = vmatpush1.msra.mxu0 0.0
    %1725 = vmatprep.subr.mxu0 0.0
    %1726 = vmatpush1.msra.mxu0 0.0
    %1727 = vmatprep.subr.mxu0 0.0
    %1728 = vmatpush1.msra.mxu0 0.0
    %1729 = vmatprep.mubr.f32.mxu0 0.0
    %1730 = vmatmul.mubr.f32.gmra.mrb[0].mxu0 %v1654
    %v1731 = vpop.f32.mrb[0].mxu0
    %v1732 = vadd.f32 0.0, %v1731
    %v1733 = vpop.f32.mrb[0].mxu0
    %1734 = vmatprep.mubr.f32.mxu0 0.0
    %1735 = vmatmul.mubr.f32.gmra.mrb[0].mxu0 %v1657
    %v1736 = vpop.f32.mrb[0].mxu0
    %v1737 = vadd.f32 0.0, %v1736
    %v1738 = vpop.f32.mrb[0].mxu0
    %1739 = vmatprep.mubr.f32.mxu0 0.0
    %1740 = vmatmul.mubr.f32.gmra.mrb[0].mxu0 %v1660
    %v1741 = vpop.f32.mrb[0].mxu0
    %v1742 = vadd.f32 0.0, %v1741
    %v1743 = vpop.f32.mrb[0].mxu0
    %1744 = vmatprep.mubr.f32.mxu0 0.0
    %1745 = vmatmul.mubr.f32.gmra.mrb[0].mxu0 %v1663
    %v1746 = vpop.f32.mrb[0].mxu0
    %v1747 = vadd.f32 0.0, %v1746
    %v1748 = vpop.f32.mrb[0].mxu0
    %1749 = vdwg.mxu0
    %v1750 = vadd.f32 %v1626, %v1732
    %v1751 = vadd.f32 %v1631, %v1737
    %v1752 = vadd.f32 %v1636, %v1742
    %v1753 = vadd.f32 %v1641, %v1747
    %s1754 = scalar_lea.vmem %s5, 192
    %v1755 = vld [vmem:[%s1754] sm:$0xff]
    %v1756 = vld [vmem:[%s1754 + $0x8] sm:$0xff]
    %v1757 = vld [vmem:[%s1754 + $0x10] sm:$0xff]
    %v1758 = vld [vmem:[%s1754 + $0x18] sm:$0xff]
    %v1759 = vld [vmem:[%s1754 + $0x20] sm:$0xff]
    %v1760 = vld [vmem:[%s1754 + $0x28] sm:$0xff]
    %v1761 = vld [vmem:[%s1754 + $0x30] sm:$0xff]
    %v1762 = vld [vmem:[%s1754 + $0x38] sm:$0xff]
    %v1764 = vsel %vm778, %v1429, 0
    %v1767 = vsel %vm778, %v1430, 0
    %v1770 = vsel %vm778, %v1431, 0
    %v1773 = vsel %vm778, %v1432, 0
    %1775 = vmatprep.subr.mxu0 0.0
    %1776 = vmatpush1.msra.mxu0 %v1755
    %1777 = vmatprep.subr.mxu0 0.0
    %1778 = vmatpush1.msra.mxu0 %v1756
    %1779 = vmatprep.subr.mxu0 0.0
    %1780 = vmatpush1.msra.mxu0 %v1757
    %1781 = vmatprep.subr.mxu0 0.0
    %1782 = vmatpush1.msra.mxu0 %v1758
    %1783 = vmatprep.subr.mxu0 0.0
    %1784 = vmatpush1.msra.mxu0 %v1759
    %1785 = vmatprep.subr.mxu0 0.0
    %1786 = vmatpush1.msra.mxu0 %v1760
    %1787 = vmatprep.subr.mxu0 0.0
    %1788 = vmatpush1.msra.mxu0 %v1761
    %1789 = vmatprep.subr.mxu0 0.0
    %1790 = vmatpush1.msra.mxu0 %v1762
    %1791 = vmatprep.subr.mxu0 0.0
    %1792 = vmatpush1.msra.mxu0 0.0
    %1793 = vmatprep.subr.mxu0 0.0
    %1794 = vmatpush1.msra.mxu0 0.0
    %1795 = vmatprep.subr.mxu0 0.0
    %1796 = vmatpush1.msra.mxu0 0.0
    %1797 = vmatprep.subr.mxu0 0.0
    %1798 = vmatpush1.msra.mxu0 0.0
    %1799 = vmatprep.subr.mxu0 0.0
    %1800 = vmatpush1.msra.mxu0 0.0
    %1801 = vmatprep.subr.mxu0 0.0
    %1802 = vmatpush1.msra.mxu0 0.0
    %1803 = vmatprep.subr.mxu0 0.0
    %1804 = vmatpush1.msra.mxu0 0.0
    %1805 = vmatprep.subr.mxu0 0.0
    %1806 = vmatpush1.msra.mxu0 0.0
    %1807 = vmatprep.subr.mxu0 0.0
    %1808 = vmatpush1.msra.mxu0 0.0
    %1809 = vmatprep.subr.mxu0 0.0
    %1810 = vmatpush1.msra.mxu0 0.0
    %1811 = vmatprep.subr.mxu0 0.0
    %1812 = vmatpush1.msra.mxu0 0.0
    %1813 = vmatprep.subr.mxu0 0.0
    %1814 = vmatpush1.msra.mxu0 0.0
    %1815 = vmatprep.subr.mxu0 0.0
    %1816 = vmatpush1.msra.mxu0 0.0
    %1817 = vmatprep.subr.mxu0 0.0
    %1818 = vmatpush1.msra.mxu0 0.0
    %1819 = vmatprep.subr.mxu0 0.0
    %1820 = vmatpush1.msra.mxu0 0.0
    %1821 = vmatprep.subr.mxu0 0.0
    %1822 = vmatpush1.msra.mxu0 0.0
    %1823 = vmatprep.subr.mxu0 0.0
    %1824 = vmatpush1.msra.mxu0 0.0
    %1825 = vmatprep.subr.mxu0 0.0
    %1826 = vmatpush1.msra.mxu0 0.0
    %1827 = vmatprep.subr.mxu0 0.0
    %1828 = vmatpush1.msra.mxu0 0.0
    %1829 = vmatprep.subr.mxu0 0.0
    %1830 = vmatpush1.msra.mxu0 0.0
    %1831 = vmatprep.subr.mxu0 0.0
    %1832 = vmatpush1.msra.mxu0 0.0
    %1833 = vmatprep.subr.mxu0 0.0
    %1834 = vmatpush1.msra.mxu0 0.0
    %1835 = vmatprep.subr.mxu0 0.0
    %1836 = vmatpush1.msra.mxu0 0.0
    %1837 = vmatprep.subr.mxu0 0.0
    %1838 = vmatpush1.msra.mxu0 0.0
    %1839 = vmatprep.mubr.f32.mxu0 0.0
    %1840 = vmatmul.mubr.f32.gmra.mrb[0].mxu0 %v1764
    %v1841 = vpop.f32.mrb[0].mxu0
    %v1842 = vadd.f32 0.0, %v1841
    %v1843 = vpop.f32.mrb[0].mxu0
    %1844 = vmatprep.mubr.f32.mxu0 0.0
    %1845 = vmatmul.mubr.f32.gmra.mrb[0].mxu0 %v1767
    %v1846 = vpop.f32.mrb[0].mxu0
    %v1847 = vadd.f32 0.0, %v1846
    %v1848 = vpop.f32.mrb[0].mxu0
    %1849 = vmatprep.mubr.f32.mxu0 0.0
    %1850 = vmatmul.mubr.f32.gmra.mrb[0].mxu0 %v1770
    %v1851 = vpop.f32.mrb[0].mxu0
    %v1852 = vadd.f32 0.0, %v1851
    %v1853 = vpop.f32.mrb[0].mxu0
    %1854 = vmatprep.mubr.f32.mxu0 0.0
    %1855 = vmatmul.mubr.f32.gmra.mrb[0].mxu0 %v1773
    %v1856 = vpop.f32.mrb[0].mxu0
    %v1857 = vadd.f32 0.0, %v1856
    %v1858 = vpop.f32.mrb[0].mxu0
    %1859 = vdwg.mxu0
    %v1860 = vadd.f32 %v1750, %v1842
    %v1861 = vadd.f32 %v1751, %v1847
    %v1862 = vadd.f32 %v1752, %v1852
    %v1863 = vadd.f32 %v1753, %v1857
    %v1864 = vld [vmem:[%s6] sm:$0x1]
    %v1866 = vlaneseq
    %v1867 = vshrl.u32 %v1866, 7
    %v1868 = vsub.s32 0, %v1867
    %v1869 = vrot.slane %v1864, %v1868
    %v1871 = vadd.f32 %v1860, %v1869
    %v1872 = vadd.f32 %v1861, %v1869
    %v1873 = vadd.f32 %v1862, %v1869
    %v1874 = vadd.f32 %v1863, %v1869
    %v1875 = vmax.f32 %v1871, 0.0
    %v1876 = vmax.f32 %v1872, 0.0
    %v1877 = vmax.f32 %v1873, 0.0
    %v1878 = vmax.f32 %v1874, 0.0
    %v1879 = vld [vmem:[%s7] sm:$0x1]
    %v1880 = vld [vmem:[%s8] sm:$0x1]
    %v1881 = vadd.f32 %v1875, %v1876
    %v1882 = vadd.f32 %v1881, %v1877
    %v1883 = vadd.f32 %v1882, %v1878
    %v1884 = vrot.slane %v1883, 4
    %v1885 = vadd.f32 %v1883, %v1884
    %v1886 = vrot.slane %v1885, 2
    %v1887 = vadd.f32 %v1885, %v1886
    %v1888 = vrot.slane %v1887, 1
    %v1889 = vadd.f32 %v1887, %v1888
    %v1890 = vrcp.pop 32.0
    %v1891 = vmul.f32 %v1889, %v1890
    %v1892 = vmul.f32 %v1875, %v1875
    %v1893 = vmul.f32 %v1876, %v1876
    %v1894 = vmul.f32 %v1877, %v1877
    %v1895 = vmul.f32 %v1878, %v1878
    %v1896 = vadd.f32 %v1892, %v1893
    %v1897 = vadd.f32 %v1896, %v1894
    %v1898 = vadd.f32 %v1897, %v1895
    %v1899 = vrot.slane %v1898, 4
    %v1900 = vadd.f32 %v1898, %v1899
    %v1901 = vrot.slane %v1900, 2
    %v1902 = vadd.f32 %v1900, %v1901
    %v1903 = vrot.slane %v1902, 1
    %v1904 = vadd.f32 %v1902, %v1903
    %v1905 = vmul.f32 %v1904, %v1890
    %v1906 = vmul.f32 %v1891, %v1891
    %v1907 = vsub.f32 %v1905, %v1906
    %v1908 = vmax.f32 %v1907, 0.0
    %v1909 = vsub.f32 %v1875, %v1891
    %v1910 = vsub.f32 %v1876, %v1891
    %v1911 = vsub.f32 %v1877, %v1891
    %v1912 = vsub.f32 %v1878, %v1891
    %v1913 = vadd.f32 %v1908, 1e-05
    %v1914 = vrsqrt.pop %v1913
    %v1915 = vmul.f32 %v1909, %v1914
    %v1916 = vmul.f32 %v1910, %v1914
    %v1917 = vmul.f32 %v1911, %v1914
    %v1918 = vmul.f32 %v1912, %v1914
    %v1920 = vlaneseq
    %v1921 = vshrl.u32 %v1920, 7
    %v1922 = vsub.s32 0, %v1921
    %v1923 = vrot.slane %v1879, %v1922
    %v1925 = vmul.f32 %v1915, %v1923
    %v1926 = vmul.f32 %v1916, %v1923
    %v1927 = vmul.f32 %v1917, %v1923
    %v1928 = vmul.f32 %v1918, %v1923
    %v1930 = vlaneseq
    %v1931 = vshrl.u32 %v1930, 7
    %v1932 = vsub.s32 0, %v1931
    %v1933 = vrot.slane %v1880, %v1932
    %v1935 = vadd.f32 %v1925, %v1933
    %v1936 = vadd.f32 %v1926, %v1933
    %v1937 = vadd.f32 %v1927, %v1933
    %v1938 = vadd.f32 %v1928, %v1933
    %v1939 = vmax.f32 %v1935, %v1936
    %v1940 = vmax.f32 %v1937, %v1938
    %v1941 = vmax.f32 %v1939, %v1940
    %v1942 = vlaneseq
    %v1943 = vand.u32 %v1942, 127
    %v1944 = vlaneseq
    %v1945 = vshrl.u32 %v1944, 7
    %vm1946 = vcmp.eq.s32.totalorder %v1943, %v1945
    %v1947 = vsel %vm1946, 1, 0
    %v1948 = vcvt.s32.f32 %v1947
    %vm1949 = vcmask 64512
    %v1951 = vsel %vm1949, %v1948, 0
    %1953 = vmatprep.subr.mxu0 0.0
    %1954 = vmatpush1.msra.mxu0 %v1941
    %1955 = vmatprep.subr.mxu0 0.0
    %1956 = vmatpush1.msra.mxu0 0.0
    %1957 = vmatprep.subr.mxu0 0.0
    %1958 = vmatpush1.msra.mxu0 0.0
    %1959 = vmatprep.subr.mxu0 0.0
    %1960 = vmatpush1.msra.mxu0 0.0
    %1961 = vmatprep.subr.mxu0 0.0
    %1962 = vmatpush1.msra.mxu0 0.0
    %1963 = vmatprep.subr.mxu0 0.0
    %1964 = vmatpush1.msra.mxu0 0.0
    %1965 = vmatprep.subr.mxu0 0.0
    %1966 = vmatpush1.msra.mxu0 0.0
    %1967 = vmatprep.subr.mxu0 0.0
    %1968 = vmatpush1.msra.mxu0 0.0
    %1969 = vmatprep.subr.mxu0 0.0
    %1970 = vmatpush1.msra.mxu0 0.0
    %1971 = vmatprep.subr.mxu0 0.0
    %1972 = vmatpush1.msra.mxu0 0.0
    %1973 = vmatprep.subr.mxu0 0.0
    %1974 = vmatpush1.msra.mxu0 0.0
    %1975 = vmatprep.subr.mxu0 0.0
    %1976 = vmatpush1.msra.mxu0 0.0
    %1977 = vmatprep.subr.mxu0 0.0
    %1978 = vmatpush1.msra.mxu0 0.0
    %1979 = vmatprep.subr.mxu0 0.0
    %1980 = vmatpush1.msra.mxu0 0.0
    %1981 = vmatprep.subr.mxu0 0.0
    %1982 = vmatpush1.msra.mxu0 0.0
    %1983 = vmatprep.subr.mxu0 0.0
    %1984 = vmatpush1.msra.mxu0 0.0
    %1985 = vmatprep.subr.mxu0 0.0
    %1986 = vmatpush1.msra.mxu0 0.0
    %1987 = vmatprep.subr.mxu0 0.0
    %1988 = vmatpush1.msra.mxu0 0.0
    %1989 = vmatprep.subr.mxu0 0.0
    %1990 = vmatpush1.msra.mxu0 0.0
    %1991 = vmatprep.subr.mxu0 0.0
    %1992 = vmatpush1.msra.mxu0 0.0
    %1993 = vmatprep.subr.mxu0 0.0
    %1994 = vmatpush1.msra.mxu0 0.0
    %1995 = vmatprep.subr.mxu0 0.0
    %1996 = vmatpush1.msra.mxu0 0.0
    %1997 = vmatprep.subr.mxu0 0.0
    %1998 = vmatpush1.msra.mxu0 0.0
    %1999 = vmatprep.subr.mxu0 0.0
    %2000 = vmatpush1.msra.mxu0 0.0
    %2001 = vmatprep.subr.mxu0 0.0
    %2002 = vmatpush1.msra.mxu0 0.0
    %2003 = vmatprep.subr.mxu0 0.0
    %2004 = vmatpush1.msra.mxu0 0.0
    %2005 = vmatprep.subr.mxu0 0.0
    %2006 = vmatpush1.msra.mxu0 0.0
    %2007 = vmatprep.subr.mxu0 0.0
    %2008 = vmatpush1.msra.mxu0 0.0
    %2009 = vmatprep.subr.mxu0 0.0
    %2010 = vmatpush1.msra.mxu0 0.0
    %2011 = vmatprep.subr.mxu0 0.0
    %2012 = vmatpush1.msra.mxu0 0.0
    %2013 = vmatprep.subr.mxu0 0.0
    %2014 = vmatpush1.msra.mxu0 0.0
    %2015 = vmatprep.subr.mxu0 0.0
    %2016 = vmatpush1.msra.mxu0 0.0
    %2017 = vmatprep.mubr.f32.mxu0 0.0
    %2018 = vmatmul.mubr.f32.gmra.mrb[0].mxu0 %v1951
    %v2019 = vpop.f32.mrb[0].mxu0
    %v2020 = vadd.f32 0.0, %v2019
    %v2021 = vpop.f32.mrb[0].mxu0
    %2022 = vdwg.mxu0
    %v2023 = vld [vmem:[%s9] sm:$0xff]
    %v2024 = vld [vmem:[%s9 + $0x8] sm:$0xff]
    %v2025 = vld [vmem:[%s9 + $0x10] sm:$0xff]
    %v2026 = vld [vmem:[%s9 + $0x18] sm:$0xff]
    %v2027 = vld [vmem:[%s9 + $0x20] sm:$0xff]
    %v2028 = vld [vmem:[%s9 + $0x28] sm:$0xff]
    %v2029 = vld [vmem:[%s9 + $0x30] sm:$0xff]
    %v2030 = vld [vmem:[%s9 + $0x38] sm:$0xff]
    %v2031 = vld [vmem:[%s9 + $0x40] sm:$0xff]
    %v2032 = vld [vmem:[%s9 + $0x48] sm:$0xff]
    %v2033 = vld [vmem:[%s9 + $0x50] sm:$0xff]
    %v2034 = vld [vmem:[%s9 + $0x58] sm:$0xff]
    %v2035 = vld [vmem:[%s9 + $0x60] sm:$0xff]
    %v2036 = vld [vmem:[%s9 + $0x68] sm:$0xff]
    %v2037 = vld [vmem:[%s9 + $0x70] sm:$0xff]
    %v2038 = vld [vmem:[%s9 + $0x78] sm:$0xff]
    %v2039 = vld [vmem:[%s9 + $0x80] sm:$0xff]
    %v2040 = vld [vmem:[%s9 + $0x88] sm:$0xff]
    %v2041 = vld [vmem:[%s9 + $0x90] sm:$0xff]
    %v2042 = vld [vmem:[%s9 + $0x98] sm:$0xff]
    %v2043 = vld [vmem:[%s9 + $0xa0] sm:$0xff]
    %v2044 = vld [vmem:[%s9 + $0xa8] sm:$0xff]
    %v2045 = vld [vmem:[%s9 + $0xb0] sm:$0xff]
    %v2046 = vld [vmem:[%s9 + $0xb8] sm:$0xff]
    %v2047 = vld [vmem:[%s9 + $0xc0] sm:$0xff]
    %v2048 = vld [vmem:[%s9 + $0xc8] sm:$0xff]
    %v2049 = vld [vmem:[%s9 + $0xd0] sm:$0xff]
    %v2050 = vld [vmem:[%s9 + $0xd8] sm:$0xff]
    %v2051 = vld [vmem:[%s9 + $0xe0] sm:$0xff]
    %v2052 = vld [vmem:[%s9 + $0xe8] sm:$0xff]
    %v2053 = vld [vmem:[%s9 + $0xf0] sm:$0xff]
    %v2054 = vld [vmem:[%s9 + $0xf8] sm:$0xff]
    %v2055 = vadd.s32 %v1945, 2
    %vm2056 = vcmp.eq.s32.totalorder %v1943, %v2055
    %v2057 = vsel %vm2056, 1, 0
    %v2058 = vcvt.s32.f32 %v2057
    %v2060 = vsel %vm1949, %v2058, 0
    %2062 = vmatprep.subr.mxu0 0.0
    %2063 = vmatpush1.msra.mxu0 %v1941
    %2064 = vmatprep.subr.mxu0 0.0
    %2065 = vmatpush1.msra.mxu0 0.0
    %2066 = vmatprep.subr.mxu0 0.0
    %2067 = vmatpush1.msra.mxu0 0.0
    %2068 = vmatprep.subr.mxu0 0.0
    %2069 = vmatpush1.msra.mxu0 0.0
    %2070 = vmatprep.subr.mxu0 0.0
    %2071 = vmatpush1.msra.mxu0 0.0
    %2072 = vmatprep.subr.mxu0 0.0
    %2073 = vmatpush1.msra.mxu0 0.0
    %2074 = vmatprep.subr.mxu0 0.0
    %2075 = vmatpush1.msra.mxu0 0.0
    %2076 = vmatprep.subr.mxu0 0.0
    %2077 = vmatpush1.msra.mxu0 0.0
    %2078 = vmatprep.subr.mxu0 0.0
    %2079 = vmatpush1.msra.mxu0 0.0
    %2080 = vmatprep.subr.mxu0 0.0
    %2081 = vmatpush1.msra.mxu0 0.0
    %2082 = vmatprep.subr.mxu0 0.0
    %2083 = vmatpush1.msra.mxu0 0.0
    %2084 = vmatprep.subr.mxu0 0.0
    %2085 = vmatpush1.msra.mxu0 0.0
    %2086 = vmatprep.subr.mxu0 0.0
    %2087 = vmatpush1.msra.mxu0 0.0
    %2088 = vmatprep.subr.mxu0 0.0
    %2089 = vmatpush1.msra.mxu0 0.0
    %2090 = vmatprep.subr.mxu0 0.0
    %2091 = vmatpush1.msra.mxu0 0.0
    %2092 = vmatprep.subr.mxu0 0.0
    %2093 = vmatpush1.msra.mxu0 0.0
    %2094 = vmatprep.subr.mxu0 0.0
    %2095 = vmatpush1.msra.mxu0 0.0
    %2096 = vmatprep.subr.mxu0 0.0
    %2097 = vmatpush1.msra.mxu0 0.0
    %2098 = vmatprep.subr.mxu0 0.0
    %2099 = vmatpush1.msra.mxu0 0.0
    %2100 = vmatprep.subr.mxu0 0.0
    %2101 = vmatpush1.msra.mxu0 0.0
    %2102 = vmatprep.subr.mxu0 0.0
    %2103 = vmatpush1.msra.mxu0 0.0
    %2104 = vmatprep.subr.mxu0 0.0
    %2105 = vmatpush1.msra.mxu0 0.0
    %2106 = vmatprep.subr.mxu0 0.0
    %2107 = vmatpush1.msra.mxu0 0.0
    %2108 = vmatprep.subr.mxu0 0.0
    %2109 = vmatpush1.msra.mxu0 0.0
    %2110 = vmatprep.subr.mxu0 0.0
    %2111 = vmatpush1.msra.mxu0 0.0
    %2112 = vmatprep.subr.mxu0 0.0
    %2113 = vmatpush1.msra.mxu0 0.0
    %2114 = vmatprep.subr.mxu0 0.0
    %2115 = vmatpush1.msra.mxu0 0.0
    %2116 = vmatprep.subr.mxu0 0.0
    %2117 = vmatpush1.msra.mxu0 0.0
    %2118 = vmatprep.subr.mxu0 0.0
    %2119 = vmatpush1.msra.mxu0 0.0
    %2120 = vmatprep.subr.mxu0 0.0
    %2121 = vmatpush1.msra.mxu0 0.0
    %2122 = vmatprep.subr.mxu0 0.0
    %2123 = vmatpush1.msra.mxu0 0.0
    %2124 = vmatprep.subr.mxu0 0.0
    %2125 = vmatpush1.msra.mxu0 0.0
    %2126 = vmatprep.mubr.f32.mxu0 0.0
    %2127 = vmatmul.mubr.f32.gmra.mrb[0].mxu0 %v2060
    %v2128 = vpop.f32.mrb[0].mxu0
    %v2129 = vadd.f32 0.0, %v2128
    %v2130 = vpop.f32.mrb[0].mxu0
    %2131 = vdwg.mxu0
    %s2132 = scalar_lea.vmem %s9, 256
    %v2133 = vld [vmem:[%s2132] sm:$0xff]
    %v2134 = vld [vmem:[%s2132 + $0x8] sm:$0xff]
    %v2135 = vld [vmem:[%s2132 + $0x10] sm:$0xff]
    %v2136 = vld [vmem:[%s2132 + $0x18] sm:$0xff]
    %v2137 = vld [vmem:[%s2132 + $0x20] sm:$0xff]
    %v2138 = vld [vmem:[%s2132 + $0x28] sm:$0xff]
    %v2139 = vld [vmem:[%s2132 + $0x30] sm:$0xff]
    %v2140 = vld [vmem:[%s2132 + $0x38] sm:$0xff]
    %v2141 = vld [vmem:[%s2132 + $0x40] sm:$0xff]
    %v2142 = vld [vmem:[%s2132 + $0x48] sm:$0xff]
    %v2143 = vld [vmem:[%s2132 + $0x50] sm:$0xff]
    %v2144 = vld [vmem:[%s2132 + $0x58] sm:$0xff]
    %v2145 = vld [vmem:[%s2132 + $0x60] sm:$0xff]
    %v2146 = vld [vmem:[%s2132 + $0x68] sm:$0xff]
    %v2147 = vld [vmem:[%s2132 + $0x70] sm:$0xff]
    %v2148 = vld [vmem:[%s2132 + $0x78] sm:$0xff]
    %v2149 = vld [vmem:[%s2132 + $0x80] sm:$0xff]
    %v2150 = vld [vmem:[%s2132 + $0x88] sm:$0xff]
    %v2151 = vld [vmem:[%s2132 + $0x90] sm:$0xff]
    %v2152 = vld [vmem:[%s2132 + $0x98] sm:$0xff]
    %v2153 = vld [vmem:[%s2132 + $0xa0] sm:$0xff]
    %v2154 = vld [vmem:[%s2132 + $0xa8] sm:$0xff]
    %v2155 = vld [vmem:[%s2132 + $0xb0] sm:$0xff]
    %v2156 = vld [vmem:[%s2132 + $0xb8] sm:$0xff]
    %v2157 = vld [vmem:[%s2132 + $0xc0] sm:$0xff]
    %v2158 = vld [vmem:[%s2132 + $0xc8] sm:$0xff]
    %v2159 = vld [vmem:[%s2132 + $0xd0] sm:$0xff]
    %v2160 = vld [vmem:[%s2132 + $0xd8] sm:$0xff]
    %v2161 = vld [vmem:[%s2132 + $0xe0] sm:$0xff]
    %v2162 = vld [vmem:[%s2132 + $0xe8] sm:$0xff]
    %v2163 = vld [vmem:[%s2132 + $0xf0] sm:$0xff]
    %v2164 = vld [vmem:[%s2132 + $0xf8] sm:$0xff]
    %2165 = vmatprep.subr.mxu0 %v2134
    %2166 = vmatpush1.msra.mxu0 %v2133
    %2167 = vmatprep.subr.mxu0 %v2136
    %2168 = vmatpush1.msra.mxu0 %v2135
    %2169 = vmatprep.subr.mxu0 %v2138
    %2170 = vmatpush1.msra.mxu0 %v2137
    %2171 = vmatprep.subr.mxu0 %v2140
    %2172 = vmatpush1.msra.mxu0 %v2139
    %2173 = vmatprep.subr.mxu0 %v2142
    %2174 = vmatpush1.msra.mxu0 %v2141
    %2175 = vmatprep.subr.mxu0 %v2144
    %2176 = vmatpush1.msra.mxu0 %v2143
    %2177 = vmatprep.subr.mxu0 %v2146
    %2178 = vmatpush1.msra.mxu0 %v2145
    %2179 = vmatprep.subr.mxu0 %v2148
    %2180 = vmatpush1.msra.mxu0 %v2147
    %2181 = vmatprep.subr.mxu0 %v2150
    %2182 = vmatpush1.msra.mxu0 %v2149
    %2183 = vmatprep.subr.mxu0 %v2152
    %2184 = vmatpush1.msra.mxu0 %v2151
    %2185 = vmatprep.subr.mxu0 %v2154
    %2186 = vmatpush1.msra.mxu0 %v2153
    %2187 = vmatprep.subr.mxu0 %v2156
    %2188 = vmatpush1.msra.mxu0 %v2155
    %2189 = vmatprep.subr.mxu0 %v2158
    %2190 = vmatpush1.msra.mxu0 %v2157
    %2191 = vmatprep.subr.mxu0 %v2160
    %2192 = vmatpush1.msra.mxu0 %v2159
    %2193 = vmatprep.subr.mxu0 %v2162
    %2194 = vmatpush1.msra.mxu0 %v2161
    %2195 = vmatprep.subr.mxu0 %v2164
    %2196 = vmatpush1.msra.mxu0 %v2163
    %2197 = vmatprep.subr.mxu0 0.0
    %2198 = vmatpush1.msra.mxu0 0.0
    %2199 = vmatprep.subr.mxu0 0.0
    %2200 = vmatpush1.msra.mxu0 0.0
    %2201 = vmatprep.subr.mxu0 0.0
    %2202 = vmatpush1.msra.mxu0 0.0
    %2203 = vmatprep.subr.mxu0 0.0
    %2204 = vmatpush1.msra.mxu0 0.0
    %2205 = vmatprep.subr.mxu0 0.0
    %2206 = vmatpush1.msra.mxu0 0.0
    %2207 = vmatprep.subr.mxu0 0.0
    %2208 = vmatpush1.msra.mxu0 0.0
    %2209 = vmatprep.subr.mxu0 0.0
    %2210 = vmatpush1.msra.mxu0 0.0
    %2211 = vmatprep.subr.mxu0 0.0
    %2212 = vmatpush1.msra.mxu0 0.0
    %2213 = vmatprep.subr.mxu0 0.0
    %2214 = vmatpush1.msra.mxu0 0.0
    %2215 = vmatprep.subr.mxu0 0.0
    %2216 = vmatpush1.msra.mxu0 0.0
    %2217 = vmatprep.subr.mxu0 0.0
    %2218 = vmatpush1.msra.mxu0 0.0
    %2219 = vmatprep.subr.mxu0 0.0
    %2220 = vmatpush1.msra.mxu0 0.0
    %2221 = vmatprep.subr.mxu0 0.0
    %2222 = vmatpush1.msra.mxu0 0.0
    %2223 = vmatprep.subr.mxu0 0.0
    %2224 = vmatpush1.msra.mxu0 0.0
    %2225 = vmatprep.subr.mxu0 0.0
    %2226 = vmatpush1.msra.mxu0 0.0
    %2227 = vmatprep.subr.mxu0 0.0
    %2228 = vmatpush1.msra.mxu0 0.0
    %2229 = vmatprep.mubr.f32.mxu0 0.0
    %2230 = vmatmul.mubr.f32.gmra.mrb[0].mxu0 %v2129
    %v2231 = vpop.f32.mrb[0].mxu0
    %v2232 = vadd.f32 0.0, %v2231
    %v2233 = vpop.f32.mrb[0].mxu0
    %v2234 = vadd.f32 0.0, %v2233
    %2235 = vdwg.mxu0
    %2236 = vmatprep.subr.mxu0 %v2024
    %2237 = vmatpush1.msra.mxu0 %v2023
    %2238 = vmatprep.subr.mxu0 %v2026
    %2239 = vmatpush1.msra.mxu0 %v2025
    %2240 = vmatprep.subr.mxu0 %v2028
    %2241 = vmatpush1.msra.mxu0 %v2027
    %2242 = vmatprep.subr.mxu0 %v2030
    %2243 = vmatpush1.msra.mxu0 %v2029
    %2244 = vmatprep.subr.mxu0 %v2032
    %2245 = vmatpush1.msra.mxu0 %v2031
    %2246 = vmatprep.subr.mxu0 %v2034
    %2247 = vmatpush1.msra.mxu0 %v2033
    %2248 = vmatprep.subr.mxu0 %v2036
    %2249 = vmatpush1.msra.mxu0 %v2035
    %2250 = vmatprep.subr.mxu0 %v2038
    %2251 = vmatpush1.msra.mxu0 %v2037
    %2252 = vmatprep.subr.mxu0 %v2040
    %2253 = vmatpush1.msra.mxu0 %v2039
    %2254 = vmatprep.subr.mxu0 %v2042
    %2255 = vmatpush1.msra.mxu0 %v2041
    %2256 = vmatprep.subr.mxu0 %v2044
    %2257 = vmatpush1.msra.mxu0 %v2043
    %2258 = vmatprep.subr.mxu0 %v2046
    %2259 = vmatpush1.msra.mxu0 %v2045
    %2260 = vmatprep.subr.mxu0 %v2048
    %2261 = vmatpush1.msra.mxu0 %v2047
    %2262 = vmatprep.subr.mxu0 %v2050
    %2263 = vmatpush1.msra.mxu0 %v2049
    %2264 = vmatprep.subr.mxu0 %v2052
    %2265 = vmatpush1.msra.mxu0 %v2051
    %2266 = vmatprep.subr.mxu0 %v2054
    %2267 = vmatpush1.msra.mxu0 %v2053
    %2268 = vmatprep.subr.mxu0 0.0
    %2269 = vmatpush1.msra.mxu0 0.0
    %2270 = vmatprep.subr.mxu0 0.0
    %2271 = vmatpush1.msra.mxu0 0.0
    %2272 = vmatprep.subr.mxu0 0.0
    %2273 = vmatpush1.msra.mxu0 0.0
    %2274 = vmatprep.subr.mxu0 0.0
    %2275 = vmatpush1.msra.mxu0 0.0
    %2276 = vmatprep.subr.mxu0 0.0
    %2277 = vmatpush1.msra.mxu0 0.0
    %2278 = vmatprep.subr.mxu0 0.0
    %2279 = vmatpush1.msra.mxu0 0.0
    %2280 = vmatprep.subr.mxu0 0.0
    %2281 = vmatpush1.msra.mxu0 0.0
    %2282 = vmatprep.subr.mxu0 0.0
    %2283 = vmatpush1.msra.mxu0 0.0
    %2284 = vmatprep.subr.mxu0 0.0
    %2285 = vmatpush1.msra.mxu0 0.0
    %2286 = vmatprep.subr.mxu0 0.0
    %2287 = vmatpush1.msra.mxu0 0.0
    %2288 = vmatprep.subr.mxu0 0.0
    %2289 = vmatpush1.msra.mxu0 0.0
    %2290 = vmatprep.subr.mxu0 0.0
    %2291 = vmatpush1.msra.mxu0 0.0
    %2292 = vmatprep.subr.mxu0 0.0
    %2293 = vmatpush1.msra.mxu0 0.0
    %2294 = vmatprep.subr.mxu0 0.0
    %2295 = vmatpush1.msra.mxu0 0.0
    %2296 = vmatprep.subr.mxu0 0.0
    %2297 = vmatpush1.msra.mxu0 0.0
    %2298 = vmatprep.subr.mxu0 0.0
    %2299 = vmatpush1.msra.mxu0 0.0
    %2300 = vmatprep.mubr.f32.mxu0 0.0
    %2301 = vmatmul.mubr.f32.gmra.mrb[0].mxu0 %v2020
    %v2302 = vpop.f32.mrb[0].mxu0
    %v2303 = vadd.f32 %v2232, %v2302
    %v2304 = vpop.f32.mrb[0].mxu0
    %v2305 = vadd.f32 %v2234, %v2304
    %2306 = vdwg.mxu0
    %v2307 = vadd.s32 %v1945, 4
    %vm2308 = vcmp.eq.s32.totalorder %v1943, %v2307
    %v2309 = vsel %vm2308, 1, 0
    %v2310 = vcvt.s32.f32 %v2309
    %v2312 = vsel %vm1949, %v2310, 0
    %2314 = vmatprep.subr.mxu0 0.0
    %2315 = vmatpush1.msra.mxu0 %v1941
    %2316 = vmatprep.subr.mxu0 0.0
    %2317 = vmatpush1.msra.mxu0 0.0
    %2318 = vmatprep.subr.mxu0 0.0
    %2319 = vmatpush1.msra.mxu0 0.0
    %2320 = vmatprep.subr.mxu0 0.0
    %2321 = vmatpush1.msra.mxu0 0.0
    %2322 = vmatprep.subr.mxu0 0.0
    %2323 = vmatpush1.msra.mxu0 0.0
    %2324 = vmatprep.subr.mxu0 0.0
    %2325 = vmatpush1.msra.mxu0 0.0
    %2326 = vmatprep.subr.mxu0 0.0
    %2327 = vmatpush1.msra.mxu0 0.0
    %2328 = vmatprep.subr.mxu0 0.0
    %2329 = vmatpush1.msra.mxu0 0.0
    %2330 = vmatprep.subr.mxu0 0.0
    %2331 = vmatpush1.msra.mxu0 0.0
    %2332 = vmatprep.subr.mxu0 0.0
    %2333 = vmatpush1.msra.mxu0 0.0
    %2334 = vmatprep.subr.mxu0 0.0
    %2335 = vmatpush1.msra.mxu0 0.0
    %2336 = vmatprep.subr.mxu0 0.0
    %2337 = vmatpush1.msra.mxu0 0.0
    %2338 = vmatprep.subr.mxu0 0.0
    %2339 = vmatpush1.msra.mxu0 0.0
    %2340 = vmatprep.subr.mxu0 0.0
    %2341 = vmatpush1.msra.mxu0 0.0
    %2342 = vmatprep.subr.mxu0 0.0
    %2343 = vmatpush1.msra.mxu0 0.0
    %2344 = vmatprep.subr.mxu0 0.0
    %2345 = vmatpush1.msra.mxu0 0.0
    %2346 = vmatprep.subr.mxu0 0.0
    %2347 = vmatpush1.msra.mxu0 0.0
    %2348 = vmatprep.subr.mxu0 0.0
    %2349 = vmatpush1.msra.mxu0 0.0
    %2350 = vmatprep.subr.mxu0 0.0
    %2351 = vmatpush1.msra.mxu0 0.0
    %2352 = vmatprep.subr.mxu0 0.0
    %2353 = vmatpush1.msra.mxu0 0.0
    %2354 = vmatprep.subr.mxu0 0.0
    %2355 = vmatpush1.msra.mxu0 0.0
    %2356 = vmatprep.subr.mxu0 0.0
    %2357 = vmatpush1.msra.mxu0 0.0
    %2358 = vmatprep.subr.mxu0 0.0
    %2359 = vmatpush1.msra.mxu0 0.0
    %2360 = vmatprep.subr.mxu0 0.0
    %2361 = vmatpush1.msra.mxu0 0.0
    %2362 = vmatprep.subr.mxu0 0.0
    %2363 = vmatpush1.msra.mxu0 0.0
    %2364 = vmatprep.subr.mxu0 0.0
    %2365 = vmatpush1.msra.mxu0 0.0
    %2366 = vmatprep.subr.mxu0 0.0
    %2367 = vmatpush1.msra.mxu0 0.0
    %2368 = vmatprep.subr.mxu0 0.0
    %2369 = vmatpush1.msra.mxu0 0.0
    %2370 = vmatprep.subr.mxu0 0.0
    %2371 = vmatpush1.msra.mxu0 0.0
    %2372 = vmatprep.subr.mxu0 0.0
    %2373 = vmatpush1.msra.mxu0 0.0
    %2374 = vmatprep.subr.mxu0 0.0
    %2375 = vmatpush1.msra.mxu0 0.0
    %2376 = vmatprep.subr.mxu0 0.0
    %2377 = vmatpush1.msra.mxu0 0.0
    %2378 = vmatprep.mubr.f32.mxu0 0.0
    %2379 = vmatmul.mubr.f32.gmra.mrb[0].mxu0 %v2312
    %v2380 = vpop.f32.mrb[0].mxu0
    %v2381 = vadd.f32 0.0, %v2380
    %v2382 = vpop.f32.mrb[0].mxu0
    %2383 = vdwg.mxu0
    %s2384 = scalar_lea.vmem %s9, 512
    %v2385 = vld [vmem:[%s2384] sm:$0xff]
    %v2386 = vld [vmem:[%s2384 + $0x8] sm:$0xff]
    %v2387 = vld [vmem:[%s2384 + $0x10] sm:$0xff]
    %v2388 = vld [vmem:[%s2384 + $0x18] sm:$0xff]
    %v2389 = vld [vmem:[%s2384 + $0x20] sm:$0xff]
    %v2390 = vld [vmem:[%s2384 + $0x28] sm:$0xff]
    %v2391 = vld [vmem:[%s2384 + $0x30] sm:$0xff]
    %v2392 = vld [vmem:[%s2384 + $0x38] sm:$0xff]
    %v2393 = vld [vmem:[%s2384 + $0x40] sm:$0xff]
    %v2394 = vld [vmem:[%s2384 + $0x48] sm:$0xff]
    %v2395 = vld [vmem:[%s2384 + $0x50] sm:$0xff]
    %v2396 = vld [vmem:[%s2384 + $0x58] sm:$0xff]
    %v2397 = vld [vmem:[%s2384 + $0x60] sm:$0xff]
    %v2398 = vld [vmem:[%s2384 + $0x68] sm:$0xff]
    %v2399 = vld [vmem:[%s2384 + $0x70] sm:$0xff]
    %v2400 = vld [vmem:[%s2384 + $0x78] sm:$0xff]
    %v2401 = vld [vmem:[%s2384 + $0x80] sm:$0xff]
    %v2402 = vld [vmem:[%s2384 + $0x88] sm:$0xff]
    %v2403 = vld [vmem:[%s2384 + $0x90] sm:$0xff]
    %v2404 = vld [vmem:[%s2384 + $0x98] sm:$0xff]
    %v2405 = vld [vmem:[%s2384 + $0xa0] sm:$0xff]
    %v2406 = vld [vmem:[%s2384 + $0xa8] sm:$0xff]
    %v2407 = vld [vmem:[%s2384 + $0xb0] sm:$0xff]
    %v2408 = vld [vmem:[%s2384 + $0xb8] sm:$0xff]
    %v2409 = vld [vmem:[%s2384 + $0xc0] sm:$0xff]
    %v2410 = vld [vmem:[%s2384 + $0xc8] sm:$0xff]
    %v2411 = vld [vmem:[%s2384 + $0xd0] sm:$0xff]
    %v2412 = vld [vmem:[%s2384 + $0xd8] sm:$0xff]
    %v2413 = vld [vmem:[%s2384 + $0xe0] sm:$0xff]
    %v2414 = vld [vmem:[%s2384 + $0xe8] sm:$0xff]
    %v2415 = vld [vmem:[%s2384 + $0xf0] sm:$0xff]
    %v2416 = vld [vmem:[%s2384 + $0xf8] sm:$0xff]
    %2417 = vmatprep.subr.mxu0 %v2386
    %2418 = vmatpush1.msra.mxu0 %v2385
    %2419 = vmatprep.subr.mxu0 %v2388
    %2420 = vmatpush1.msra.mxu0 %v2387
    %2421 = vmatprep.subr.mxu0 %v2390
    %2422 = vmatpush1.msra.mxu0 %v2389
    %2423 = vmatprep.subr.mxu0 %v2392
    %2424 = vmatpush1.msra.mxu0 %v2391
    %2425 = vmatprep.subr.mxu0 %v2394
    %2426 = vmatpush1.msra.mxu0 %v2393
    %2427 = vmatprep.subr.mxu0 %v2396
    %2428 = vmatpush1.msra.mxu0 %v2395
    %2429 = vmatprep.subr.mxu0 %v2398
    %2430 = vmatpush1.msra.mxu0 %v2397
    %2431 = vmatprep.subr.mxu0 %v2400
    %2432 = vmatpush1.msra.mxu0 %v2399
    %2433 = vmatprep.subr.mxu0 %v2402
    %2434 = vmatpush1.msra.mxu0 %v2401
    %2435 = vmatprep.subr.mxu0 %v2404
    %2436 = vmatpush1.msra.mxu0 %v2403
    %2437 = vmatprep.subr.mxu0 %v2406
    %2438 = vmatpush1.msra.mxu0 %v2405
    %2439 = vmatprep.subr.mxu0 %v2408
    %2440 = vmatpush1.msra.mxu0 %v2407
    %2441 = vmatprep.subr.mxu0 %v2410
    %2442 = vmatpush1.msra.mxu0 %v2409
    %2443 = vmatprep.subr.mxu0 %v2412
    %2444 = vmatpush1.msra.mxu0 %v2411
    %2445 = vmatprep.subr.mxu0 %v2414
    %2446 = vmatpush1.msra.mxu0 %v2413
    %2447 = vmatprep.subr.mxu0 %v2416
    %2448 = vmatpush1.msra.mxu0 %v2415
    %2449 = vmatprep.subr.mxu0 0.0
    %2450 = vmatpush1.msra.mxu0 0.0
    %2451 = vmatprep.subr.mxu0 0.0
    %2452 = vmatpush1.msra.mxu0 0.0
    %2453 = vmatprep.subr.mxu0 0.0
    %2454 = vmatpush1.msra.mxu0 0.0
    %2455 = vmatprep.subr.mxu0 0.0
    %2456 = vmatpush1.msra.mxu0 0.0
    %2457 = vmatprep.subr.mxu0 0.0
    %2458 = vmatpush1.msra.mxu0 0.0
    %2459 = vmatprep.subr.mxu0 0.0
    %2460 = vmatpush1.msra.mxu0 0.0
    %2461 = vmatprep.subr.mxu0 0.0
    %2462 = vmatpush1.msra.mxu0 0.0
    %2463 = vmatprep.subr.mxu0 0.0
    %2464 = vmatpush1.msra.mxu0 0.0
    %2465 = vmatprep.subr.mxu0 0.0
    %2466 = vmatpush1.msra.mxu0 0.0
    %2467 = vmatprep.subr.mxu0 0.0
    %2468 = vmatpush1.msra.mxu0 0.0
    %2469 = vmatprep.subr.mxu0 0.0
    %2470 = vmatpush1.msra.mxu0 0.0
    %2471 = vmatprep.subr.mxu0 0.0
    %2472 = vmatpush1.msra.mxu0 0.0
    %2473 = vmatprep.subr.mxu0 0.0
    %2474 = vmatpush1.msra.mxu0 0.0
    %2475 = vmatprep.subr.mxu0 0.0
    %2476 = vmatpush1.msra.mxu0 0.0
    %2477 = vmatprep.subr.mxu0 0.0
    %2478 = vmatpush1.msra.mxu0 0.0
    %2479 = vmatprep.subr.mxu0 0.0
    %2480 = vmatpush1.msra.mxu0 0.0
    %2481 = vmatprep.mubr.f32.mxu0 0.0
    %2482 = vmatmul.mubr.f32.gmra.mrb[0].mxu0 %v2381
    %v2483 = vpop.f32.mrb[0].mxu0
    %v2484 = vadd.f32 0.0, %v2483
    %v2485 = vpop.f32.mrb[0].mxu0
    %v2486 = vadd.f32 0.0, %v2485
    %2487 = vdwg.mxu0
    %v2488 = vadd.f32 %v2303, %v2484
    %v2489 = vadd.f32 %v2305, %v2486
    %v2490 = vadd.s32 %v1945, 6
    %vm2491 = vcmp.eq.s32.totalorder %v1943, %v2490
    %v2492 = vsel %vm2491, 1, 0
    %v2493 = vcvt.s32.f32 %v2492
    %v2495 = vsel %vm1949, %v2493, 0
    %2497 = vmatprep.subr.mxu0 0.0
    %2498 = vmatpush1.msra.mxu0 %v1941
    %2499 = vmatprep.subr.mxu0 0.0
    %2500 = vmatpush1.msra.mxu0 0.0
    %2501 = vmatprep.subr.mxu0 0.0
    %2502 = vmatpush1.msra.mxu0 0.0
    %2503 = vmatprep.subr.mxu0 0.0
    %2504 = vmatpush1.msra.mxu0 0.0
    %2505 = vmatprep.subr.mxu0 0.0
    %2506 = vmatpush1.msra.mxu0 0.0
    %2507 = vmatprep.subr.mxu0 0.0
    %2508 = vmatpush1.msra.mxu0 0.0
    %2509 = vmatprep.subr.mxu0 0.0
    %2510 = vmatpush1.msra.mxu0 0.0
    %2511 = vmatprep.subr.mxu0 0.0
    %2512 = vmatpush1.msra.mxu0 0.0
    %2513 = vmatprep.subr.mxu0 0.0
    %2514 = vmatpush1.msra.mxu0 0.0
    %2515 = vmatprep.subr.mxu0 0.0
    %2516 = vmatpush1.msra.mxu0 0.0
    %2517 = vmatprep.subr.mxu0 0.0
    %2518 = vmatpush1.msra.mxu0 0.0
    %2519 = vmatprep.subr.mxu0 0.0
    %2520 = vmatpush1.msra.mxu0 0.0
    %2521 = vmatprep.subr.mxu0 0.0
    %2522 = vmatpush1.msra.mxu0 0.0
    %2523 = vmatprep.subr.mxu0 0.0
    %2524 = vmatpush1.msra.mxu0 0.0
    %2525 = vmatprep.subr.mxu0 0.0
    %2526 = vmatpush1.msra.mxu0 0.0
    %2527 = vmatprep.subr.mxu0 0.0
    %2528 = vmatpush1.msra.mxu0 0.0
    %2529 = vmatprep.subr.mxu0 0.0
    %2530 = vmatpush1.msra.mxu0 0.0
    %2531 = vmatprep.subr.mxu0 0.0
    %2532 = vmatpush1.msra.mxu0 0.0
    %2533 = vmatprep.subr.mxu0 0.0
    %2534 = vmatpush1.msra.mxu0 0.0
    %2535 = vmatprep.subr.mxu0 0.0
    %2536 = vmatpush1.msra.mxu0 0.0
    %2537 = vmatprep.subr.mxu0 0.0
    %2538 = vmatpush1.msra.mxu0 0.0
    %2539 = vmatprep.subr.mxu0 0.0
    %2540 = vmatpush1.msra.mxu0 0.0
    %2541 = vmatprep.subr.mxu0 0.0
    %2542 = vmatpush1.msra.mxu0 0.0
    %2543 = vmatprep.subr.mxu0 0.0
    %2544 = vmatpush1.msra.mxu0 0.0
    %2545 = vmatprep.subr.mxu0 0.0
    %2546 = vmatpush1.msra.mxu0 0.0
    %2547 = vmatprep.subr.mxu0 0.0
    %2548 = vmatpush1.msra.mxu0 0.0
    %2549 = vmatprep.subr.mxu0 0.0
    %2550 = vmatpush1.msra.mxu0 0.0
    %2551 = vmatprep.subr.mxu0 0.0
    %2552 = vmatpush1.msra.mxu0 0.0
    %2553 = vmatprep.subr.mxu0 0.0
    %2554 = vmatpush1.msra.mxu0 0.0
    %2555 = vmatprep.subr.mxu0 0.0
    %2556 = vmatpush1.msra.mxu0 0.0
    %2557 = vmatprep.subr.mxu0 0.0
    %2558 = vmatpush1.msra.mxu0 0.0
    %2559 = vmatprep.subr.mxu0 0.0
    %2560 = vmatpush1.msra.mxu0 0.0
    %2561 = vmatprep.mubr.f32.mxu0 0.0
    %2562 = vmatmul.mubr.f32.gmra.mrb[0].mxu0 %v2495
    %v2563 = vpop.f32.mrb[0].mxu0
    %v2564 = vadd.f32 0.0, %v2563
    %v2565 = vpop.f32.mrb[0].mxu0
    %2566 = vdwg.mxu0
    %s2567 = scalar_lea.vmem %s9, 768
    %v2568 = vld [vmem:[%s2567] sm:$0xff]
    %v2569 = vld [vmem:[%s2567 + $0x8] sm:$0xff]
    %v2570 = vld [vmem:[%s2567 + $0x10] sm:$0xff]
    %v2571 = vld [vmem:[%s2567 + $0x18] sm:$0xff]
    %v2572 = vld [vmem:[%s2567 + $0x20] sm:$0xff]
    %v2573 = vld [vmem:[%s2567 + $0x28] sm:$0xff]
    %v2574 = vld [vmem:[%s2567 + $0x30] sm:$0xff]
    %v2575 = vld [vmem:[%s2567 + $0x38] sm:$0xff]
    %v2576 = vld [vmem:[%s2567 + $0x40] sm:$0xff]
    %v2577 = vld [vmem:[%s2567 + $0x48] sm:$0xff]
    %v2578 = vld [vmem:[%s2567 + $0x50] sm:$0xff]
    %v2579 = vld [vmem:[%s2567 + $0x58] sm:$0xff]
    %v2580 = vld [vmem:[%s2567 + $0x60] sm:$0xff]
    %v2581 = vld [vmem:[%s2567 + $0x68] sm:$0xff]
    %v2582 = vld [vmem:[%s2567 + $0x70] sm:$0xff]
    %v2583 = vld [vmem:[%s2567 + $0x78] sm:$0xff]
    %v2584 = vld [vmem:[%s2567 + $0x80] sm:$0xff]
    %v2585 = vld [vmem:[%s2567 + $0x88] sm:$0xff]
    %v2586 = vld [vmem:[%s2567 + $0x90] sm:$0xff]
    %v2587 = vld [vmem:[%s2567 + $0x98] sm:$0xff]
    %v2588 = vld [vmem:[%s2567 + $0xa0] sm:$0xff]
    %v2589 = vld [vmem:[%s2567 + $0xa8] sm:$0xff]
    %v2590 = vld [vmem:[%s2567 + $0xb0] sm:$0xff]
    %v2591 = vld [vmem:[%s2567 + $0xb8] sm:$0xff]
    %v2592 = vld [vmem:[%s2567 + $0xc0] sm:$0xff]
    %v2593 = vld [vmem:[%s2567 + $0xc8] sm:$0xff]
    %v2594 = vld [vmem:[%s2567 + $0xd0] sm:$0xff]
    %v2595 = vld [vmem:[%s2567 + $0xd8] sm:$0xff]
    %v2596 = vld [vmem:[%s2567 + $0xe0] sm:$0xff]
    %v2597 = vld [vmem:[%s2567 + $0xe8] sm:$0xff]
    %v2598 = vld [vmem:[%s2567 + $0xf0] sm:$0xff]
    %v2599 = vld [vmem:[%s2567 + $0xf8] sm:$0xff]
    %2600 = vmatprep.subr.mxu0 %v2569
    %2601 = vmatpush1.msra.mxu0 %v2568
    %2602 = vmatprep.subr.mxu0 %v2571
    %2603 = vmatpush1.msra.mxu0 %v2570
    %2604 = vmatprep.subr.mxu0 %v2573
    %2605 = vmatpush1.msra.mxu0 %v2572
    %2606 = vmatprep.subr.mxu0 %v2575
    %2607 = vmatpush1.msra.mxu0 %v2574
    %2608 = vmatprep.subr.mxu0 %v2577
    %2609 = vmatpush1.msra.mxu0 %v2576
    %2610 = vmatprep.subr.mxu0 %v2579
    %2611 = vmatpush1.msra.mxu0 %v2578
    %2612 = vmatprep.subr.mxu0 %v2581
    %2613 = vmatpush1.msra.mxu0 %v2580
    %2614 = vmatprep.subr.mxu0 %v2583
    %2615 = vmatpush1.msra.mxu0 %v2582
    %2616 = vmatprep.subr.mxu0 %v2585
    %2617 = vmatpush1.msra.mxu0 %v2584
    %2618 = vmatprep.subr.mxu0 %v2587
    %2619 = vmatpush1.msra.mxu0 %v2586
    %2620 = vmatprep.subr.mxu0 %v2589
    %2621 = vmatpush1.msra.mxu0 %v2588
    %2622 = vmatprep.subr.mxu0 %v2591
    %2623 = vmatpush1.msra.mxu0 %v2590
    %2624 = vmatprep.subr.mxu0 %v2593
    %2625 = vmatpush1.msra.mxu0 %v2592
    %2626 = vmatprep.subr.mxu0 %v2595
    %2627 = vmatpush1.msra.mxu0 %v2594
    %2628 = vmatprep.subr.mxu0 %v2597
    %2629 = vmatpush1.msra.mxu0 %v2596
    %2630 = vmatprep.subr.mxu0 %v2599
    %2631 = vmatpush1.msra.mxu0 %v2598
    %2632 = vmatprep.subr.mxu0 0.0
    %2633 = vmatpush1.msra.mxu0 0.0
    %2634 = vmatprep.subr.mxu0 0.0
    %2635 = vmatpush1.msra.mxu0 0.0
    %2636 = vmatprep.subr.mxu0 0.0
    %2637 = vmatpush1.msra.mxu0 0.0
    %2638 = vmatprep.subr.mxu0 0.0
    %2639 = vmatpush1.msra.mxu0 0.0
    %2640 = vmatprep.subr.mxu0 0.0
    %2641 = vmatpush1.msra.mxu0 0.0
    %2642 = vmatprep.subr.mxu0 0.0
    %2643 = vmatpush1.msra.mxu0 0.0
    %2644 = vmatprep.subr.mxu0 0.0
    %2645 = vmatpush1.msra.mxu0 0.0
    %2646 = vmatprep.subr.mxu0 0.0
    %2647 = vmatpush1.msra.mxu0 0.0
    %2648 = vmatprep.subr.mxu0 0.0
    %2649 = vmatpush1.msra.mxu0 0.0
    %2650 = vmatprep.subr.mxu0 0.0
    %2651 = vmatpush1.msra.mxu0 0.0
    %2652 = vmatprep.subr.mxu0 0.0
    %2653 = vmatpush1.msra.mxu0 0.0
    %2654 = vmatprep.subr.mxu0 0.0
    %2655 = vmatpush1.msra.mxu0 0.0
    %2656 = vmatprep.subr.mxu0 0.0
    %2657 = vmatpush1.msra.mxu0 0.0
    %2658 = vmatprep.subr.mxu0 0.0
    %2659 = vmatpush1.msra.mxu0 0.0
    %2660 = vmatprep.subr.mxu0 0.0
    %2661 = vmatpush1.msra.mxu0 0.0
    %2662 = vmatprep.subr.mxu0 0.0
    %2663 = vmatpush1.msra.mxu0 0.0
    %2664 = vmatprep.mubr.f32.mxu0 0.0
    %2665 = vmatmul.mubr.f32.gmra.mrb[0].mxu0 %v2564
    %v2666 = vpop.f32.mrb[0].mxu0
    %v2667 = vadd.f32 0.0, %v2666
    %v2668 = vpop.f32.mrb[0].mxu0
    %v2669 = vadd.f32 0.0, %v2668
    %2670 = vdwg.mxu0
    %v2671 = vadd.f32 %v2488, %v2667
    %v2672 = vadd.f32 %v2489, %v2669
    %v2673 = vld [vmem:[%s10] sm:$0x3]
    %v2675 = vlaneseq
    %v2676 = vshrl.u32 %v2675, 7
    %v2677 = vsub.s32 0, %v2676
    %v2678 = vrot.slane %v2673, %v2677
    %v2679 = vlaneseq
    %v2680 = vshrl.u32 %v2679, 7
    %v2681 = vsub.s32 1, %v2680
    %v2682 = vrot.slane %v2673, %v2681
    %v2685 = vadd.f32 %v2671, %v2678
    %v2686 = vadd.f32 %v2672, %v2682
    %v2687 = vmax.f32 %v2685, 0.0
    %v2688 = vmax.f32 %v2686, 0.0
    %v2689 = vld [vmem:[%s11] sm:$0x3]
    %v2690 = vld [vmem:[%s12] sm:$0x3]
    %vm2691 = vcmask 1041408
    %v2692 = vsel %vm2691, %v2687, 0.0
    %v2693 = vrot.slane %v2692, 4
    %v2694 = vadd.f32 %v2692, %v2693
    %v2695 = vrot.slane %v2694, 2
    %v2696 = vadd.f32 %v2694, %v2695
    %v2697 = vrot.slane %v2696, 1
    %v2698 = vadd.f32 %v2696, %v2697
    %v2699 = vsel %vm2691, %v2688, 0.0
    %v2700 = vrot.slane %v2699, 4
    %v2701 = vadd.f32 %v2699, %v2700
    %v2702 = vrot.slane %v2701, 2
    %v2703 = vadd.f32 %v2701, %v2702
    %v2704 = vrot.slane %v2703, 1
    %v2705 = vadd.f32 %v2703, %v2704
    %v2706 = vrcp.pop 2.0
    %v2707 = vmul.f32 %v2698, %v2706
    %v2708 = vmul.f32 %v2705, %v2706
    %v2709 = vmul.f32 %v2687, %v2687
    %v2710 = vmul.f32 %v2688, %v2688
    %v2711 = vsel %vm2691, %v2709, 0.0
    %v2712 = vrot.slane %v2711, 4
    %v2713 = vadd.f32 %v2711, %v2712
    %v2714 = vrot.slane %v2713, 2
    %v2715 = vadd.f32 %v2713, %v2714
    %v2716 = vrot.slane %v2715, 1
    %v2717 = vadd.f32 %v2715, %v2716
    %v2718 = vsel %vm2691, %v2710, 0.0
    %v2719 = vrot.slane %v2718, 4
    %v2720 = vadd.f32 %v2718, %v2719
    %v2721 = vrot.slane %v2720, 2
    %v2722 = vadd.f32 %v2720, %v2721
    %v2723 = vrot.slane %v2722, 1
    %v2724 = vadd.f32 %v2722, %v2723
    %v2725 = vmul.f32 %v2717, %v2706
    %v2726 = vmul.f32 %v2724, %v2706
    %v2727 = vmul.f32 %v2707, %v2707
    %v2728 = vmul.f32 %v2708, %v2708
    %v2729 = vsub.f32 %v2725, %v2727
    %v2730 = vsub.f32 %v2726, %v2728
    %v2731 = vmax.f32 %v2729, 0.0
    %v2732 = vmax.f32 %v2730, 0.0
    %v2733 = vsub.f32 %v2687, %v2707
    %v2734 = vsub.f32 %v2688, %v2708
    %v2735 = vadd.f32 %v2731, 1e-05
    %v2736 = vadd.f32 %v2732, 1e-05
    %v2737 = vrsqrt.pop %v2735
    %v2738 = vrsqrt.pop %v2736
    %v2739 = vmul.f32 %v2733, %v2737
    %v2740 = vmul.f32 %v2734, %v2738
    %v2742 = vlaneseq
    %v2743 = vshrl.u32 %v2742, 7
    %v2744 = vsub.s32 0, %v2743
    %v2745 = vrot.slane %v2689, %v2744
    %v2746 = vlaneseq
    %v2747 = vshrl.u32 %v2746, 7
    %v2748 = vsub.s32 1, %v2747
    %v2749 = vrot.slane %v2689, %v2748
    %v2752 = vmul.f32 %v2739, %v2745
    %v2753 = vmul.f32 %v2740, %v2749
    %v2755 = vlaneseq
    %v2756 = vshrl.u32 %v2755, 7
    %v2757 = vsub.s32 0, %v2756
    %v2758 = vrot.slane %v2690, %v2757
    %v2759 = vlaneseq
    %v2760 = vshrl.u32 %v2759, 7
    %v2761 = vsub.s32 1, %v2760
    %v2762 = vrot.slane %v2690, %v2761
    %v2765 = vadd.f32 %v2752, %v2758
    %v2766 = vadd.f32 %v2753, %v2762
    %v2767 = vld [vmem:[%s13] sm:$0xff]
    %v2768 = vld [vmem:[%s13 + $0x8] sm:$0xff]
    %v2769 = vld [vmem:[%s13 + $0x10] sm:$0xff]
    %v2770 = vld [vmem:[%s13 + $0x18] sm:$0xff]
    %v2771 = vld [vmem:[%s13 + $0x20] sm:$0xff]
    %v2772 = vld [vmem:[%s13 + $0x28] sm:$0xff]
    %v2773 = vld [vmem:[%s13 + $0x30] sm:$0xff]
    %v2774 = vld [vmem:[%s13 + $0x38] sm:$0xff]
    %v2775 = vld [vmem:[%s13 + $0x40] sm:$0xff]
    %v2776 = vld [vmem:[%s13 + $0x48] sm:$0xff]
    %v2777 = vld [vmem:[%s13 + $0x50] sm:$0xff]
    %v2778 = vld [vmem:[%s13 + $0x58] sm:$0xff]
    %v2779 = vld [vmem:[%s13 + $0x60] sm:$0xff]
    %v2780 = vld [vmem:[%s13 + $0x68] sm:$0xff]
    %v2781 = vld [vmem:[%s13 + $0x70] sm:$0xff]
    %v2782 = vld [vmem:[%s13 + $0x78] sm:$0xff]
    %v2783 = vld [vmem:[%s13 + $0x80] sm:$0xff]
    %v2784 = vld [vmem:[%s13 + $0x88] sm:$0xff]
    %v2785 = vld [vmem:[%s13 + $0x90] sm:$0xff]
    %v2786 = vld [vmem:[%s13 + $0x98] sm:$0xff]
    %v2787 = vld [vmem:[%s13 + $0xa0] sm:$0xff]
    %v2788 = vld [vmem:[%s13 + $0xa8] sm:$0xff]
    %v2789 = vld [vmem:[%s13 + $0xb0] sm:$0xff]
    %v2790 = vld [vmem:[%s13 + $0xb8] sm:$0xff]
    %v2791 = vld [vmem:[%s13 + $0xc0] sm:$0xff]
    %v2792 = vld [vmem:[%s13 + $0xc8] sm:$0xff]
    %v2793 = vld [vmem:[%s13 + $0xd0] sm:$0xff]
    %v2794 = vld [vmem:[%s13 + $0xd8] sm:$0xff]
    %v2795 = vld [vmem:[%s13 + $0xe0] sm:$0xff]
    %v2796 = vld [vmem:[%s13 + $0xe8] sm:$0xff]
    %v2797 = vld [vmem:[%s13 + $0xf0] sm:$0xff]
    %v2798 = vld [vmem:[%s13 + $0xf8] sm:$0xff]
    %v2799 = vld [vmem:[%s14] sm:$0x1]
    %v2801 = vlaneseq
    %v2802 = vshrl.u32 %v2801, 7
    %v2803 = vsub.s32 0, %v2802
    %v2804 = vrot.slane %v2799, %v2803
    %2806 = vmatprep.subr.mxu0 0.0
    %2807 = vmatpush1.msra.mxu0 %v2767
    %2808 = vmatprep.subr.mxu0 0.0
    %2809 = vmatpush1.msra.mxu0 %v2768
    %2810 = vmatprep.subr.mxu0 0.0
    %2811 = vmatpush1.msra.mxu0 %v2769
    %2812 = vmatprep.subr.mxu0 0.0
    %2813 = vmatpush1.msra.mxu0 %v2770
    %2814 = vmatprep.subr.mxu0 0.0
    %2815 = vmatpush1.msra.mxu0 %v2771
    %2816 = vmatprep.subr.mxu0 0.0
    %2817 = vmatpush1.msra.mxu0 %v2772
    %2818 = vmatprep.subr.mxu0 0.0
    %2819 = vmatpush1.msra.mxu0 %v2773
    %2820 = vmatprep.subr.mxu0 0.0
    %2821 = vmatpush1.msra.mxu0 %v2774
    %2822 = vmatprep.subr.mxu0 0.0
    %2823 = vmatpush1.msra.mxu0 %v2775
    %2824 = vmatprep.subr.mxu0 0.0
    %2825 = vmatpush1.msra.mxu0 %v2776
    %2826 = vmatprep.subr.mxu0 0.0
    %2827 = vmatpush1.msra.mxu0 %v2777
    %2828 = vmatprep.subr.mxu0 0.0
    %2829 = vmatpush1.msra.mxu0 %v2778
    %2830 = vmatprep.subr.mxu0 0.0
    %2831 = vmatpush1.msra.mxu0 %v2779
    %2832 = vmatprep.subr.mxu0 0.0
    %2833 = vmatpush1.msra.mxu0 %v2780
    %2834 = vmatprep.subr.mxu0 0.0
    %2835 = vmatpush1.msra.mxu0 %v2781
    %2836 = vmatprep.subr.mxu0 0.0
    %2837 = vmatpush1.msra.mxu0 %v2782
    %2838 = vmatprep.subr.mxu0 0.0
    %2839 = vmatpush1.msra.mxu0 %v2783
    %2840 = vmatprep.subr.mxu0 0.0
    %2841 = vmatpush1.msra.mxu0 %v2784
    %2842 = vmatprep.subr.mxu0 0.0
    %2843 = vmatpush1.msra.mxu0 %v2785
    %2844 = vmatprep.subr.mxu0 0.0
    %2845 = vmatpush1.msra.mxu0 %v2786
    %2846 = vmatprep.subr.mxu0 0.0
    %2847 = vmatpush1.msra.mxu0 %v2787
    %2848 = vmatprep.subr.mxu0 0.0
    %2849 = vmatpush1.msra.mxu0 %v2788
    %2850 = vmatprep.subr.mxu0 0.0
    %2851 = vmatpush1.msra.mxu0 %v2789
    %2852 = vmatprep.subr.mxu0 0.0
    %2853 = vmatpush1.msra.mxu0 %v2790
    %2854 = vmatprep.subr.mxu0 0.0
    %2855 = vmatpush1.msra.mxu0 %v2791
    %2856 = vmatprep.subr.mxu0 0.0
    %2857 = vmatpush1.msra.mxu0 %v2792
    %2858 = vmatprep.subr.mxu0 0.0
    %2859 = vmatpush1.msra.mxu0 %v2793
    %2860 = vmatprep.subr.mxu0 0.0
    %2861 = vmatpush1.msra.mxu0 %v2794
    %2862 = vmatprep.subr.mxu0 0.0
    %2863 = vmatpush1.msra.mxu0 %v2795
    %2864 = vmatprep.subr.mxu0 0.0
    %2865 = vmatpush1.msra.mxu0 %v2796
    %2866 = vmatprep.subr.mxu0 0.0
    %2867 = vmatpush1.msra.mxu0 %v2797
    %2868 = vmatprep.subr.mxu0 0.0
    %2869 = vmatpush1.msra.mxu0 %v2798
    %2870 = vmatprep.mubr.f32.mxu0 %v2766
    %2871 = vmatmul.mubr.f32.gmra.mrb[0].mxu0 %v2765
    %v2872 = vpop.f32.mrb[0].mxu0
    %v2873 = vadd.f32 %v2804, %v2872
    %v2874 = vpop.f32.mrb[0].mxu0
    %2875 = vdwg.mxu0
    %v2876 = vmax.f32 %v2873, 0.0
    %v2877 = vld [vmem:[%s15] sm:$0x1]
    %v2878 = vld [vmem:[%s16] sm:$0x1]
    %vm2879 = vcmask 50176
    %v2880 = vsel %vm2879, %v2876, 0.0
    %v2881 = vrot.slane %v2880, 4
    %v2882 = vadd.f32 %v2880, %v2881
    %v2883 = vrot.slane %v2882, 2
    %v2884 = vadd.f32 %v2882, %v2883
    %v2885 = vrot.slane %v2884, 1
    %v2886 = vadd.f32 %v2884, %v2885
    %v2887 = vmul.f32 %v2886, %v2706
    %v2888 = vmul.f32 %v2876, %v2876
    %v2889 = vsel %vm2879, %v2888, 0.0
    %v2890 = vrot.slane %v2889, 4
    %v2891 = vadd.f32 %v2889, %v2890
    %v2892 = vrot.slane %v2891, 2
    %v2893 = vadd.f32 %v2891, %v2892
    %v2894 = vrot.slane %v2893, 1
    %v2895 = vadd.f32 %v2893, %v2894
    %v2896 = vmul.f32 %v2895, %v2706
    %v2897 = vmul.f32 %v2887, %v2887
    %v2898 = vsub.f32 %v2896, %v2897
    %v2899 = vmax.f32 %v2898, 0.0
    %v2900 = vsub.f32 %v2876, %v2887
    %v2901 = vadd.f32 %v2899, 1e-05
    %v2902 = vrsqrt.pop %v2901
    %v2903 = vmul.f32 %v2900, %v2902
    %v2905 = vlaneseq
    %v2906 = vshrl.u32 %v2905, 7
    %v2907 = vsub.s32 0, %v2906
    %v2908 = vrot.slane %v2877, %v2907
    %v2910 = vmul.f32 %v2903, %v2908
    %v2912 = vlaneseq
    %v2913 = vshrl.u32 %v2912, 7
    %v2914 = vsub.s32 0, %v2913
    %v2915 = vrot.slane %v2878, %v2914
    %v2917 = vadd.f32 %v2910, %v2915
    %v2918 = vsel %vm2879, %v2917, -inf
    %2919 = vmax.xlane.f32.xlu0 %v2918
    %v2920 = vpop.xlane.xlu0 %2919
    %v2921 = vsub.f32 %v2917, %v2920
    %v2922 = vmul.f32 %v2921, 1.442695
    %v2923 = vpow.pop %v2922
    %v2924 = vsel %vm2879, %v2923, 0.0
    %2925 = vadd.xlane.f32.xlu0 %v2924
    %v2926 = vpop.xlane.xlu0 %2925
    %v2927 = vrcp.pop %v2926
    %v2928 = vmul.f32 %v2923, %v2927
    %2929 = vst.msk [vmem:[#allocation2] sm:$0x3] %vm2879, %v2928
    // Predicated region
    $region70: #{model_forward.1} parent=1 // pred_check
      _
    $region71: #{model_forward.1} parent=1 // pred_check_branch
      %2931 = sbr.rel (0) target = $region73
    $region72: #{model_forward.1} parent=1 // pred_region
      %s2933 = ssub.s32 32, 32
      %2934 = vsyncadd [#allocation3], %s2933
      %s2936 = sshll.u32 [#allocation2], 4
      %s2937 = int_to_ptr.vmem [resolvable:$true] %s2936
      %2939 = dma.vmem_to_hbm [thread:$0]  %s2937, 32, %s17, [#allocation3]
    $region73: #{model_forward.1} parent=1 // pred_fallthru
      _
    // Predicated region
    $region74: #{model_forward.1} parent=1 // pred_check
      _
    $region75: #{model_forward.1} parent=1 // pred_check_branch
      %2941 = sbr.rel (0) target = $region77
    $region76: #{model_forward.1} parent=1 // pred_region
      %2942 = dma.done [#allocation3], 32
    $region77: #{model_forward.1} parent=1 // pred_fallthru
      _
    %2943 = vsyncpa [#allocation3], 1

</llo_original>
